<compile_context>
chip_gen: v5e
topology: v5e:2x2
jax: 0.10.0
libtpu: 0.0.40
codegen_flags: <defaults>
</compile_context>

<pallas_src>
import jax
import jax.numpy as jnp
from jax import lax
from jax.experimental import pallas as pl
from jax.experimental.pallas import tpu as pltpu


# ----------------------------------------------------------------------------
# Stand-in model config (Encoder = first len(CHANNEL_LST)//2 blocks).
# ----------------------------------------------------------------------------
CHANNEL_LST = [8, 16, 32, 64]
N_ENC = len(CHANNEL_LST) // 2          # = 2 conv blocks in the Encoder

B, C_IN, H, W = 2, 4, 16, 16           # module-consistent small test shape
C1, C2 = CHANNEL_LST[0], CHANNEL_LST[1]          # 8, 16
OUT_H, OUT_W = H // 4, W // 4                    # 4, 4  (two stride-2 blocks)


# ----------------------------------------------------------------------------
# Fused Pallas kernel: two Conv2d(3x3, s=2, p=1)+ReLU blocks per batch element.
#
# Data layouts (all channels-last):
#   x_ref   (1, 5, 5, 64)  bf16 : mod-4 space-to-depth of the zero-padded input
#                                  x_s2d[a, b, pR*16 + pC*4 + ci] = x_pad[4a+pR, 4b+pC, ci]
#   w1g_ref (16, 64, 8)    bf16 : layer-1 weights zero-embedded per
#                                  (out-row-phase, out-col-phase, group) -> K=64
#   w2g_ref (4, 32, 16)    bf16 : layer-2 weights zero-embedded per group -> K=32
#   h1s_ref (5, 5, 32)     bf16 : VMEM scratch, mod-2 space-to-depth of the
#                                  padded layer-1 output
#   o_ref   (1, 4, 4, 16)  f32  : layer-2 output (NHWC block)
# ----------------------------------------------------------------------------
def _encoder2_kernel(x_ref, w1g_ref, b1_ref, w2g_ref, b2_ref, o_ref, h1s_ref):
    # Zero the scratch every grid step: its untouched border cells are the
    # zero-padding of the intermediate activation (also keeps megacore grid
    # splits correct, since scratch is per-core and uninitialized).
    h1s_ref[...] = jnp.zeros((5, 5, 4 * C1), jnp.bfloat16)

    b1 = b1_ref[...]                    # (1, C1)  f32
    b2 = b2_ref[...]                    # (1, C2)  f32

    # ---------------- layer 1:  C_IN=4 -> C1=8,  16x16 -> 8x8 ----------------
    # Computed per output phase (oh%2, ow%2) and per output row, so that every
    # tap read is a static contiguous slice of the mod-4 space-to-depth input.
    for p1 in range(2):                 # output-row phase (oh % 2)
        for q1 in range(2):             # output-col phase (ow % 2)
            # scratch placement of this output phase (padded, phase-packed)
            r_off = (p1 + 1) // 2
            c_off = (q1 + 1) // 2
            ch_s = ((p1 + 1) % 2) * (2 * C1) + ((q1 + 1) % 2) * C1
            for ii in range(4):         # output row i (oh = 2*ii + p1)
                acc = jnp.zeros((4, C1), jnp.float32)
                for r0 in range(2):
                    for c0 in range(2):
                        # groups that contain no tap for this phase are all-zero
                        if (r0 == 1 and p1 == 0) or (c0 == 1 and q1 == 0):
                            continue
                        row = x_ref[0, r0 + ii, c0:c0 + 4, :]        # (4, 64) bf16
                        gi = p1 * 8 + q1 * 4 + r0 * 2 + c0
                        acc = acc + jnp.dot(
                            row, w1g_ref[gi],
                            preferred_element_type=jnp.float32)
                h1row = jnp.maximum(acc + b1, 0.0)                    # (4, C1) f32
                h1s_ref[r_off + ii, c_off:c_off + 4, ch_s:ch_s + C1] = (
                    h1row.astype(jnp.bfloat16))

    # ---------------- layer 2:  C1=8 -> C2=16,  8x8 -> 4x4 ----------------
    for ii in range(4):                 # output row o2h = ii
        acc2 = jnp.zeros((4, C2), jnp.float32)
        for r0 in range(2):
            for c0 in range(2):
                row = h1s_ref[r0 + ii, c0:c0 + 4, :]                  # (4, 32) bf16
                acc2 = acc2 + jnp.dot(
                    row, w2g_ref[r0 * 2 + c0],
                    preferred_element_type=jnp.float32)
        o_ref[0, ii, :, :] = jnp.maximum(acc2 + b2, 0.0).astype(o_ref.dtype)


# ----------------------------------------------------------------------------
# Host-side layout plumbing (cheap XLA ops, no data blow-up).
# ----------------------------------------------------------------------------
def _pack_input(x_nchw):
    """NCHW -> padded NHWC -> mod-4 space-to-depth, bf16.  (B,4,16,16)->(B,5,5,64)."""
    x = jnp.transpose(x_nchw, (0, 2, 3, 1))                       # NHWC
    x = jnp.pad(x, ((0, 0), (1, 3), (1, 3), (0, 0)))              # (B, 20, 20, C)
    nb = x.shape[0]
    x = x.reshape(nb, 5, 4, 5, 4, C_IN)
    x = jnp.transpose(x, (0, 1, 3, 2, 4, 5))                      # (B,5,5,4,4,C)
    x = x.reshape(nb, 5, 5, 16 * C_IN)                            # ch = pR*16+pC*4+ci
    return x.astype(jnp.bfloat16)


def _pack_w1(w1):
    """(C1, C_IN, 3, 3) -> (16, 64, C1): zero-embedded per (out-phase, group)."""
    wg = jnp.zeros((2, 2, 2, 2, 16 * C_IN, C1), jnp.float32)
    for p1 in range(2):
        for q1 in range(2):
            for kh in range(3):
                for kw in range(3):
                    sr, sc = 2 * p1 + kh, 2 * q1 + kw
                    ch0 = (sr % 4) * (4 * C_IN) + (sc % 4) * C_IN
                    wg = wg.at[p1, q1, sr // 4, sc // 4,
                               ch0:ch0 + C_IN, :].set(w1[:, :, kh, kw].T)
    return wg.reshape(16, 16 * C_IN, C1).astype(jnp.bfloat16)


def _pack_w2(w2):
    """(C2, C1, 3, 3) -> (4, 32, C2): zero-embedded per group over the scratch layout."""
    wg = jnp.zeros((2, 2, 4 * C1, C2), jnp.float32)
    for kh in range(3):
        for kw in range(3):
            ch0 = (kh % 2) * (2 * C1) + (kw % 2) * C1
            wg = wg.at[kh // 2, kw // 2, ch0:ch0 + C1, :].set(w2[:, :, kh, kw].T)
    return wg.reshape(4, 4 * C1, C2).astype(jnp.bfloat16)


@jax.jit
def encoder_forward(x_nchw, w1, b1, w2, b2):
    """Encoder.forward == forward_till_layer_n(x, len(channel_lst)//2) == 2 blocks."""
    nb = x_nchw.shape[0]
    xs = _pack_input(x_nchw)
    w1g = _pack_w1(w1)
    w2g = _pack_w2(w2)
    b1r = b1.reshape(1, C1).astype(jnp.float32)
    b2r = b2.reshape(1, C2).astype(jnp.float32)

    out_nhwc = pl.pallas_call(
        _encoder2_kernel,
        out_shape=jax.ShapeDtypeStruct((nb, OUT_H, OUT_W, C2), jnp.float32),
        grid=(nb,),
        in_specs=[
            pl.BlockSpec((1, 5, 5, 16 * C_IN), lambda b: (b, 0, 0, 0)),
            pl.BlockSpec((16, 16 * C_IN, C1), lambda b: (0, 0, 0)),
            pl.BlockSpec((1, C1), lambda b: (0, 0)),
            pl.BlockSpec((4, 4 * C1, C2), lambda b: (0, 0, 0)),
            pl.BlockSpec((1, C2), lambda b: (0, 0)),
        ],
        out_specs=pl.BlockSpec((1, OUT_H, OUT_W, C2), lambda b: (b, 0, 0, 0)),
        scratch_shapes=[pltpu.VMEM((5, 5, 4 * C1), jnp.bfloat16)],
        compiler_params=pltpu.CompilerParams(
            dimension_semantics=("parallel",)),
    )(xs, w1g, b1r, w2g, b2r)

    return jnp.transpose(out_nhwc, (0, 3, 1, 2))   # back to NCHW (PyTorch layout)


# ----------------------------------------------------------------------------
# Parameters + plain-JAX reference (for an in-script correctness check).
# ----------------------------------------------------------------------------
def init_params(key):
    kw1, kb1, kw2, kb2 = jax.random.split(key, 4)
    w1 = jax.random.normal(kw1, (C1, C_IN, 3, 3), jnp.float32) / jnp.sqrt(C_IN * 9)
    b1 = 0.01 * jax.random.normal(kb1, (C1,), jnp.float32)
    w2 = jax.random.normal(kw2, (C2, C1, 3, 3), jnp.float32) / jnp.sqrt(C1 * 9)
    b2 = 0.01 * jax.random.normal(kb2, (C2,), jnp.float32)
    return w1, b1, w2, b2


def reference_forward(x, w1, b1, w2, b2):
    y = lax.conv_general_dilated(x, w1, (2, 2), ((1, 1), (1, 1)),
                                 dimension_numbers=("NCHW", "OIHW", "NCHW"),
                                 precision=lax.Precision.HIGHEST)
    y = jnp.maximum(y + b1[None, :, None, None], 0.0)
    y = lax.conv_general_dilated(y, w2, (2, 2), ((1, 1), (1, 1)),
                                 dimension_numbers=("NCHW", "OIHW", "NCHW"),
                                 precision=lax.Precision.HIGHEST)
    y = jnp.maximum(y + b2[None, :, None, None], 0.0)
    return y


if __name__ == "__main__":
    key = jax.random.PRNGKey(0)
    kx, kp = jax.random.split(key)

    x = jax.random.normal(kx, (B, C_IN, H, W), jnp.float32)
    w1, b1, w2, b2 = init_params(kp)

    out = jax.block_until_ready(encoder_forward(x, w1, b1, w2, b2))

    # Two stride-2 blocks: (2,4,16,16) -> (2,8,8,8) -> (2,16,4,4)
    assert out.shape == (B, C2, OUT_H, OUT_W), out.shape
    assert bool(jnp.all(jnp.isfinite(out)))

    ref = reference_forward(x, w1, b1, w2, b2)
    max_err = float(jnp.max(jnp.abs(out - ref)))
    assert max_err < 0.1, f"max abs error vs f32 reference = {max_err}"

    print("KERNEL_OK")
</pallas_src>

<mosaic_0001>
module attributes {stable_mosaic.version = 11 : i64} {
  func.func @_encoder2_kernel(%arg0: i32, %arg1: memref<1x5x5x64xbf16, #tpu.memory_space<vmem>>, %arg2: memref<16x64x8xbf16, #tpu.memory_space<vmem>>, %arg3: memref<1x8xf32, #tpu.memory_space<vmem>>, %arg4: memref<4x32x16xbf16, #tpu.memory_space<vmem>>, %arg5: memref<1x16xf32, #tpu.memory_space<vmem>>, %arg6: memref<1x4x4x16xf32, #tpu.memory_space<vmem>>, %arg7: memref<5x5x32xbf16, #tpu.memory_space<vmem>>) attributes {dimension_semantics = [#tpu.dimension_semantics<parallel>], iteration_bounds = array<i64: 2>, scalar_prefetch = 0 : i64, scratch_operands = 1 : i64, tpu.core_type = #tpu.core_type<tc>, window_params = [{transform_indices = @transform_0, window_bounds = array<i64: 1, 5, 5, 64>}, {pipeline_mode = #tpu.pipeline_mode<synchronous>, transform_indices = @transform_1, window_bounds = array<i64: 16, 64, 8>}, {pipeline_mode = #tpu.pipeline_mode<synchronous>, transform_indices = @transform_2, window_bounds = array<i64: 1, 8>}, {pipeline_mode = #tpu.pipeline_mode<synchronous>, transform_indices = @transform_3, window_bounds = array<i64: 4, 32, 16>}, {pipeline_mode = #tpu.pipeline_mode<synchronous>, transform_indices = @transform_4, window_bounds = array<i64: 1, 16>}, {transform_indices = @transform_5, window_bounds = array<i64: 1, 4, 4, 16>}]} {
    %cst = arith.constant 0.000000e+00 : bf16
    %0 = vector.broadcast %cst : bf16 to vector<5x5x32xbf16>
    %c0 = arith.constant 0 : index
    %c0_0 = arith.constant 0 : index
    %c0_1 = arith.constant 0 : index
    %1 = vector.load %arg7[%c0, %c0_0, %c0_1] : memref<5x5x32xbf16, #tpu.memory_space<vmem>>, vector<5x5x32xbf16>
    tpu.vector_store %arg7[%c0, %c0_0, %c0_1], %0 {strides = array<i32>} : memref<5x5x32xbf16, #tpu.memory_space<vmem>>, vector<5x5x32xbf16>,
    %c0_2 = arith.constant 0 : index
    %c0_3 = arith.constant 0 : index
    %2 = vector.load %arg3[%c0_2, %c0_3] : memref<1x8xf32, #tpu.memory_space<vmem>>, vector<1x8xf32>
    %c0_4 = arith.constant 0 : index
    %c0_5 = arith.constant 0 : index
    %3 = vector.load %arg5[%c0_4, %c0_5] : memref<1x16xf32, #tpu.memory_space<vmem>>, vector<1x16xf32>
    %cst_6 = arith.constant 0.000000e+00 : f32
    %4 = vector.broadcast %cst_6 : f32 to vector<4x8xf32>
    %c0_7 = arith.constant 0 : index
    %c0_8 = arith.constant 0 : index
    %c0_9 = arith.constant 0 : index
    %c0_10 = arith.constant 0 : index
    %5 = vector.load %arg1[%c0_7, %c0_8, %c0_9, %c0_10] : memref<1x5x5x64xbf16, #tpu.memory_space<vmem>>, vector<1x1x4x64xbf16>
    %6 = vector.shape_cast %5 : vector<1x1x4x64xbf16> to vector<4x64xbf16>
    %c0_11 = arith.constant 0 : index
    %c0_12 = arith.constant 0 : index
    %c0_13 = arith.constant 0 : index
    %7 = vector.load %arg2[%c0_11, %c0_12, %c0_13] : memref<16x64x8xbf16, #tpu.memory_space<vmem>>, vector<1x64x8xbf16>
    %8 = vector.shape_cast %7 : vector<1x64x8xbf16> to vector<64x8xbf16>
    %cst_14 = arith.constant dense<0.000000e+00> : vector<4x8xf32>
    %9 = tpu.matmul %6, %8, %cst_14 {dimension_numbers = #tpu.dot_dimension_numbers<[1], [0], [0], [1], [0, 0, 1, 1], [], []>} : vector<4x64xbf16>, vector<64x8xbf16>, vector<4x8xf32> -> vector<4x8xf32>
    %10 = arith.addf %4, %9 : vector<4x8xf32>
    %11 = vector.broadcast %2 : vector<1x8xf32> to vector<4x8xf32>
    %12 = arith.addf %10, %11 : vector<4x8xf32>
    %cst_15 = arith.constant 0.000000e+00 : f32
    %13 = vector.broadcast %cst_15 : f32 to vector<4x8xf32>
    %14 = arith.maximumf %12, %13 : vector<4x8xf32>
    %15 = arith.truncf %14 : vector<4x8xf32> to vector<4x8xbf16>
    %c0_16 = arith.constant 0 : index
    %c0_17 = arith.constant 0 : index
    %c24 = arith.constant 24 : index
    %16 = vector.load %arg7[%c0_16, %c0_17, %c24] : memref<5x5x32xbf16, #tpu.memory_space<vmem>>, vector<1x4x8xbf16>
    %17 = vector.shape_cast %16 : vector<1x4x8xbf16> to vector<4x8xbf16>
    %18 = vector.shape_cast %15 : vector<4x8xbf16> to vector<1x4x8xbf16>
    tpu.vector_store %arg7[%c0_16, %c0_17, %c24], %18 {strides = array<i32>} : memref<5x5x32xbf16, #tpu.memory_space<vmem>>, vector<1x4x8xbf16>,
    %cst_18 = arith.constant 0.000000e+00 : f32
    %19 = vector.broadcast %cst_18 : f32 to vector<4x8xf32>
    %c0_19 = arith.constant 0 : index
    %c1 = arith.constant 1 : index
    %c0_20 = arith.constant 0 : index
    %c0_21 = arith.constant 0 : index
    %20 = vector.load %arg1[%c0_19, %c1, %c0_20, %c0_21] : memref<1x5x5x64xbf16, #tpu.memory_space<vmem>>, vector<1x1x4x64xbf16>
    %21 = vector.shape_cast %20 : vector<1x1x4x64xbf16> to vector<4x64xbf16>
    %c0_22 = arith.constant 0 : index
    %c0_23 = arith.constant 0 : index
    %c0_24 = arith.constant 0 : index
    %22 = vector.load %arg2[%c0_22, %c0_23, %c0_24] : memref<16x64x8xbf16, #tpu.memory_space<vmem>>, vector<1x64x8xbf16>
    %23 = vector.shape_cast %22 : vector<1x64x8xbf16> to vector<64x8xbf16>
    %cst_25 = arith.constant dense<0.000000e+00> : vector<4x8xf32>
    %24 = tpu.matmul %21, %23, %cst_25 {dimension_numbers = #tpu.dot_dimension_numbers<[1], [0], [0], [1], [0, 0, 1, 1], [], []>} : vector<4x64xbf16>, vector<64x8xbf16>, vector<4x8xf32> -> vector<4x8xf32>
    %25 = arith.addf %19, %24 : vector<4x8xf32>
    %26 = vector.broadcast %2 : vector<1x8xf32> to vector<4x8xf32>
    %27 = arith.addf %25, %26 : vector<4x8xf32>
    %cst_26 = arith.constant 0.000000e+00 : f32
    %28 = vector.broadcast %cst_26 : f32 to vector<4x8xf32>
    %29 = arith.maximumf %27, %28 : vector<4x8xf32>
    %30 = arith.truncf %29 : vector<4x8xf32> to vector<4x8xbf16>
    %c1_27 = arith.constant 1 : index
    %c0_28 = arith.constant 0 : index
    %c24_29 = arith.constant 24 : index
    %31 = vector.load %arg7[%c1_27, %c0_28, %c24_29] : memref<5x5x32xbf16, #tpu.memory_space<vmem>>, vector<1x4x8xbf16>
    %32 = vector.shape_cast %31 : vector<1x4x8xbf16> to vector<4x8xbf16>
    %33 = vector.shape_cast %30 : vector<4x8xbf16> to vector<1x4x8xbf16>
    tpu.vector_store %arg7[%c1_27, %c0_28, %c24_29], %33 {strides = array<i32>} : memref<5x5x32xbf16, #tpu.memory_space<vmem>>, vector<1x4x8xbf16>,
    %cst_30 = arith.constant 0.000000e+00 : f32
    %34 = vector.broadcast %cst_30 : f32 to vector<4x8xf32>
    %c0_31 = arith.constant 0 : index
    %c2 = arith.constant 2 : index
    %c0_32 = arith.constant 0 : index
    %c0_33 = arith.constant 0 : index
    %35 = vector.load %arg1[%c0_31, %c2, %c0_32, %c0_33] : memref<1x5x5x64xbf16, #tpu.memory_space<vmem>>, vector<1x1x4x64xbf16>
    %36 = vector.shape_cast %35 : vector<1x1x4x64xbf16> to vector<4x64xbf16>
    %c0_34 = arith.constant 0 : index
    %c0_35 = arith.constant 0 : index
    %c0_36 = arith.constant 0 : index
    %37 = vector.load %arg2[%c0_34, %c0_35, %c0_36] : memref<16x64x8xbf16, #tpu.memory_space<vmem>>, vector<1x64x8xbf16>
    %38 = vector.shape_cast %37 : vector<1x64x8xbf16> to vector<64x8xbf16>
    %cst_37 = arith.constant dense<0.000000e+00> : vector<4x8xf32>
    %39 = tpu.matmul %36, %38, %cst_37 {dimension_numbers = #tpu.dot_dimension_numbers<[1], [0], [0], [1], [0, 0, 1, 1], [], []>} : vector<4x64xbf16>, vector<64x8xbf16>, vector<4x8xf32> -> vector<4x8xf32>
    %40 = arith.addf %34, %39 : vector<4x8xf32>
    %41 = vector.broadcast %2 : vector<1x8xf32> to vector<4x8xf32>
    %42 = arith.addf %40, %41 : vector<4x8xf32>
    %cst_38 = arith.constant 0.000000e+00 : f32
    %43 = vector.broadcast %cst_38 : f32 to vector<4x8xf32>
    %44 = arith.maximumf %42, %43 : vector<4x8xf32>
    %45 = arith.truncf %44 : vector<4x8xf32> to vector<4x8xbf16>
    %c2_39 = arith.constant 2 : index
    %c0_40 = arith.constant 0 : index
    %c24_41 = arith.constant 24 : index
    %46 = vector.load %arg7[%c2_39, %c0_40, %c24_41] : memref<5x5x32xbf16, #tpu.memory_space<vmem>>, vector<1x4x8xbf16>
    %47 = vector.shape_cast %46 : vector<1x4x8xbf16> to vector<4x8xbf16>
    %48 = vector.shape_cast %45 : vector<4x8xbf16> to vector<1x4x8xbf16>
    tpu.vector_store %arg7[%c2_39, %c0_40, %c24_41], %48 {strides = array<i32>} : memref<5x5x32xbf16, #tpu.memory_space<vmem>>, vector<1x4x8xbf16>,
    %cst_42 = arith.constant 0.000000e+00 : f32
    %49 = vector.broadcast %cst_42 : f32 to vector<4x8xf32>
    %c0_43 = arith.constant 0 : index
    %c3 = arith.constant 3 : index
    %c0_44 = arith.constant 0 : index
    %c0_45 = arith.constant 0 : index
    %50 = vector.load %arg1[%c0_43, %c3, %c0_44, %c0_45] : memref<1x5x5x64xbf16, #tpu.memory_space<vmem>>, vector<1x1x4x64xbf16>
    %51 = vector.shape_cast %50 : vector<1x1x4x64xbf16> to vector<4x64xbf16>
    %c0_46 = arith.constant 0 : index
    %c0_47 = arith.constant 0 : index
    %c0_48 = arith.constant 0 : index
    %52 = vector.load %arg2[%c0_46, %c0_47, %c0_48] : memref<16x64x8xbf16, #tpu.memory_space<vmem>>, vector<1x64x8xbf16>
    %53 = vector.shape_cast %52 : vector<1x64x8xbf16> to vector<64x8xbf16>
    %cst_49 = arith.constant dense<0.000000e+00> : vector<4x8xf32>
    %54 = tpu.matmul %51, %53, %cst_49 {dimension_numbers = #tpu.dot_dimension_numbers<[1], [0], [0], [1], [0, 0, 1, 1], [], []>} : vector<4x64xbf16>, vector<64x8xbf16>, vector<4x8xf32> -> vector<4x8xf32>
    %55 = arith.addf %49, %54 : vector<4x8xf32>
    %56 = vector.broadcast %2 : vector<1x8xf32> to vector<4x8xf32>
    %57 = arith.addf %55, %56 : vector<4x8xf32>
    %cst_50 = arith.constant 0.000000e+00 : f32
    %58 = vector.broadcast %cst_50 : f32 to vector<4x8xf32>
    %59 = arith.maximumf %57, %58 : vector<4x8xf32>
    %60 = arith.truncf %59 : vector<4x8xf32> to vector<4x8xbf16>
    %c3_51 = arith.constant 3 : index
    %c0_52 = arith.constant 0 : index
    %c24_53 = arith.constant 24 : index
    %61 = vector.load %arg7[%c3_51, %c0_52, %c24_53] : memref<5x5x32xbf16, #tpu.memory_space<vmem>>, vector<1x4x8xbf16>
    %62 = vector.shape_cast %61 : vector<1x4x8xbf16> to vector<4x8xbf16>
    %63 = vector.shape_cast %60 : vector<4x8xbf16> to vector<1x4x8xbf16>
    tpu.vector_store %arg7[%c3_51, %c0_52, %c24_53], %63 {strides = array<i32>} : memref<5x5x32xbf16, #tpu.memory_space<vmem>>, vector<1x4x8xbf16>,
    %cst_54 = arith.constant 0.000000e+00 : f32
    %64 = vector.broadcast %cst_54 : f32 to vector<4x8xf32>
    %c0_55 = arith.constant 0 : index
    %c0_56 = arith.constant 0 : index
    %c0_57 = arith.constant 0 : index
    %c0_58 = arith.constant 0 : index
    %65 = vector.load %arg1[%c0_55, %c0_56, %c0_57, %c0_58] : memref<1x5x5x64xbf16, #tpu.memory_space<vmem>>, vector<1x1x4x64xbf16>
    %66 = vector.shape_cast %65 : vector<1x1x4x64xbf16> to vector<4x64xbf16>
    %c4 = arith.constant 4 : index
    %c0_59 = arith.constant 0 : index
    %c0_60 = arith.constant 0 : index
    %67 = vector.load %arg2[%c4, %c0_59, %c0_60] : memref<16x64x8xbf16, #tpu.memory_space<vmem>>, vector<1x64x8xbf16>
    %68 = vector.shape_cast %67 : vector<1x64x8xbf16> to vector<64x8xbf16>
    %cst_61 = arith.constant dense<0.000000e+00> : vector<4x8xf32>
    %69 = tpu.matmul %66, %68, %cst_61 {dimension_numbers = #tpu.dot_dimension_numbers<[1], [0], [0], [1], [0, 0, 1, 1], [], []>} : vector<4x64xbf16>, vector<64x8xbf16>, vector<4x8xf32> -> vector<4x8xf32>
    %70 = arith.addf %64, %69 : vector<4x8xf32>
    %c0_62 = arith.constant 0 : index
    %c0_63 = arith.constant 0 : index
    %c1_64 = arith.constant 1 : index
    %c0_65 = arith.constant 0 : index
    %71 = vector.load %arg1[%c0_62, %c0_63, %c1_64, %c0_65] : memref<1x5x5x64xbf16, #tpu.memory_space<vmem>>, vector<1x1x4x64xbf16>
    %72 = vector.shape_cast %71 : vector<1x1x4x64xbf16> to vector<4x64xbf16>
    %c5 = arith.constant 5 : index
    %c0_66 = arith.constant 0 : index
    %c0_67 = arith.constant 0 : index
    %73 = vector.load %arg2[%c5, %c0_66, %c0_67] : memref<16x64x8xbf16, #tpu.memory_space<vmem>>, vector<1x64x8xbf16>
    %74 = vector.shape_cast %73 : vector<1x64x8xbf16> to vector<64x8xbf16>
    %cst_68 = arith.constant dense<0.000000e+00> : vector<4x8xf32>
    %75 = tpu.matmul %72, %74, %cst_68 {dimension_numbers = #tpu.dot_dimension_numbers<[1], [0], [0], [1], [0, 0, 1, 1], [], []>} : vector<4x64xbf16>, vector<64x8xbf16>, vector<4x8xf32> -> vector<4x8xf32>
    %76 = arith.addf %70, %75 : vector<4x8xf32>
    %77 = vector.broadcast %2 : vector<1x8xf32> to vector<4x8xf32>
    %78 = arith.addf %76, %77 : vector<4x8xf32>
    %cst_69 = arith.constant 0.000000e+00 : f32
    %79 = vector.broadcast %cst_69 : f32 to vector<4x8xf32>
    %80 = arith.maximumf %78, %79 : vector<4x8xf32>
    %81 = arith.truncf %80 : vector<4x8xf32> to vector<4x8xbf16>
    %c0_70 = arith.constant 0 : index
    %c1_71 = arith.constant 1 : index
    %c16 = arith.constant 16 : index
    %82 = vector.load %arg7[%c0_70, %c1_71, %c16] : memref<5x5x32xbf16, #tpu.memory_space<vmem>>, vector<1x4x8xbf16>
    %83 = vector.shape_cast %82 : vector<1x4x8xbf16> to vector<4x8xbf16>
    %84 = vector.shape_cast %81 : vector<4x8xbf16> to vector<1x4x8xbf16>
    tpu.vector_store %arg7[%c0_70, %c1_71, %c16], %84 {strides = array<i32>} : memref<5x5x32xbf16, #tpu.memory_space<vmem>>, vector<1x4x8xbf16>,
    %cst_72 = arith.constant 0.000000e+00 : f32
    %85 = vector.broadcast %cst_72 : f32 to vector<4x8xf32>
    %c0_73 = arith.constant 0 : index
    %c1_74 = arith.constant 1 : index
    %c0_75 = arith.constant 0 : index
    %c0_76 = arith.constant 0 : index
    %86 = vector.load %arg1[%c0_73, %c1_74, %c0_75, %c0_76] : memref<1x5x5x64xbf16, #tpu.memory_space<vmem>>, vector<1x1x4x64xbf16>
    %87 = vector.shape_cast %86 : vector<1x1x4x64xbf16> to vector<4x64xbf16>
    %c4_77 = arith.constant 4 : index
    %c0_78 = arith.constant 0 : index
    %c0_79 = arith.constant 0 : index
    %88 = vector.load %arg2[%c4_77, %c0_78, %c0_79] : memref<16x64x8xbf16, #tpu.memory_space<vmem>>, vector<1x64x8xbf16>
    %89 = vector.shape_cast %88 : vector<1x64x8xbf16> to vector<64x8xbf16>
    %cst_80 = arith.constant dense<0.000000e+00> : vector<4x8xf32>
    %90 = tpu.matmul %87, %89, %cst_80 {dimension_numbers = #tpu.dot_dimension_numbers<[1], [0], [0], [1], [0, 0, 1, 1], [], []>} : vector<4x64xbf16>, vector<64x8xbf16>, vector<4x8xf32> -> vector<4x8xf32>
    %91 = arith.addf %85, %90 : vector<4x8xf32>
    %c0_81 = arith.constant 0 : index
    %c1_82 = arith.constant 1 : index
    %c1_83 = arith.constant 1 : index
    %c0_84 = arith.constant 0 : index
    %92 = vector.load %arg1[%c0_81, %c1_82, %c1_83, %c0_84] : memref<1x5x5x64xbf16, #tpu.memory_space<vmem>>, vector<1x1x4x64xbf16>
    %93 = vector.shape_cast %92 : vector<1x1x4x64xbf16> to vector<4x64xbf16>
    %c5_85 = arith.constant 5 : index
    %c0_86 = arith.constant 0 : index
    %c0_87 = arith.constant 0 : index
    %94 = vector.load %arg2[%c5_85, %c0_86, %c0_87] : memref<16x64x8xbf16, #tpu.memory_space<vmem>>, vector<1x64x8xbf16>
    %95 = vector.shape_cast %94 : vector<1x64x8xbf16> to vector<64x8xbf16>
    %cst_88 = arith.constant dense<0.000000e+00> : vector<4x8xf32>
    %96 = tpu.matmul %93, %95, %cst_88 {dimension_numbers = #tpu.dot_dimension_numbers<[1], [0], [0], [1], [0, 0, 1, 1], [], []>} : vector<4x64xbf16>, vector<64x8xbf16>, vector<4x8xf32> -> vector<4x8xf32>
    %97 = arith.addf %91, %96 : vector<4x8xf32>
    %98 = vector.broadcast %2 : vector<1x8xf32> to vector<4x8xf32>
    %99 = arith.addf %97, %98 : vector<4x8xf32>
    %cst_89 = arith.constant 0.000000e+00 : f32
    %100 = vector.broadcast %cst_89 : f32 to vector<4x8xf32>
    %101 = arith.maximumf %99, %100 : vector<4x8xf32>
    %102 = arith.truncf %101 : vector<4x8xf32> to vector<4x8xbf16>
    %c1_90 = arith.constant 1 : index
    %c1_91 = arith.constant 1 : index
    %c16_92 = arith.constant 16 : index
    %103 = vector.load %arg7[%c1_90, %c1_91, %c16_92] : memref<5x5x32xbf16, #tpu.memory_space<vmem>>, vector<1x4x8xbf16>
    %104 = vector.shape_cast %103 : vector<1x4x8xbf16> to vector<4x8xbf16>
    %105 = vector.shape_cast %102 : vector<4x8xbf16> to vector<1x4x8xbf16>
    tpu.vector_store %arg7[%c1_90, %c1_91, %c16_92], %105 {strides = array<i32>} : memref<5x5x32xbf16, #tpu.memory_space<vmem>>, vector<1x4x8xbf16>,
    %cst_93 = arith.constant 0.000000e+00 : f32
    %106 = vector.broadcast %cst_93 : f32 to vector<4x8xf32>
    %c0_94 = arith.constant 0 : index
    %c2_95 = arith.constant 2 : index
    %c0_96 = arith.constant 0 : index
    %c0_97 = arith.constant 0 : index
    %107 = vector.load %arg1[%c0_94, %c2_95, %c0_96, %c0_97] : memref<1x5x5x64xbf16, #tpu.memory_space<vmem>>, vector<1x1x4x64xbf16>
    %108 = vector.shape_cast %107 : vector<1x1x4x64xbf16> to vector<4x64xbf16>
    %c4_98 = arith.constant 4 : index
    %c0_99 = arith.constant 0 : index
    %c0_100 = arith.constant 0 : index
    %109 = vector.load %arg2[%c4_98, %c0_99, %c0_100] : memref<16x64x8xbf16, #tpu.memory_space<vmem>>, vector<1x64x8xbf16>
    %110 = vector.shape_cast %109 : vector<1x64x8xbf16> to vector<64x8xbf16>
    %cst_101 = arith.constant dense<0.000000e+00> : vector<4x8xf32>
    %111 = tpu.matmul %108, %110, %cst_101 {dimension_numbers = #tpu.dot_dimension_numbers<[1], [0], [0], [1], [0, 0, 1, 1], [], []>} : vector<4x64xbf16>, vector<64x8xbf16>, vector<4x8xf32> -> vector<4x8xf32>
    %112 = arith.addf %106, %111 : vector<4x8xf32>
    %c0_102 = arith.constant 0 : index
    %c2_103 = arith.constant 2 : index
    %c1_104 = arith.constant 1 : index
    %c0_105 = arith.constant 0 : index
    %113 = vector.load %arg1[%c0_102, %c2_103, %c1_104, %c0_105] : memref<1x5x5x64xbf16, #tpu.memory_space<vmem>>, vector<1x1x4x64xbf16>
    %114 = vector.shape_cast %113 : vector<1x1x4x64xbf16> to vector<4x64xbf16>
    %c5_106 = arith.constant 5 : index
    %c0_107 = arith.constant 0 : index
    %c0_108 = arith.constant 0 : index
    %115 = vector.load %arg2[%c5_106, %c0_107, %c0_108] : memref<16x64x8xbf16, #tpu.memory_space<vmem>>, vector<1x64x8xbf16>
    %116 = vector.shape_cast %115 : vector<1x64x8xbf16> to vector<64x8xbf16>
    %cst_109 = arith.constant dense<0.000000e+00> : vector<4x8xf32>
    %117 = tpu.matmul %114, %116, %cst_109 {dimension_numbers = #tpu.dot_dimension_numbers<[1], [0], [0], [1], [0, 0, 1, 1], [], []>} : vector<4x64xbf16>, vector<64x8xbf16>, vector<4x8xf32> -> vector<4x8xf32>
    %118 = arith.addf %112, %117 : vector<4x8xf32>
    %119 = vector.broadcast %2 : vector<1x8xf32> to vector<4x8xf32>
    %120 = arith.addf %118, %119 : vector<4x8xf32>
    %cst_110 = arith.constant 0.000000e+00 : f32
    %121 = vector.broadcast %cst_110 : f32 to vector<4x8xf32>
    %122 = arith.maximumf %120, %121 : vector<4x8xf32>
    %123 = arith.truncf %122 : vector<4x8xf32> to vector<4x8xbf16>
    %c2_111 = arith.constant 2 : index
    %c1_112 = arith.constant 1 : index
    %c16_113 = arith.constant 16 : index
    %124 = vector.load %arg7[%c2_111, %c1_112, %c16_113] : memref<5x5x32xbf16, #tpu.memory_space<vmem>>, vector<1x4x8xbf16>
    %125 = vector.shape_cast %124 : vector<1x4x8xbf16> to vector<4x8xbf16>
    %126 = vector.shape_cast %123 : vector<4x8xbf16> to vector<1x4x8xbf16>
    tpu.vector_store %arg7[%c2_111, %c1_112, %c16_113], %126 {strides = array<i32>} : memref<5x5x32xbf16, #tpu.memory_space<vmem>>, vector<1x4x8xbf16>,
    %cst_114 = arith.constant 0.000000e+00 : f32
    %127 = vector.broadcast %cst_114 : f32 to vector<4x8xf32>
    %c0_115 = arith.constant 0 : index
    %c3_116 = arith.constant 3 : index
    %c0_117 = arith.constant 0 : index
    %c0_118 = arith.constant 0 : index
    %128 = vector.load %arg1[%c0_115, %c3_116, %c0_117, %c0_118] : memref<1x5x5x64xbf16, #tpu.memory_space<vmem>>, vector<1x1x4x64xbf16>
    %129 = vector.shape_cast %128 : vector<1x1x4x64xbf16> to vector<4x64xbf16>
    %c4_119 = arith.constant 4 : index
    %c0_120 = arith.constant 0 : index
    %c0_121 = arith.constant 0 : index
    %130 = vector.load %arg2[%c4_119, %c0_120, %c0_121] : memref<16x64x8xbf16, #tpu.memory_space<vmem>>, vector<1x64x8xbf16>
    %131 = vector.shape_cast %130 : vector<1x64x8xbf16> to vector<64x8xbf16>
    %cst_122 = arith.constant dense<0.000000e+00> : vector<4x8xf32>
    %132 = tpu.matmul %129, %131, %cst_122 {dimension_numbers = #tpu.dot_dimension_numbers<[1], [0], [0], [1], [0, 0, 1, 1], [], []>} : vector<4x64xbf16>, vector<64x8xbf16>, vector<4x8xf32> -> vector<4x8xf32>
    %133 = arith.addf %127, %132 : vector<4x8xf32>
    %c0_123 = arith.constant 0 : index
    %c3_124 = arith.constant 3 : index
    %c1_125 = arith.constant 1 : index
    %c0_126 = arith.constant 0 : index
    %134 = vector.load %arg1[%c0_123, %c3_124, %c1_125, %c0_126] : memref<1x5x5x64xbf16, #tpu.memory_space<vmem>>, vector<1x1x4x64xbf16>
    %135 = vector.shape_cast %134 : vector<1x1x4x64xbf16> to vector<4x64xbf16>
    %c5_127 = arith.constant 5 : index
    %c0_128 = arith.constant 0 : index
    %c0_129 = arith.constant 0 : index
    %136 = vector.load %arg2[%c5_127, %c0_128, %c0_129] : memref<16x64x8xbf16, #tpu.memory_space<vmem>>, vector<1x64x8xbf16>
    %137 = vector.shape_cast %136 : vector<1x64x8xbf16> to vector<64x8xbf16>
    %cst_130 = arith.constant dense<0.000000e+00> : vector<4x8xf32>
    %138 = tpu.matmul %135, %137, %cst_130 {dimension_numbers = #tpu.dot_dimension_numbers<[1], [0], [0], [1], [0, 0, 1, 1], [], []>} : vector<4x64xbf16>, vector<64x8xbf16>, vector<4x8xf32> -> vector<4x8xf32>
    %139 = arith.addf %133, %138 : vector<4x8xf32>
    %140 = vector.broadcast %2 : vector<1x8xf32> to vector<4x8xf32>
    %141 = arith.addf %139, %140 : vector<4x8xf32>
    %cst_131 = arith.constant 0.000000e+00 : f32
    %142 = vector.broadcast %cst_131 : f32 to vector<4x8xf32>
    %143 = arith.maximumf %141, %142 : vector<4x8xf32>
    %144 = arith.truncf %143 : vector<4x8xf32> to vector<4x8xbf16>
    %c3_132 = arith.constant 3 : index
    %c1_133 = arith.constant 1 : index
    %c16_134 = arith.constant 16 : index
    %145 = vector.load %arg7[%c3_132, %c1_133, %c16_134] : memref<5x5x32xbf16, #tpu.memory_space<vmem>>, vector<1x4x8xbf16>
    %146 = vector.shape_cast %145 : vector<1x4x8xbf16> to vector<4x8xbf16>
    %147 = vector.shape_cast %144 : vector<4x8xbf16> to vector<1x4x8xbf16>
    tpu.vector_store %arg7[%c3_132, %c1_133, %c16_134], %147 {strides = array<i32>} : memref<5x5x32xbf16, #tpu.memory_space<vmem>>, vector<1x4x8xbf16>,
    %cst_135 = arith.constant 0.000000e+00 : f32
    %148 = vector.broadcast %cst_135 : f32 to vector<4x8xf32>
    %c0_136 = arith.constant 0 : index
    %c0_137 = arith.constant 0 : index
    %c0_138 = arith.constant 0 : index
    %c0_139 = arith.constant 0 : index
    %149 = vector.load %arg1[%c0_136, %c0_137, %c0_138, %c0_139] : memref<1x5x5x64xbf16, #tpu.memory_space<vmem>>, vector<1x1x4x64xbf16>
    %150 = vector.shape_cast %149 : vector<1x1x4x64xbf16> to vector<4x64xbf16>
    %c8 = arith.constant 8 : index
    %c0_140 = arith.constant 0 : index
    %c0_141 = arith.constant 0 : index
    %151 = vector.load %arg2[%c8, %c0_140, %c0_141] : memref<16x64x8xbf16, #tpu.memory_space<vmem>>, vector<1x64x8xbf16>
    %152 = vector.shape_cast %151 : vector<1x64x8xbf16> to vector<64x8xbf16>
    %cst_142 = arith.constant dense<0.000000e+00> : vector<4x8xf32>
    %153 = tpu.matmul %150, %152, %cst_142 {dimension_numbers = #tpu.dot_dimension_numbers<[1], [0], [0], [1], [0, 0, 1, 1], [], []>} : vector<4x64xbf16>, vector<64x8xbf16>, vector<4x8xf32> -> vector<4x8xf32>
    %154 = arith.addf %148, %153 : vector<4x8xf32>
    %c0_143 = arith.constant 0 : index
    %c1_144 = arith.constant 1 : index
    %c0_145 = arith.constant 0 : index
    %c0_146 = arith.constant 0 : index
    %155 = vector.load %arg1[%c0_143, %c1_144, %c0_145, %c0_146] : memref<1x5x5x64xbf16, #tpu.memory_space<vmem>>, vector<1x1x4x64xbf16>
    %156 = vector.shape_cast %155 : vector<1x1x4x64xbf16> to vector<4x64xbf16>
    %c10 = arith.constant 10 : index
    %c0_147 = arith.constant 0 : index
    %c0_148 = arith.constant 0 : index
    %157 = vector.load %arg2[%c10, %c0_147, %c0_148] : memref<16x64x8xbf16, #tpu.memory_space<vmem>>, vector<1x64x8xbf16>
    %158 = vector.shape_cast %157 : vector<1x64x8xbf16> to vector<64x8xbf16>
    %cst_149 = arith.constant dense<0.000000e+00> : vector<4x8xf32>
    %159 = tpu.matmul %156, %158, %cst_149 {dimension_numbers = #tpu.dot_dimension_numbers<[1], [0], [0], [1], [0, 0, 1, 1], [], []>} : vector<4x64xbf16>, vector<64x8xbf16>, vector<4x8xf32> -> vector<4x8xf32>
    %160 = arith.addf %154, %159 : vector<4x8xf32>
    %161 = vector.broadcast %2 : vector<1x8xf32> to vector<4x8xf32>
    %162 = arith.addf %160, %161 : vector<4x8xf32>
    %cst_150 = arith.constant 0.000000e+00 : f32
    %163 = vector.broadcast %cst_150 : f32 to vector<4x8xf32>
    %164 = arith.maximumf %162, %163 : vector<4x8xf32>
    %165 = arith.truncf %164 : vector<4x8xf32> to vector<4x8xbf16>
    %c1_151 = arith.constant 1 : index
    %c0_152 = arith.constant 0 : index
    %c8_153 = arith.constant 8 : index
    %166 = vector.load %arg7[%c1_151, %c0_152, %c8_153] : memref<5x5x32xbf16, #tpu.memory_space<vmem>>, vector<1x4x8xbf16>
    %167 = vector.shape_cast %166 : vector<1x4x8xbf16> to vector<4x8xbf16>
    %168 = vector.shape_cast %165 : vector<4x8xbf16> to vector<1x4x8xbf16>
    tpu.vector_store %arg7[%c1_151, %c0_152, %c8_153], %168 {strides = array<i32>} : memref<5x5x32xbf16, #tpu.memory_space<vmem>>, vector<1x4x8xbf16>,
    %cst_154 = arith.constant 0.000000e+00 : f32
    %169 = vector.broadcast %cst_154 : f32 to vector<4x8xf32>
    %c0_155 = arith.constant 0 : index
    %c1_156 = arith.constant 1 : index
    %c0_157 = arith.constant 0 : index
    %c0_158 = arith.constant 0 : index
    %170 = vector.load %arg1[%c0_155, %c1_156, %c0_157, %c0_158] : memref<1x5x5x64xbf16, #tpu.memory_space<vmem>>, vector<1x1x4x64xbf16>
    %171 = vector.shape_cast %170 : vector<1x1x4x64xbf16> to vector<4x64xbf16>
    %c8_159 = arith.constant 8 : index
    %c0_160 = arith.constant 0 : index
    %c0_161 = arith.constant 0 : index
    %172 = vector.load %arg2[%c8_159, %c0_160, %c0_161] : memref<16x64x8xbf16, #tpu.memory_space<vmem>>, vector<1x64x8xbf16>
    %173 = vector.shape_cast %172 : vector<1x64x8xbf16> to vector<64x8xbf16>
    %cst_162 = arith.constant dense<0.000000e+00> : vector<4x8xf32>
    %174 = tpu.matmul %171, %173, %cst_162 {dimension_numbers = #tpu.dot_dimension_numbers<[1], [0], [0], [1], [0, 0, 1, 1], [], []>} : vector<4x64xbf16>, vector<64x8xbf16>, vector<4x8xf32> -> vector<4x8xf32>
    %175 = arith.addf %169, %174 : vector<4x8xf32>
    %c0_163 = arith.constant 0 : index
    %c2_164 = arith.constant 2 : index
    %c0_165 = arith.constant 0 : index
    %c0_166 = arith.constant 0 : index
    %176 = vector.load %arg1[%c0_163, %c2_164, %c0_165, %c0_166] : memref<1x5x5x64xbf16, #tpu.memory_space<vmem>>, vector<1x1x4x64xbf16>
    %177 = vector.shape_cast %176 : vector<1x1x4x64xbf16> to vector<4x64xbf16>
    %c10_167 = arith.constant 10 : index
    %c0_168 = arith.constant 0 : index
    %c0_169 = arith.constant 0 : index
    %178 = vector.load %arg2[%c10_167, %c0_168, %c0_169] : memref<16x64x8xbf16, #tpu.memory_space<vmem>>, vector<1x64x8xbf16>
    %179 = vector.shape_cast %178 : vector<1x64x8xbf16> to vector<64x8xbf16>
    %cst_170 = arith.constant dense<0.000000e+00> : vector<4x8xf32>
    %180 = tpu.matmul %177, %179, %cst_170 {dimension_numbers = #tpu.dot_dimension_numbers<[1], [0], [0], [1], [0, 0, 1, 1], [], []>} : vector<4x64xbf16>, vector<64x8xbf16>, vector<4x8xf32> -> vector<4x8xf32>
    %181 = arith.addf %175, %180 : vector<4x8xf32>
    %182 = vector.broadcast %2 : vector<1x8xf32> to vector<4x8xf32>
    %183 = arith.addf %181, %182 : vector<4x8xf32>
    %cst_171 = arith.constant 0.000000e+00 : f32
    %184 = vector.broadcast %cst_171 : f32 to vector<4x8xf32>
    %185 = arith.maximumf %183, %184 : vector<4x8xf32>
    %186 = arith.truncf %185 : vector<4x8xf32> to vector<4x8xbf16>
    %c2_172 = arith.constant 2 : index
    %c0_173 = arith.constant 0 : index
    %c8_174 = arith.constant 8 : index
    %187 = vector.load %arg7[%c2_172, %c0_173, %c8_174] : memref<5x5x32xbf16, #tpu.memory_space<vmem>>, vector<1x4x8xbf16>
    %188 = vector.shape_cast %187 : vector<1x4x8xbf16> to vector<4x8xbf16>
    %189 = vector.shape_cast %186 : vector<4x8xbf16> to vector<1x4x8xbf16>
    tpu.vector_store %arg7[%c2_172, %c0_173, %c8_174], %189 {strides = array<i32>} : memref<5x5x32xbf16, #tpu.memory_space<vmem>>, vector<1x4x8xbf16>,
    %cst_175 = arith.constant 0.000000e+00 : f32
    %190 = vector.broadcast %cst_175 : f32 to vector<4x8xf32>
    %c0_176 = arith.constant 0 : index
    %c2_177 = arith.constant 2 : index
    %c0_178 = arith.constant 0 : index
    %c0_179 = arith.constant 0 : index
    %191 = vector.load %arg1[%c0_176, %c2_177, %c0_178, %c0_179] : memref<1x5x5x64xbf16, #tpu.memory_space<vmem>>, vector<1x1x4x64xbf16>
    %192 = vector.shape_cast %191 : vector<1x1x4x64xbf16> to vector<4x64xbf16>
    %c8_180 = arith.constant 8 : index
    %c0_181 = arith.constant 0 : index
    %c0_182 = arith.constant 0 : index
    %193 = vector.load %arg2[%c8_180, %c0_181, %c0_182] : memref<16x64x8xbf16, #tpu.memory_space<vmem>>, vector<1x64x8xbf16>
    %194 = vector.shape_cast %193 : vector<1x64x8xbf16> to vector<64x8xbf16>
    %cst_183 = arith.constant dense<0.000000e+00> : vector<4x8xf32>
    %195 = tpu.matmul %192, %194, %cst_183 {dimension_numbers = #tpu.dot_dimension_numbers<[1], [0], [0], [1], [0, 0, 1, 1], [], []>} : vector<4x64xbf16>, vector<64x8xbf16>, vector<4x8xf32> -> vector<4x8xf32>
    %196 = arith.addf %190, %195 : vector<4x8xf32>
    %c0_184 = arith.constant 0 : index
    %c3_185 = arith.constant 3 : index
    %c0_186 = arith.constant 0 : index
    %c0_187 = arith.constant 0 : index
    %197 = vector.load %arg1[%c0_184, %c3_185, %c0_186, %c0_187] : memref<1x5x5x64xbf16, #tpu.memory_space<vmem>>, vector<1x1x4x64xbf16>
    %198 = vector.shape_cast %197 : vector<1x1x4x64xbf16> to vector<4x64xbf16>
    %c10_188 = arith.constant 10 : index
    %c0_189 = arith.constant 0 : index
    %c0_190 = arith.constant 0 : index
    %199 = vector.load %arg2[%c10_188, %c0_189, %c0_190] : memref<16x64x8xbf16, #tpu.memory_space<vmem>>, vector<1x64x8xbf16>
    %200 = vector.shape_cast %199 : vector<1x64x8xbf16> to vector<64x8xbf16>
    %cst_191 = arith.constant dense<0.000000e+00> : vector<4x8xf32>
    %201 = tpu.matmul %198, %200, %cst_191 {dimension_numbers = #tpu.dot_dimension_numbers<[1], [0], [0], [1], [0, 0, 1, 1], [], []>} : vector<4x64xbf16>, vector<64x8xbf16>, vector<4x8xf32> -> vector<4x8xf32>
    %202 = arith.addf %196, %201 : vector<4x8xf32>
    %203 = vector.broadcast %2 : vector<1x8xf32> to vector<4x8xf32>
    %204 = arith.addf %202, %203 : vector<4x8xf32>
    %cst_192 = arith.constant 0.000000e+00 : f32
    %205 = vector.broadcast %cst_192 : f32 to vector<4x8xf32>
    %206 = arith.maximumf %204, %205 : vector<4x8xf32>
    %207 = arith.truncf %206 : vector<4x8xf32> to vector<4x8xbf16>
    %c3_193 = arith.constant 3 : index
    %c0_194 = arith.constant 0 : index
    %c8_195 = arith.constant 8 : index
    %208 = vector.load %arg7[%c3_193, %c0_194, %c8_195] : memref<5x5x32xbf16, #tpu.memory_space<vmem>>, vector<1x4x8xbf16>
    %209 = vector.shape_cast %208 : vector<1x4x8xbf16> to vector<4x8xbf16>
    %210 = vector.shape_cast %207 : vector<4x8xbf16> to vector<1x4x8xbf16>
    tpu.vector_store %arg7[%c3_193, %c0_194, %c8_195], %210 {strides = array<i32>} : memref<5x5x32xbf16, #tpu.memory_space<vmem>>, vector<1x4x8xbf16>,
    %cst_196 = arith.constant 0.000000e+00 : f32
    %211 = vector.broadcast %cst_196 : f32 to vector<4x8xf32>
    %c0_197 = arith.constant 0 : index
    %c3_198 = arith.constant 3 : index
    %c0_199 = arith.constant 0 : index
    %c0_200 = arith.constant 0 : index
    %212 = vector.load %arg1[%c0_197, %c3_198, %c0_199, %c0_200] : memref<1x5x5x64xbf16, #tpu.memory_space<vmem>>, vector<1x1x4x64xbf16>
    %213 = vector.shape_cast %212 : vector<1x1x4x64xbf16> to vector<4x64xbf16>
    %c8_201 = arith.constant 8 : index
    %c0_202 = arith.constant 0 : index
    %c0_203 = arith.constant 0 : index
    %214 = vector.load %arg2[%c8_201, %c0_202, %c0_203] : memref<16x64x8xbf16, #tpu.memory_space<vmem>>, vector<1x64x8xbf16>
    %215 = vector.shape_cast %214 : vector<1x64x8xbf16> to vector<64x8xbf16>
    %cst_204 = arith.constant dense<0.000000e+00> : vector<4x8xf32>
    %216 = tpu.matmul %213, %215, %cst_204 {dimension_numbers = #tpu.dot_dimension_numbers<[1], [0], [0], [1], [0, 0, 1, 1], [], []>} : vector<4x64xbf16>, vector<64x8xbf16>, vector<4x8xf32> -> vector<4x8xf32>
    %217 = arith.addf %211, %216 : vector<4x8xf32>
    %c0_205 = arith.constant 0 : index
    %c4_206 = arith.constant 4 : index
    %c0_207 = arith.constant 0 : index
    %c0_208 = arith.constant 0 : index
    %218 = vector.load %arg1[%c0_205, %c4_206, %c0_207, %c0_208] : memref<1x5x5x64xbf16, #tpu.memory_space<vmem>>, vector<1x1x4x64xbf16>
    %219 = vector.shape_cast %218 : vector<1x1x4x64xbf16> to vector<4x64xbf16>
    %c10_209 = arith.constant 10 : index
    %c0_210 = arith.constant 0 : index
    %c0_211 = arith.constant 0 : index
    %220 = vector.load %arg2[%c10_209, %c0_210, %c0_211] : memref<16x64x8xbf16, #tpu.memory_space<vmem>>, vector<1x64x8xbf16>
    %221 = vector.shape_cast %220 : vector<1x64x8xbf16> to vector<64x8xbf16>
    %cst_212 = arith.constant dense<0.000000e+00> : vector<4x8xf32>
    %222 = tpu.matmul %219, %221, %cst_212 {dimension_numbers = #tpu.dot_dimension_numbers<[1], [0], [0], [1], [0, 0, 1, 1], [], []>} : vector<4x64xbf16>, vector<64x8xbf16>, vector<4x8xf32> -> vector<4x8xf32>
    %223 = arith.addf %217, %222 : vector<4x8xf32>
    %224 = vector.broadcast %2 : vector<1x8xf32> to vector<4x8xf32>
    %225 = arith.addf %223, %224 : vector<4x8xf32>
    %cst_213 = arith.constant 0.000000e+00 : f32
    %226 = vector.broadcast %cst_213 : f32 to vector<4x8xf32>
    %227 = arith.maximumf %225, %226 : vector<4x8xf32>
    %228 = arith.truncf %227 : vector<4x8xf32> to vector<4x8xbf16>
    %c4_214 = arith.constant 4 : index
    %c0_215 = arith.constant 0 : index
    %c8_216 = arith.constant 8 : index
    %229 = vector.load %arg7[%c4_214, %c0_215, %c8_216] : memref<5x5x32xbf16, #tpu.memory_space<vmem>>, vector<1x4x8xbf16>
    %230 = vector.shape_cast %229 : vector<1x4x8xbf16> to vector<4x8xbf16>
    %231 = vector.shape_cast %228 : vector<4x8xbf16> to vector<1x4x8xbf16>
    tpu.vector_store %arg7[%c4_214, %c0_215, %c8_216], %231 {strides = array<i32>} : memref<5x5x32xbf16, #tpu.memory_space<vmem>>, vector<1x4x8xbf16>,
    %cst_217 = arith.constant 0.000000e+00 : f32
    %232 = vector.broadcast %cst_217 : f32 to vector<4x8xf32>
    %c0_218 = arith.constant 0 : index
    %c0_219 = arith.constant 0 : index
    %c0_220 = arith.constant 0 : index
    %c0_221 = arith.constant 0 : index
    %233 = vector.load %arg1[%c0_218, %c0_219, %c0_220, %c0_221] : memref<1x5x5x64xbf16, #tpu.memory_space<vmem>>, vector<1x1x4x64xbf16>
    %234 = vector.shape_cast %233 : vector<1x1x4x64xbf16> to vector<4x64xbf16>
    %c12 = arith.constant 12 : index
    %c0_222 = arith.constant 0 : index
    %c0_223 = arith.constant 0 : index
    %235 = vector.load %arg2[%c12, %c0_222, %c0_223] : memref<16x64x8xbf16, #tpu.memory_space<vmem>>, vector<1x64x8xbf16>
    %236 = vector.shape_cast %235 : vector<1x64x8xbf16> to vector<64x8xbf16>
    %cst_224 = arith.constant dense<0.000000e+00> : vector<4x8xf32>
    %237 = tpu.matmul %234, %236, %cst_224 {dimension_numbers = #tpu.dot_dimension_numbers<[1], [0], [0], [1], [0, 0, 1, 1], [], []>} : vector<4x64xbf16>, vector<64x8xbf16>, vector<4x8xf32> -> vector<4x8xf32>
    %238 = arith.addf %232, %237 : vector<4x8xf32>
    %c0_225 = arith.constant 0 : index
    %c0_226 = arith.constant 0 : index
    %c1_227 = arith.constant 1 : index
    %c0_228 = arith.constant 0 : index
    %239 = vector.load %arg1[%c0_225, %c0_226, %c1_227, %c0_228] : memref<1x5x5x64xbf16, #tpu.memory_space<vmem>>, vector<1x1x4x64xbf16>
    %240 = vector.shape_cast %239 : vector<1x1x4x64xbf16> to vector<4x64xbf16>
    %c13 = arith.constant 13 : index
    %c0_229 = arith.constant 0 : index
    %c0_230 = arith.constant 0 : index
    %241 = vector.load %arg2[%c13, %c0_229, %c0_230] : memref<16x64x8xbf16, #tpu.memory_space<vmem>>, vector<1x64x8xbf16>
    %242 = vector.shape_cast %241 : vector<1x64x8xbf16> to vector<64x8xbf16>
    %cst_231 = arith.constant dense<0.000000e+00> : vector<4x8xf32>
    %243 = tpu.matmul %240, %242, %cst_231 {dimension_numbers = #tpu.dot_dimension_numbers<[1], [0], [0], [1], [0, 0, 1, 1], [], []>} : vector<4x64xbf16>, vector<64x8xbf16>, vector<4x8xf32> -> vector<4x8xf32>
    %244 = arith.addf %238, %243 : vector<4x8xf32>
    %c0_232 = arith.constant 0 : index
    %c1_233 = arith.constant 1 : index
    %c0_234 = arith.constant 0 : index
    %c0_235 = arith.constant 0 : index
    %245 = vector.load %arg1[%c0_232, %c1_233, %c0_234, %c0_235] : memref<1x5x5x64xbf16, #tpu.memory_space<vmem>>, vector<1x1x4x64xbf16>
    %246 = vector.shape_cast %245 : vector<1x1x4x64xbf16> to vector<4x64xbf16>
    %c14 = arith.constant 14 : index
    %c0_236 = arith.constant 0 : index
    %c0_237 = arith.constant 0 : index
    %247 = vector.load %arg2[%c14, %c0_236, %c0_237] : memref<16x64x8xbf16, #tpu.memory_space<vmem>>, vector<1x64x8xbf16>
    %248 = vector.shape_cast %247 : vector<1x64x8xbf16> to vector<64x8xbf16>
    %cst_238 = arith.constant dense<0.000000e+00> : vector<4x8xf32>
    %249 = tpu.matmul %246, %248, %cst_238 {dimension_numbers = #tpu.dot_dimension_numbers<[1], [0], [0], [1], [0, 0, 1, 1], [], []>} : vector<4x64xbf16>, vector<64x8xbf16>, vector<4x8xf32> -> vector<4x8xf32>
    %250 = arith.addf %244, %249 : vector<4x8xf32>
    %c0_239 = arith.constant 0 : index
    %c1_240 = arith.constant 1 : index
    %c1_241 = arith.constant 1 : index
    %c0_242 = arith.constant 0 : index
    %251 = vector.load %arg1[%c0_239, %c1_240, %c1_241, %c0_242] : memref<1x5x5x64xbf16, #tpu.memory_space<vmem>>, vector<1x1x4x64xbf16>
    %252 = vector.shape_cast %251 : vector<1x1x4x64xbf16> to vector<4x64xbf16>
    %c15 = arith.constant 15 : index
    %c0_243 = arith.constant 0 : index
    %c0_244 = arith.constant 0 : index
    %253 = vector.load %arg2[%c15, %c0_243, %c0_244] : memref<16x64x8xbf16, #tpu.memory_space<vmem>>, vector<1x64x8xbf16>
    %254 = vector.shape_cast %253 : vector<1x64x8xbf16> to vector<64x8xbf16>
    %cst_245 = arith.constant dense<0.000000e+00> : vector<4x8xf32>
    %255 = tpu.matmul %252, %254, %cst_245 {dimension_numbers = #tpu.dot_dimension_numbers<[1], [0], [0], [1], [0, 0, 1, 1], [], []>} : vector<4x64xbf16>, vector<64x8xbf16>, vector<4x8xf32> -> vector<4x8xf32>
    %256 = arith.addf %250, %255 : vector<4x8xf32>
    %257 = vector.broadcast %2 : vector<1x8xf32> to vector<4x8xf32>
    %258 = arith.addf %256, %257 : vector<4x8xf32>
    %cst_246 = arith.constant 0.000000e+00 : f32
    %259 = vector.broadcast %cst_246 : f32 to vector<4x8xf32>
    %260 = arith.maximumf %258, %259 : vector<4x8xf32>
    %261 = arith.truncf %260 : vector<4x8xf32> to vector<4x8xbf16>
    %c1_247 = arith.constant 1 : index
    %c1_248 = arith.constant 1 : index
    %c0_249 = arith.constant 0 : index
    %262 = vector.load %arg7[%c1_247, %c1_248, %c0_249] : memref<5x5x32xbf16, #tpu.memory_space<vmem>>, vector<1x4x8xbf16>
    %263 = vector.shape_cast %262 : vector<1x4x8xbf16> to vector<4x8xbf16>
    %264 = vector.shape_cast %261 : vector<4x8xbf16> to vector<1x4x8xbf16>
    tpu.vector_store %arg7[%c1_247, %c1_248, %c0_249], %264 {strides = array<i32>} : memref<5x5x32xbf16, #tpu.memory_space<vmem>>, vector<1x4x8xbf16>,
    %cst_250 = arith.constant 0.000000e+00 : f32
    %265 = vector.broadcast %cst_250 : f32 to vector<4x8xf32>
    %c0_251 = arith.constant 0 : index
    %c1_252 = arith.constant 1 : index
    %c0_253 = arith.constant 0 : index
    %c0_254 = arith.constant 0 : index
    %266 = vector.load %arg1[%c0_251, %c1_252, %c0_253, %c0_254] : memref<1x5x5x64xbf16, #tpu.memory_space<vmem>>, vector<1x1x4x64xbf16>
    %267 = vector.shape_cast %266 : vector<1x1x4x64xbf16> to vector<4x64xbf16>
    %c12_255 = arith.constant 12 : index
    %c0_256 = arith.constant 0 : index
    %c0_257 = arith.constant 0 : index
    %268 = vector.load %arg2[%c12_255, %c0_256, %c0_257] : memref<16x64x8xbf16, #tpu.memory_space<vmem>>, vector<1x64x8xbf16>
    %269 = vector.shape_cast %268 : vector<1x64x8xbf16> to vector<64x8xbf16>
    %cst_258 = arith.constant dense<0.000000e+00> : vector<4x8xf32>
    %270 = tpu.matmul %267, %269, %cst_258 {dimension_numbers = #tpu.dot_dimension_numbers<[1], [0], [0], [1], [0, 0, 1, 1], [], []>} : vector<4x64xbf16>, vector<64x8xbf16>, vector<4x8xf32> -> vector<4x8xf32>
    %271 = arith.addf %265, %270 : vector<4x8xf32>
    %c0_259 = arith.constant 0 : index
    %c1_260 = arith.constant 1 : index
    %c1_261 = arith.constant 1 : index
    %c0_262 = arith.constant 0 : index
    %272 = vector.load %arg1[%c0_259, %c1_260, %c1_261, %c0_262] : memref<1x5x5x64xbf16, #tpu.memory_space<vmem>>, vector<1x1x4x64xbf16>
    %273 = vector.shape_cast %272 : vector<1x1x4x64xbf16> to vector<4x64xbf16>
    %c13_263 = arith.constant 13 : index
    %c0_264 = arith.constant 0 : index
    %c0_265 = arith.constant 0 : index
    %274 = vector.load %arg2[%c13_263, %c0_264, %c0_265] : memref<16x64x8xbf16, #tpu.memory_space<vmem>>, vector<1x64x8xbf16>
    %275 = vector.shape_cast %274 : vector<1x64x8xbf16> to vector<64x8xbf16>
    %cst_266 = arith.constant dense<0.000000e+00> : vector<4x8xf32>
    %276 = tpu.matmul %273, %275, %cst_266 {dimension_numbers = #tpu.dot_dimension_numbers<[1], [0], [0], [1], [0, 0, 1, 1], [], []>} : vector<4x64xbf16>, vector<64x8xbf16>, vector<4x8xf32> -> vector<4x8xf32>
    %277 = arith.addf %271, %276 : vector<4x8xf32>
    %c0_267 = arith.constant 0 : index
    %c2_268 = arith.constant 2 : index
    %c0_269 = arith.constant 0 : index
    %c0_270 = arith.constant 0 : index
    %278 = vector.load %arg1[%c0_267, %c2_268, %c0_269, %c0_270] : memref<1x5x5x64xbf16, #tpu.memory_space<vmem>>, vector<1x1x4x64xbf16>
    %279 = vector.shape_cast %278 : vector<1x1x4x64xbf16> to vector<4x64xbf16>
    %c14_271 = arith.constant 14 : index
    %c0_272 = arith.constant 0 : index
    %c0_273 = arith.constant 0 : index
    %280 = vector.load %arg2[%c14_271, %c0_272, %c0_273] : memref<16x64x8xbf16, #tpu.memory_space<vmem>>, vector<1x64x8xbf16>
    %281 = vector.shape_cast %280 : vector<1x64x8xbf16> to vector<64x8xbf16>
    %cst_274 = arith.constant dense<0.000000e+00> : vector<4x8xf32>
    %282 = tpu.matmul %279, %281, %cst_274 {dimension_numbers = #tpu.dot_dimension_numbers<[1], [0], [0], [1], [0, 0, 1, 1], [], []>} : vector<4x64xbf16>, vector<64x8xbf16>, vector<4x8xf32> -> vector<4x8xf32>
    %283 = arith.addf %277, %282 : vector<4x8xf32>
    %c0_275 = arith.constant 0 : index
    %c2_276 = arith.constant 2 : index
    %c1_277 = arith.constant 1 : index
    %c0_278 = arith.constant 0 : index
    %284 = vector.load %arg1[%c0_275, %c2_276, %c1_277, %c0_278] : memref<1x5x5x64xbf16, #tpu.memory_space<vmem>>, vector<1x1x4x64xbf16>
    %285 = vector.shape_cast %284 : vector<1x1x4x64xbf16> to vector<4x64xbf16>
    %c15_279 = arith.constant 15 : index
    %c0_280 = arith.constant 0 : index
    %c0_281 = arith.constant 0 : index
    %286 = vector.load %arg2[%c15_279, %c0_280, %c0_281] : memref<16x64x8xbf16, #tpu.memory_space<vmem>>, vector<1x64x8xbf16>
    %287 = vector.shape_cast %286 : vector<1x64x8xbf16> to vector<64x8xbf16>
    %cst_282 = arith.constant dense<0.000000e+00> : vector<4x8xf32>
    %288 = tpu.matmul %285, %287, %cst_282 {dimension_numbers = #tpu.dot_dimension_numbers<[1], [0], [0], [1], [0, 0, 1, 1], [], []>} : vector<4x64xbf16>, vector<64x8xbf16>, vector<4x8xf32> -> vector<4x8xf32>
    %289 = arith.addf %283, %288 : vector<4x8xf32>
    %290 = vector.broadcast %2 : vector<1x8xf32> to vector<4x8xf32>
    %291 = arith.addf %289, %290 : vector<4x8xf32>
    %cst_283 = arith.constant 0.000000e+00 : f32
    %292 = vector.broadcast %cst_283 : f32 to vector<4x8xf32>
    %293 = arith.maximumf %291, %292 : vector<4x8xf32>
    %294 = arith.truncf %293 : vector<4x8xf32> to vector<4x8xbf16>
    %c2_284 = arith.constant 2 : index
    %c1_285 = arith.constant 1 : index
    %c0_286 = arith.constant 0 : index
    %295 = vector.load %arg7[%c2_284, %c1_285, %c0_286] : memref<5x5x32xbf16, #tpu.memory_space<vmem>>, vector<1x4x8xbf16>
    %296 = vector.shape_cast %295 : vector<1x4x8xbf16> to vector<4x8xbf16>
    %297 = vector.shape_cast %294 : vector<4x8xbf16> to vector<1x4x8xbf16>
    tpu.vector_store %arg7[%c2_284, %c1_285, %c0_286], %297 {strides = array<i32>} : memref<5x5x32xbf16, #tpu.memory_space<vmem>>, vector<1x4x8xbf16>,
    %cst_287 = arith.constant 0.000000e+00 : f32
    %298 = vector.broadcast %cst_287 : f32 to vector<4x8xf32>
    %c0_288 = arith.constant 0 : index
    %c2_289 = arith.constant 2 : index
    %c0_290 = arith.constant 0 : index
    %c0_291 = arith.constant 0 : index
    %299 = vector.load %arg1[%c0_288, %c2_289, %c0_290, %c0_291] : memref<1x5x5x64xbf16, #tpu.memory_space<vmem>>, vector<1x1x4x64xbf16>
    %300 = vector.shape_cast %299 : vector<1x1x4x64xbf16> to vector<4x64xbf16>
    %c12_292 = arith.constant 12 : index
    %c0_293 = arith.constant 0 : index
    %c0_294 = arith.constant 0 : index
    %301 = vector.load %arg2[%c12_292, %c0_293, %c0_294] : memref<16x64x8xbf16, #tpu.memory_space<vmem>>, vector<1x64x8xbf16>
    %302 = vector.shape_cast %301 : vector<1x64x8xbf16> to vector<64x8xbf16>
    %cst_295 = arith.constant dense<0.000000e+00> : vector<4x8xf32>
    %303 = tpu.matmul %300, %302, %cst_295 {dimension_numbers = #tpu.dot_dimension_numbers<[1], [0], [0], [1], [0, 0, 1, 1], [], []>} : vector<4x64xbf16>, vector<64x8xbf16>, vector<4x8xf32> -> vector<4x8xf32>
    %304 = arith.addf %298, %303 : vector<4x8xf32>
    %c0_296 = arith.constant 0 : index
    %c2_297 = arith.constant 2 : index
    %c1_298 = arith.constant 1 : index
    %c0_299 = arith.constant 0 : index
    %305 = vector.load %arg1[%c0_296, %c2_297, %c1_298, %c0_299] : memref<1x5x5x64xbf16, #tpu.memory_space<vmem>>, vector<1x1x4x64xbf16>
    %306 = vector.shape_cast %305 : vector<1x1x4x64xbf16> to vector<4x64xbf16>
    %c13_300 = arith.constant 13 : index
    %c0_301 = arith.constant 0 : index
    %c0_302 = arith.constant 0 : index
    %307 = vector.load %arg2[%c13_300, %c0_301, %c0_302] : memref<16x64x8xbf16, #tpu.memory_space<vmem>>, vector<1x64x8xbf16>
    %308 = vector.shape_cast %307 : vector<1x64x8xbf16> to vector<64x8xbf16>
    %cst_303 = arith.constant dense<0.000000e+00> : vector<4x8xf32>
    %309 = tpu.matmul %306, %308, %cst_303 {dimension_numbers = #tpu.dot_dimension_numbers<[1], [0], [0], [1], [0, 0, 1, 1], [], []>} : vector<4x64xbf16>, vector<64x8xbf16>, vector<4x8xf32> -> vector<4x8xf32>
    %310 = arith.addf %304, %309 : vector<4x8xf32>
    %c0_304 = arith.constant 0 : index
    %c3_305 = arith.constant 3 : index
    %c0_306 = arith.constant 0 : index
    %c0_307 = arith.constant 0 : index
    %311 = vector.load %arg1[%c0_304, %c3_305, %c0_306, %c0_307] : memref<1x5x5x64xbf16, #tpu.memory_space<vmem>>, vector<1x1x4x64xbf16>
    %312 = vector.shape_cast %311 : vector<1x1x4x64xbf16> to vector<4x64xbf16>
    %c14_308 = arith.constant 14 : index
    %c0_309 = arith.constant 0 : index
    %c0_310 = arith.constant 0 : index
    %313 = vector.load %arg2[%c14_308, %c0_309, %c0_310] : memref<16x64x8xbf16, #tpu.memory_space<vmem>>, vector<1x64x8xbf16>
    %314 = vector.shape_cast %313 : vector<1x64x8xbf16> to vector<64x8xbf16>
    %cst_311 = arith.constant dense<0.000000e+00> : vector<4x8xf32>
    %315 = tpu.matmul %312, %314, %cst_311 {dimension_numbers = #tpu.dot_dimension_numbers<[1], [0], [0], [1], [0, 0, 1, 1], [], []>} : vector<4x64xbf16>, vector<64x8xbf16>, vector<4x8xf32> -> vector<4x8xf32>
    %316 = arith.addf %310, %315 : vector<4x8xf32>
    %c0_312 = arith.constant 0 : index
    %c3_313 = arith.constant 3 : index
    %c1_314 = arith.constant 1 : index
    %c0_315 = arith.constant 0 : index
    %317 = vector.load %arg1[%c0_312, %c3_313, %c1_314, %c0_315] : memref<1x5x5x64xbf16, #tpu.memory_space<vmem>>, vector<1x1x4x64xbf16>
    %318 = vector.shape_cast %317 : vector<1x1x4x64xbf16> to vector<4x64xbf16>
    %c15_316 = arith.constant 15 : index
    %c0_317 = arith.constant 0 : index
    %c0_318 = arith.constant 0 : index
    %319 = vector.load %arg2[%c15_316, %c0_317, %c0_318] : memref<16x64x8xbf16, #tpu.memory_space<vmem>>, vector<1x64x8xbf16>
    %320 = vector.shape_cast %319 : vector<1x64x8xbf16> to vector<64x8xbf16>
    %cst_319 = arith.constant dense<0.000000e+00> : vector<4x8xf32>
    %321 = tpu.matmul %318, %320, %cst_319 {dimension_numbers = #tpu.dot_dimension_numbers<[1], [0], [0], [1], [0, 0, 1, 1], [], []>} : vector<4x64xbf16>, vector<64x8xbf16>, vector<4x8xf32> -> vector<4x8xf32>
    %322 = arith.addf %316, %321 : vector<4x8xf32>
    %323 = vector.broadcast %2 : vector<1x8xf32> to vector<4x8xf32>
    %324 = arith.addf %322, %323 : vector<4x8xf32>
    %cst_320 = arith.constant 0.000000e+00 : f32
    %325 = vector.broadcast %cst_320 : f32 to vector<4x8xf32>
    %326 = arith.maximumf %324, %325 : vector<4x8xf32>
    %327 = arith.truncf %326 : vector<4x8xf32> to vector<4x8xbf16>
    %c3_321 = arith.constant 3 : index
    %c1_322 = arith.constant 1 : index
    %c0_323 = arith.constant 0 : index
    %328 = vector.load %arg7[%c3_321, %c1_322, %c0_323] : memref<5x5x32xbf16, #tpu.memory_space<vmem>>, vector<1x4x8xbf16>
    %329 = vector.shape_cast %328 : vector<1x4x8xbf16> to vector<4x8xbf16>
    %330 = vector.shape_cast %327 : vector<4x8xbf16> to vector<1x4x8xbf16>
    tpu.vector_store %arg7[%c3_321, %c1_322, %c0_323], %330 {strides = array<i32>} : memref<5x5x32xbf16, #tpu.memory_space<vmem>>, vector<1x4x8xbf16>,
    %cst_324 = arith.constant 0.000000e+00 : f32
    %331 = vector.broadcast %cst_324 : f32 to vector<4x8xf32>
    %c0_325 = arith.constant 0 : index
    %c3_326 = arith.constant 3 : index
    %c0_327 = arith.constant 0 : index
    %c0_328 = arith.constant 0 : index
    %332 = vector.load %arg1[%c0_325, %c3_326, %c0_327, %c0_328] : memref<1x5x5x64xbf16, #tpu.memory_space<vmem>>, vector<1x1x4x64xbf16>
    %333 = vector.shape_cast %332 : vector<1x1x4x64xbf16> to vector<4x64xbf16>
    %c12_329 = arith.constant 12 : index
    %c0_330 = arith.constant 0 : index
    %c0_331 = arith.constant 0 : index
    %334 = vector.load %arg2[%c12_329, %c0_330, %c0_331] : memref<16x64x8xbf16, #tpu.memory_space<vmem>>, vector<1x64x8xbf16>
    %335 = vector.shape_cast %334 : vector<1x64x8xbf16> to vector<64x8xbf16>
    %cst_332 = arith.constant dense<0.000000e+00> : vector<4x8xf32>
    %336 = tpu.matmul %333, %335, %cst_332 {dimension_numbers = #tpu.dot_dimension_numbers<[1], [0], [0], [1], [0, 0, 1, 1], [], []>} : vector<4x64xbf16>, vector<64x8xbf16>, vector<4x8xf32> -> vector<4x8xf32>
    %337 = arith.addf %331, %336 : vector<4x8xf32>
    %c0_333 = arith.constant 0 : index
    %c3_334 = arith.constant 3 : index
    %c1_335 = arith.constant 1 : index
    %c0_336 = arith.constant 0 : index
    %338 = vector.load %arg1[%c0_333, %c3_334, %c1_335, %c0_336] : memref<1x5x5x64xbf16, #tpu.memory_space<vmem>>, vector<1x1x4x64xbf16>
    %339 = vector.shape_cast %338 : vector<1x1x4x64xbf16> to vector<4x64xbf16>
    %c13_337 = arith.constant 13 : index
    %c0_338 = arith.constant 0 : index
    %c0_339 = arith.constant 0 : index
    %340 = vector.load %arg2[%c13_337, %c0_338, %c0_339] : memref<16x64x8xbf16, #tpu.memory_space<vmem>>, vector<1x64x8xbf16>
    %341 = vector.shape_cast %340 : vector<1x64x8xbf16> to vector<64x8xbf16>
    %cst_340 = arith.constant dense<0.000000e+00> : vector<4x8xf32>
    %342 = tpu.matmul %339, %341, %cst_340 {dimension_numbers = #tpu.dot_dimension_numbers<[1], [0], [0], [1], [0, 0, 1, 1], [], []>} : vector<4x64xbf16>, vector<64x8xbf16>, vector<4x8xf32> -> vector<4x8xf32>
    %343 = arith.addf %337, %342 : vector<4x8xf32>
    %c0_341 = arith.constant 0 : index
    %c4_342 = arith.constant 4 : index
    %c0_343 = arith.constant 0 : index
    %c0_344 = arith.constant 0 : index
    %344 = vector.load %arg1[%c0_341, %c4_342, %c0_343, %c0_344] : memref<1x5x5x64xbf16, #tpu.memory_space<vmem>>, vector<1x1x4x64xbf16>
    %345 = vector.shape_cast %344 : vector<1x1x4x64xbf16> to vector<4x64xbf16>
    %c14_345 = arith.constant 14 : index
    %c0_346 = arith.constant 0 : index
    %c0_347 = arith.constant 0 : index
    %346 = vector.load %arg2[%c14_345, %c0_346, %c0_347] : memref<16x64x8xbf16, #tpu.memory_space<vmem>>, vector<1x64x8xbf16>
    %347 = vector.shape_cast %346 : vector<1x64x8xbf16> to vector<64x8xbf16>
    %cst_348 = arith.constant dense<0.000000e+00> : vector<4x8xf32>
    %348 = tpu.matmul %345, %347, %cst_348 {dimension_numbers = #tpu.dot_dimension_numbers<[1], [0], [0], [1], [0, 0, 1, 1], [], []>} : vector<4x64xbf16>, vector<64x8xbf16>, vector<4x8xf32> -> vector<4x8xf32>
    %349 = arith.addf %343, %348 : vector<4x8xf32>
    %c0_349 = arith.constant 0 : index
    %c4_350 = arith.constant 4 : index
    %c1_351 = arith.constant 1 : index
    %c0_352 = arith.constant 0 : index
    %350 = vector.load %arg1[%c0_349, %c4_350, %c1_351, %c0_352] : memref<1x5x5x64xbf16, #tpu.memory_space<vmem>>, vector<1x1x4x64xbf16>
    %351 = vector.shape_cast %350 : vector<1x1x4x64xbf16> to vector<4x64xbf16>
    %c15_353 = arith.constant 15 : index
    %c0_354 = arith.constant 0 : index
    %c0_355 = arith.constant 0 : index
    %352 = vector.load %arg2[%c15_353, %c0_354, %c0_355] : memref<16x64x8xbf16, #tpu.memory_space<vmem>>, vector<1x64x8xbf16>
    %353 = vector.shape_cast %352 : vector<1x64x8xbf16> to vector<64x8xbf16>
    %cst_356 = arith.constant dense<0.000000e+00> : vector<4x8xf32>
    %354 = tpu.matmul %351, %353, %cst_356 {dimension_numbers = #tpu.dot_dimension_numbers<[1], [0], [0], [1], [0, 0, 1, 1], [], []>} : vector<4x64xbf16>, vector<64x8xbf16>, vector<4x8xf32> -> vector<4x8xf32>
    %355 = arith.addf %349, %354 : vector<4x8xf32>
    %356 = vector.broadcast %2 : vector<1x8xf32> to vector<4x8xf32>
    %357 = arith.addf %355, %356 : vector<4x8xf32>
    %cst_357 = arith.constant 0.000000e+00 : f32
    %358 = vector.broadcast %cst_357 : f32 to vector<4x8xf32>
    %359 = arith.maximumf %357, %358 : vector<4x8xf32>
    %360 = arith.truncf %359 : vector<4x8xf32> to vector<4x8xbf16>
    %c4_358 = arith.constant 4 : index
    %c1_359 = arith.constant 1 : index
    %c0_360 = arith.constant 0 : index
    %361 = vector.load %arg7[%c4_358, %c1_359, %c0_360] : memref<5x5x32xbf16, #tpu.memory_space<vmem>>, vector<1x4x8xbf16>
    %362 = vector.shape_cast %361 : vector<1x4x8xbf16> to vector<4x8xbf16>
    %363 = vector.shape_cast %360 : vector<4x8xbf16> to vector<1x4x8xbf16>
    tpu.vector_store %arg7[%c4_358, %c1_359, %c0_360], %363 {strides = array<i32>} : memref<5x5x32xbf16, #tpu.memory_space<vmem>>, vector<1x4x8xbf16>,
    %cst_361 = arith.constant 0.000000e+00 : f32
    %364 = vector.broadcast %cst_361 : f32 to vector<4x16xf32>
    %c0_362 = arith.constant 0 : index
    %c0_363 = arith.constant 0 : index
    %c0_364 = arith.constant 0 : index
    %365 = vector.load %arg7[%c0_362, %c0_363, %c0_364] : memref<5x5x32xbf16, #tpu.memory_space<vmem>>, vector<1x4x32xbf16>
    %366 = vector.shape_cast %365 : vector<1x4x32xbf16> to vector<4x32xbf16>
    %c0_365 = arith.constant 0 : index
    %c0_366 = arith.constant 0 : index
    %c0_367 = arith.constant 0 : index
    %367 = vector.load %arg4[%c0_365, %c0_366, %c0_367] : memref<4x32x16xbf16, #tpu.memory_space<vmem>>, vector<1x32x16xbf16>
    %368 = vector.shape_cast %367 : vector<1x32x16xbf16> to vector<32x16xbf16>
    %cst_368 = arith.constant dense<0.000000e+00> : vector<4x16xf32>
    %369 = tpu.matmul %366, %368, %cst_368 {dimension_numbers = #tpu.dot_dimension_numbers<[1], [0], [0], [1], [0, 0, 1, 1], [], []>} : vector<4x32xbf16>, vector<32x16xbf16>, vector<4x16xf32> -> vector<4x16xf32>
    %370 = arith.addf %364, %369 : vector<4x16xf32>
    %c0_369 = arith.constant 0 : index
    %c1_370 = arith.constant 1 : index
    %c0_371 = arith.constant 0 : index
    %371 = vector.load %arg7[%c0_369, %c1_370, %c0_371] : memref<5x5x32xbf16, #tpu.memory_space<vmem>>, vector<1x4x32xbf16>
    %372 = vector.shape_cast %371 : vector<1x4x32xbf16> to vector<4x32xbf16>
    %c1_372 = arith.constant 1 : index
    %c0_373 = arith.constant 0 : index
    %c0_374 = arith.constant 0 : index
    %373 = vector.load %arg4[%c1_372, %c0_373, %c0_374] : memref<4x32x16xbf16, #tpu.memory_space<vmem>>, vector<1x32x16xbf16>
    %374 = vector.shape_cast %373 : vector<1x32x16xbf16> to vector<32x16xbf16>
    %cst_375 = arith.constant dense<0.000000e+00> : vector<4x16xf32>
    %375 = tpu.matmul %372, %374, %cst_375 {dimension_numbers = #tpu.dot_dimension_numbers<[1], [0], [0], [1], [0, 0, 1, 1], [], []>} : vector<4x32xbf16>, vector<32x16xbf16>, vector<4x16xf32> -> vector<4x16xf32>
    %376 = arith.addf %370, %375 : vector<4x16xf32>
    %c1_376 = arith.constant 1 : index
    %c0_377 = arith.constant 0 : index
    %c0_378 = arith.constant 0 : index
    %377 = vector.load %arg7[%c1_376, %c0_377, %c0_378] : memref<5x5x32xbf16, #tpu.memory_space<vmem>>, vector<1x4x32xbf16>
    %378 = vector.shape_cast %377 : vector<1x4x32xbf16> to vector<4x32xbf16>
    %c2_379 = arith.constant 2 : index
    %c0_380 = arith.constant 0 : index
    %c0_381 = arith.constant 0 : index
    %379 = vector.load %arg4[%c2_379, %c0_380, %c0_381] : memref<4x32x16xbf16, #tpu.memory_space<vmem>>, vector<1x32x16xbf16>
    %380 = vector.shape_cast %379 : vector<1x32x16xbf16> to vector<32x16xbf16>
    %cst_382 = arith.constant dense<0.000000e+00> : vector<4x16xf32>
    %381 = tpu.matmul %378, %380, %cst_382 {dimension_numbers = #tpu.dot_dimension_numbers<[1], [0], [0], [1], [0, 0, 1, 1], [], []>} : vector<4x32xbf16>, vector<32x16xbf16>, vector<4x16xf32> -> vector<4x16xf32>
    %382 = arith.addf %376, %381 : vector<4x16xf32>
    %c1_383 = arith.constant 1 : index
    %c1_384 = arith.constant 1 : index
    %c0_385 = arith.constant 0 : index
    %383 = vector.load %arg7[%c1_383, %c1_384, %c0_385] : memref<5x5x32xbf16, #tpu.memory_space<vmem>>, vector<1x4x32xbf16>
    %384 = vector.shape_cast %383 : vector<1x4x32xbf16> to vector<4x32xbf16>
    %c3_386 = arith.constant 3 : index
    %c0_387 = arith.constant 0 : index
    %c0_388 = arith.constant 0 : index
    %385 = vector.load %arg4[%c3_386, %c0_387, %c0_388] : memref<4x32x16xbf16, #tpu.memory_space<vmem>>, vector<1x32x16xbf16>
    %386 = vector.shape_cast %385 : vector<1x32x16xbf16> to vector<32x16xbf16>
    %cst_389 = arith.constant dense<0.000000e+00> : vector<4x16xf32>
    %387 = tpu.matmul %384, %386, %cst_389 {dimension_numbers = #tpu.dot_dimension_numbers<[1], [0], [0], [1], [0, 0, 1, 1], [], []>} : vector<4x32xbf16>, vector<32x16xbf16>, vector<4x16xf32> -> vector<4x16xf32>
    %388 = arith.addf %382, %387 : vector<4x16xf32>
    %389 = vector.broadcast %3 : vector<1x16xf32> to vector<4x16xf32>
    %390 = arith.addf %388, %389 : vector<4x16xf32>
    %cst_390 = arith.constant 0.000000e+00 : f32
    %391 = vector.broadcast %cst_390 : f32 to vector<4x16xf32>
    %392 = arith.maximumf %390, %391 : vector<4x16xf32>
    %c0_391 = arith.constant 0 : index
    %c0_392 = arith.constant 0 : index
    %c0_393 = arith.constant 0 : index
    %c0_394 = arith.constant 0 : index
    %393 = vector.load %arg6[%c0_391, %c0_392, %c0_393, %c0_394] : memref<1x4x4x16xf32, #tpu.memory_space<vmem>>, vector<1x1x4x16xf32>
    %394 = vector.shape_cast %393 : vector<1x1x4x16xf32> to vector<4x16xf32>
    %395 = vector.shape_cast %392 : vector<4x16xf32> to vector<1x1x4x16xf32>
    tpu.vector_store %arg6[%c0_391, %c0_392, %c0_393, %c0_394], %395 {strides = array<i32>} : memref<1x4x4x16xf32, #tpu.memory_space<vmem>>, vector<1x1x4x16xf32>,
    %cst_395 = arith.constant 0.000000e+00 : f32
    %396 = vector.broadcast %cst_395 : f32 to vector<4x16xf32>
    %c1_396 = arith.constant 1 : index
    %c0_397 = arith.constant 0 : index
    %c0_398 = arith.constant 0 : index
    %397 = vector.load %arg7[%c1_396, %c0_397, %c0_398] : memref<5x5x32xbf16, #tpu.memory_space<vmem>>, vector<1x4x32xbf16>
    %398 = vector.shape_cast %397 : vector<1x4x32xbf16> to vector<4x32xbf16>
    %c0_399 = arith.constant 0 : index
    %c0_400 = arith.constant 0 : index
    %c0_401 = arith.constant 0 : index
    %399 = vector.load %arg4[%c0_399, %c0_400, %c0_401] : memref<4x32x16xbf16, #tpu.memory_space<vmem>>, vector<1x32x16xbf16>
    %400 = vector.shape_cast %399 : vector<1x32x16xbf16> to vector<32x16xbf16>
    %cst_402 = arith.constant dense<0.000000e+00> : vector<4x16xf32>
    %401 = tpu.matmul %398, %400, %cst_402 {dimension_numbers = #tpu.dot_dimension_numbers<[1], [0], [0], [1], [0, 0, 1, 1], [], []>} : vector<4x32xbf16>, vector<32x16xbf16>, vector<4x16xf32> -> vector<4x16xf32>
    %402 = arith.addf %396, %401 : vector<4x16xf32>
    %c1_403 = arith.constant 1 : index
    %c1_404 = arith.constant 1 : index
    %c0_405 = arith.constant 0 : index
    %403 = vector.load %arg7[%c1_403, %c1_404, %c0_405] : memref<5x5x32xbf16, #tpu.memory_space<vmem>>, vector<1x4x32xbf16>
    %404 = vector.shape_cast %403 : vector<1x4x32xbf16> to vector<4x32xbf16>
    %c1_406 = arith.constant 1 : index
    %c0_407 = arith.constant 0 : index
    %c0_408 = arith.constant 0 : index
    %405 = vector.load %arg4[%c1_406, %c0_407, %c0_408] : memref<4x32x16xbf16, #tpu.memory_space<vmem>>, vector<1x32x16xbf16>
    %406 = vector.shape_cast %405 : vector<1x32x16xbf16> to vector<32x16xbf16>
    %cst_409 = arith.constant dense<0.000000e+00> : vector<4x16xf32>
    %407 = tpu.matmul %404, %406, %cst_409 {dimension_numbers = #tpu.dot_dimension_numbers<[1], [0], [0], [1], [0, 0, 1, 1], [], []>} : vector<4x32xbf16>, vector<32x16xbf16>, vector<4x16xf32> -> vector<4x16xf32>
    %408 = arith.addf %402, %407 : vector<4x16xf32>
    %c2_410 = arith.constant 2 : index
    %c0_411 = arith.constant 0 : index
    %c0_412 = arith.constant 0 : index
    %409 = vector.load %arg7[%c2_410, %c0_411, %c0_412] : memref<5x5x32xbf16, #tpu.memory_space<vmem>>, vector<1x4x32xbf16>
    %410 = vector.shape_cast %409 : vector<1x4x32xbf16> to vector<4x32xbf16>
    %c2_413 = arith.constant 2 : index
    %c0_414 = arith.constant 0 : index
    %c0_415 = arith.constant 0 : index
    %411 = vector.load %arg4[%c2_413, %c0_414, %c0_415] : memref<4x32x16xbf16, #tpu.memory_space<vmem>>, vector<1x32x16xbf16>
    %412 = vector.shape_cast %411 : vector<1x32x16xbf16> to vector<32x16xbf16>
    %cst_416 = arith.constant dense<0.000000e+00> : vector<4x16xf32>
    %413 = tpu.matmul %410, %412, %cst_416 {dimension_numbers = #tpu.dot_dimension_numbers<[1], [0], [0], [1], [0, 0, 1, 1], [], []>} : vector<4x32xbf16>, vector<32x16xbf16>, vector<4x16xf32> -> vector<4x16xf32>
    %414 = arith.addf %408, %413 : vector<4x16xf32>
    %c2_417 = arith.constant 2 : index
    %c1_418 = arith.constant 1 : index
    %c0_419 = arith.constant 0 : index
    %415 = vector.load %arg7[%c2_417, %c1_418, %c0_419] : memref<5x5x32xbf16, #tpu.memory_space<vmem>>, vector<1x4x32xbf16>
    %416 = vector.shape_cast %415 : vector<1x4x32xbf16> to vector<4x32xbf16>
    %c3_420 = arith.constant 3 : index
    %c0_421 = arith.constant 0 : index
    %c0_422 = arith.constant 0 : index
    %417 = vector.load %arg4[%c3_420, %c0_421, %c0_422] : memref<4x32x16xbf16, #tpu.memory_space<vmem>>, vector<1x32x16xbf16>
    %418 = vector.shape_cast %417 : vector<1x32x16xbf16> to vector<32x16xbf16>
    %cst_423 = arith.constant dense<0.000000e+00> : vector<4x16xf32>
    %419 = tpu.matmul %416, %418, %cst_423 {dimension_numbers = #tpu.dot_dimension_numbers<[1], [0], [0], [1], [0, 0, 1, 1], [], []>} : vector<4x32xbf16>, vector<32x16xbf16>, vector<4x16xf32> -> vector<4x16xf32>
    %420 = arith.addf %414, %419 : vector<4x16xf32>
    %421 = vector.broadcast %3 : vector<1x16xf32> to vector<4x16xf32>
    %422 = arith.addf %420, %421 : vector<4x16xf32>
    %cst_424 = arith.constant 0.000000e+00 : f32
    %423 = vector.broadcast %cst_424 : f32 to vector<4x16xf32>
    %424 = arith.maximumf %422, %423 : vector<4x16xf32>
    %c0_425 = arith.constant 0 : index
    %c1_426 = arith.constant 1 : index
    %c0_427 = arith.constant 0 : index
    %c0_428 = arith.constant 0 : index
    %425 = vector.load %arg6[%c0_425, %c1_426, %c0_427, %c0_428] : memref<1x4x4x16xf32, #tpu.memory_space<vmem>>, vector<1x1x4x16xf32>
    %426 = vector.shape_cast %425 : vector<1x1x4x16xf32> to vector<4x16xf32>
    %427 = vector.shape_cast %424 : vector<4x16xf32> to vector<1x1x4x16xf32>
    tpu.vector_store %arg6[%c0_425, %c1_426, %c0_427, %c0_428], %427 {strides = array<i32>} : memref<1x4x4x16xf32, #tpu.memory_space<vmem>>, vector<1x1x4x16xf32>,
    %cst_429 = arith.constant 0.000000e+00 : f32
    %428 = vector.broadcast %cst_429 : f32 to vector<4x16xf32>
    %c2_430 = arith.constant 2 : index
    %c0_431 = arith.constant 0 : index
    %c0_432 = arith.constant 0 : index
    %429 = vector.load %arg7[%c2_430, %c0_431, %c0_432] : memref<5x5x32xbf16, #tpu.memory_space<vmem>>, vector<1x4x32xbf16>
    %430 = vector.shape_cast %429 : vector<1x4x32xbf16> to vector<4x32xbf16>
    %c0_433 = arith.constant 0 : index
    %c0_434 = arith.constant 0 : index
    %c0_435 = arith.constant 0 : index
    %431 = vector.load %arg4[%c0_433, %c0_434, %c0_435] : memref<4x32x16xbf16, #tpu.memory_space<vmem>>, vector<1x32x16xbf16>
    %432 = vector.shape_cast %431 : vector<1x32x16xbf16> to vector<32x16xbf16>
    %cst_436 = arith.constant dense<0.000000e+00> : vector<4x16xf32>
    %433 = tpu.matmul %430, %432, %cst_436 {dimension_numbers = #tpu.dot_dimension_numbers<[1], [0], [0], [1], [0, 0, 1, 1], [], []>} : vector<4x32xbf16>, vector<32x16xbf16>, vector<4x16xf32> -> vector<4x16xf32>
    %434 = arith.addf %428, %433 : vector<4x16xf32>
    %c2_437 = arith.constant 2 : index
    %c1_438 = arith.constant 1 : index
    %c0_439 = arith.constant 0 : index
    %435 = vector.load %arg7[%c2_437, %c1_438, %c0_439] : memref<5x5x32xbf16, #tpu.memory_space<vmem>>, vector<1x4x32xbf16>
    %436 = vector.shape_cast %435 : vector<1x4x32xbf16> to vector<4x32xbf16>
    %c1_440 = arith.constant 1 : index
    %c0_441 = arith.constant 0 : index
    %c0_442 = arith.constant 0 : index
    %437 = vector.load %arg4[%c1_440, %c0_441, %c0_442] : memref<4x32x16xbf16, #tpu.memory_space<vmem>>, vector<1x32x16xbf16>
    %438 = vector.shape_cast %437 : vector<1x32x16xbf16> to vector<32x16xbf16>
    %cst_443 = arith.constant dense<0.000000e+00> : vector<4x16xf32>
    %439 = tpu.matmul %436, %438, %cst_443 {dimension_numbers = #tpu.dot_dimension_numbers<[1], [0], [0], [1], [0, 0, 1, 1], [], []>} : vector<4x32xbf16>, vector<32x16xbf16>, vector<4x16xf32> -> vector<4x16xf32>
    %440 = arith.addf %434, %439 : vector<4x16xf32>
    %c3_444 = arith.constant 3 : index
    %c0_445 = arith.constant 0 : index
    %c0_446 = arith.constant 0 : index
    %441 = vector.load %arg7[%c3_444, %c0_445, %c0_446] : memref<5x5x32xbf16, #tpu.memory_space<vmem>>, vector<1x4x32xbf16>
    %442 = vector.shape_cast %441 : vector<1x4x32xbf16> to vector<4x32xbf16>
    %c2_447 = arith.constant 2 : index
    %c0_448 = arith.constant 0 : index
    %c0_449 = arith.constant 0 : index
    %443 = vector.load %arg4[%c2_447, %c0_448, %c0_449] : memref<4x32x16xbf16, #tpu.memory_space<vmem>>, vector<1x32x16xbf16>
    %444 = vector.shape_cast %443 : vector<1x32x16xbf16> to vector<32x16xbf16>
    %cst_450 = arith.constant dense<0.000000e+00> : vector<4x16xf32>
    %445 = tpu.matmul %442, %444, %cst_450 {dimension_numbers = #tpu.dot_dimension_numbers<[1], [0], [0], [1], [0, 0, 1, 1], [], []>} : vector<4x32xbf16>, vector<32x16xbf16>, vector<4x16xf32> -> vector<4x16xf32>
    %446 = arith.addf %440, %445 : vector<4x16xf32>
    %c3_451 = arith.constant 3 : index
    %c1_452 = arith.constant 1 : index
    %c0_453 = arith.constant 0 : index
    %447 = vector.load %arg7[%c3_451, %c1_452, %c0_453] : memref<5x5x32xbf16, #tpu.memory_space<vmem>>, vector<1x4x32xbf16>
    %448 = vector.shape_cast %447 : vector<1x4x32xbf16> to vector<4x32xbf16>
    %c3_454 = arith.constant 3 : index
    %c0_455 = arith.constant 0 : index
    %c0_456 = arith.constant 0 : index
    %449 = vector.load %arg4[%c3_454, %c0_455, %c0_456] : memref<4x32x16xbf16, #tpu.memory_space<vmem>>, vector<1x32x16xbf16>
    %450 = vector.shape_cast %449 : vector<1x32x16xbf16> to vector<32x16xbf16>
    %cst_457 = arith.constant dense<0.000000e+00> : vector<4x16xf32>
    %451 = tpu.matmul %448, %450, %cst_457 {dimension_numbers = #tpu.dot_dimension_numbers<[1], [0], [0], [1], [0, 0, 1, 1], [], []>} : vector<4x32xbf16>, vector<32x16xbf16>, vector<4x16xf32> -> vector<4x16xf32>
    %452 = arith.addf %446, %451 : vector<4x16xf32>
    %453 = vector.broadcast %3 : vector<1x16xf32> to vector<4x16xf32>
    %454 = arith.addf %452, %453 : vector<4x16xf32>
    %cst_458 = arith.constant 0.000000e+00 : f32
    %455 = vector.broadcast %cst_458 : f32 to vector<4x16xf32>
    %456 = arith.maximumf %454, %455 : vector<4x16xf32>
    %c0_459 = arith.constant 0 : index
    %c2_460 = arith.constant 2 : index
    %c0_461 = arith.constant 0 : index
    %c0_462 = arith.constant 0 : index
    %457 = vector.load %arg6[%c0_459, %c2_460, %c0_461, %c0_462] : memref<1x4x4x16xf32, #tpu.memory_space<vmem>>, vector<1x1x4x16xf32>
    %458 = vector.shape_cast %457 : vector<1x1x4x16xf32> to vector<4x16xf32>
    %459 = vector.shape_cast %456 : vector<4x16xf32> to vector<1x1x4x16xf32>
    tpu.vector_store %arg6[%c0_459, %c2_460, %c0_461, %c0_462], %459 {strides = array<i32>} : memref<1x4x4x16xf32, #tpu.memory_space<vmem>>, vector<1x1x4x16xf32>,
    %cst_463 = arith.constant 0.000000e+00 : f32
    %460 = vector.broadcast %cst_463 : f32 to vector<4x16xf32>
    %c3_464 = arith.constant 3 : index
    %c0_465 = arith.constant 0 : index
    %c0_466 = arith.constant 0 : index
    %461 = vector.load %arg7[%c3_464, %c0_465, %c0_466] : memref<5x5x32xbf16, #tpu.memory_space<vmem>>, vector<1x4x32xbf16>
    %462 = vector.shape_cast %461 : vector<1x4x32xbf16> to vector<4x32xbf16>
    %c0_467 = arith.constant 0 : index
    %c0_468 = arith.constant 0 : index
    %c0_469 = arith.constant 0 : index
    %463 = vector.load %arg4[%c0_467, %c0_468, %c0_469] : memref<4x32x16xbf16, #tpu.memory_space<vmem>>, vector<1x32x16xbf16>
    %464 = vector.shape_cast %463 : vector<1x32x16xbf16> to vector<32x16xbf16>
    %cst_470 = arith.constant dense<0.000000e+00> : vector<4x16xf32>
    %465 = tpu.matmul %462, %464, %cst_470 {dimension_numbers = #tpu.dot_dimension_numbers<[1], [0], [0], [1], [0, 0, 1, 1], [], []>} : vector<4x32xbf16>, vector<32x16xbf16>, vector<4x16xf32> -> vector<4x16xf32>
    %466 = arith.addf %460, %465 : vector<4x16xf32>
    %c3_471 = arith.constant 3 : index
    %c1_472 = arith.constant 1 : index
    %c0_473 = arith.constant 0 : index
    %467 = vector.load %arg7[%c3_471, %c1_472, %c0_473] : memref<5x5x32xbf16, #tpu.memory_space<vmem>>, vector<1x4x32xbf16>
    %468 = vector.shape_cast %467 : vector<1x4x32xbf16> to vector<4x32xbf16>
    %c1_474 = arith.constant 1 : index
    %c0_475 = arith.constant 0 : index
    %c0_476 = arith.constant 0 : index
    %469 = vector.load %arg4[%c1_474, %c0_475, %c0_476] : memref<4x32x16xbf16, #tpu.memory_space<vmem>>, vector<1x32x16xbf16>
    %470 = vector.shape_cast %469 : vector<1x32x16xbf16> to vector<32x16xbf16>
    %cst_477 = arith.constant dense<0.000000e+00> : vector<4x16xf32>
    %471 = tpu.matmul %468, %470, %cst_477 {dimension_numbers = #tpu.dot_dimension_numbers<[1], [0], [0], [1], [0, 0, 1, 1], [], []>} : vector<4x32xbf16>, vector<32x16xbf16>, vector<4x16xf32> -> vector<4x16xf32>
    %472 = arith.addf %466, %471 : vector<4x16xf32>
    %c4_478 = arith.constant 4 : index
    %c0_479 = arith.constant 0 : index
    %c0_480 = arith.constant 0 : index
    %473 = vector.load %arg7[%c4_478, %c0_479, %c0_480] : memref<5x5x32xbf16, #tpu.memory_space<vmem>>, vector<1x4x32xbf16>
    %474 = vector.shape_cast %473 : vector<1x4x32xbf16> to vector<4x32xbf16>
    %c2_481 = arith.constant 2 : index
    %c0_482 = arith.constant 0 : index
    %c0_483 = arith.constant 0 : index
    %475 = vector.load %arg4[%c2_481, %c0_482, %c0_483] : memref<4x32x16xbf16, #tpu.memory_space<vmem>>, vector<1x32x16xbf16>
    %476 = vector.shape_cast %475 : vector<1x32x16xbf16> to vector<32x16xbf16>
    %cst_484 = arith.constant dense<0.000000e+00> : vector<4x16xf32>
    %477 = tpu.matmul %474, %476, %cst_484 {dimension_numbers = #tpu.dot_dimension_numbers<[1], [0], [0], [1], [0, 0, 1, 1], [], []>} : vector<4x32xbf16>, vector<32x16xbf16>, vector<4x16xf32> -> vector<4x16xf32>
    %478 = arith.addf %472, %477 : vector<4x16xf32>
    %c4_485 = arith.constant 4 : index
    %c1_486 = arith.constant 1 : index
    %c0_487 = arith.constant 0 : index
    %479 = vector.load %arg7[%c4_485, %c1_486, %c0_487] : memref<5x5x32xbf16, #tpu.memory_space<vmem>>, vector<1x4x32xbf16>
    %480 = vector.shape_cast %479 : vector<1x4x32xbf16> to vector<4x32xbf16>
    %c3_488 = arith.constant 3 : index
    %c0_489 = arith.constant 0 : index
    %c0_490 = arith.constant 0 : index
    %481 = vector.load %arg4[%c3_488, %c0_489, %c0_490] : memref<4x32x16xbf16, #tpu.memory_space<vmem>>, vector<1x32x16xbf16>
    %482 = vector.shape_cast %481 : vector<1x32x16xbf16> to vector<32x16xbf16>
    %cst_491 = arith.constant dense<0.000000e+00> : vector<4x16xf32>
    %483 = tpu.matmul %480, %482, %cst_491 {dimension_numbers = #tpu.dot_dimension_numbers<[1], [0], [0], [1], [0, 0, 1, 1], [], []>} : vector<4x32xbf16>, vector<32x16xbf16>, vector<4x16xf32> -> vector<4x16xf32>
    %484 = arith.addf %478, %483 : vector<4x16xf32>
    %485 = vector.broadcast %3 : vector<1x16xf32> to vector<4x16xf32>
    %486 = arith.addf %484, %485 : vector<4x16xf32>
    %cst_492 = arith.constant 0.000000e+00 : f32
    %487 = vector.broadcast %cst_492 : f32 to vector<4x16xf32>
    %488 = arith.maximumf %486, %487 : vector<4x16xf32>
    %c0_493 = arith.constant 0 : index
    %c3_494 = arith.constant 3 : index
    %c0_495 = arith.constant 0 : index
    %c0_496 = arith.constant 0 : index
    %489 = vector.load %arg6[%c0_493, %c3_494, %c0_495, %c0_496] : memref<1x4x4x16xf32, #tpu.memory_space<vmem>>, vector<1x1x4x16xf32>
    %490 = vector.shape_cast %489 : vector<1x1x4x16xf32> to vector<4x16xf32>
    %491 = vector.shape_cast %488 : vector<4x16xf32> to vector<1x1x4x16xf32>
    tpu.vector_store %arg6[%c0_493, %c3_494, %c0_495, %c0_496], %491 {strides = array<i32>} : memref<1x4x4x16xf32, #tpu.memory_space<vmem>>, vector<1x1x4x16xf32>,
    return
  }
  func.func @transform_0(%arg0: i32) -> (i32, i32, i32, i32) {
    %c0_i32 = arith.constant 0 : i32
    %c0_i32_0 = arith.constant 0 : i32
    %c0_i32_1 = arith.constant 0 : i32
    %c0_i32_2 = arith.constant 0 : i32
    return %arg0, %c0_i32, %c0_i32_0, %c0_i32_1 : i32, i32, i32, i32
  }
  func.func @transform_1(%arg0: i32) -> (i32, i32, i32) {
    %c0_i32 = arith.constant 0 : i32
    %c0_i32_0 = arith.constant 0 : i32
    %c0_i32_1 = arith.constant 0 : i32
    %c0_i32_2 = arith.constant 0 : i32
    return %c0_i32, %c0_i32_0, %c0_i32_1 : i32, i32, i32
  }
  func.func @transform_2(%arg0: i32) -> (i32, i32) {
    %c0_i32 = arith.constant 0 : i32
    %c0_i32_0 = arith.constant 0 : i32
    %c0_i32_1 = arith.constant 0 : i32
    return %c0_i32, %c0_i32_0 : i32, i32
  }
  func.func @transform_3(%arg0: i32) -> (i32, i32, i32) {
    %c0_i32 = arith.constant 0 : i32
    %c0_i32_0 = arith.constant 0 : i32
    %c0_i32_1 = arith.constant 0 : i32
    %c0_i32_2 = arith.constant 0 : i32
    return %c0_i32, %c0_i32_0, %c0_i32_1 : i32, i32, i32
  }
  func.func @transform_4(%arg0: i32) -> (i32, i32) {
    %c0_i32 = arith.constant 0 : i32
    %c0_i32_0 = arith.constant 0 : i32
    %c0_i32_1 = arith.constant 0 : i32
    return %c0_i32, %c0_i32_0 : i32, i32
  }
  func.func @transform_5(%arg0: i32) -> (i32, i32, i32, i32) {
    %c0_i32 = arith.constant 0 : i32
    %c0_i32_0 = arith.constant 0 : i32
    %c0_i32_1 = arith.constant 0 : i32
    %c0_i32_2 = arith.constant 0 : i32
    return %arg0, %c0_i32, %c0_i32_0, %c0_i32_1 : i32, i32, i32, i32
  }
}

</mosaic_0001>

<llo_original>
// kernel: encoder_forward.1
$region0: #{encoder_forward.1}
  #allocation0 [shape = 'u32[]', space=smem, size = 0x4, offset = 0x4, fixed_abs, tag = 'smem constant byte address 0x4 - core index']
  #allocation1 [shape = 'u32[72,128]{1,0:T(1,128)}', space=vmem, size = 0x9000, scoped, tag = 'internal scratch']
  #allocation2 [shape = 'bf16[5,5,32]{2,1,0:T(8,128)(2,1)}', space=vmem, size = 0x2800, scoped, tag = 'scratch operand']
  %s0 = inlined_call_operand.vmem [shape: bf16[2,5,5,64], index: 0, kind: input, shape index: {}]
  %s1 = inlined_call_operand.vmem [shape: bf16[16,64,8], index: 1, kind: input, shape index: {}]
  %s2 = inlined_call_operand.vmem [shape: f32[1,8], index: 2, kind: input, shape index: {}]
  %s3 = inlined_call_operand.vmem [shape: bf16[4,32,16], index: 3, kind: input, shape index: {}]
  %s4 = inlined_call_operand.vmem [shape: f32[1,16], index: 4, kind: input, shape index: {}]
  %s5 = inlined_call_operand.hbm [shape: f32[2,4,4,16], index: 5, kind: output, shape index: {}]
  %s6 = sld [smem:[#allocation0]]
  $region53: #{encoder_forward.1} parent=0
    _
  %s8 = ssub.s32 1, %s6
  %s9 = scalar_select 0, %s8, %s6
  $region1: #{encoder_forward.1} parent=0
    #allocation3 [shape = 'u8[16384]{0}', space=vmem, size = 0x4000, scoped, tag = 'output window, operand 0']
    #allocation4 [shape = 's32[2]{0}', space=sflag, size = 0x8, scoped, tag = 'scoped memory for encoder_forward.1']
    %10 = vsyncpa [#allocation4], 0
    %s11 = scalar_lea.sflag [#allocation4], 1
    %12 = vsyncpa %s11, 0
    loop: start=0, step=1, limit=4
    $region2: #{encoder_forward.1} parent=1 // loop_pre_header
      _
    $region3: #{encoder_forward.1} parent=1 // loop_header
      %s14 = sphi 0, %s18
      %p15 = scmp.ge.s32.totalorder %s14, 4
      %s24 = sphi 0, %s26
      %s27 = sphi 0, %s24
      %s28 = sphi 0, %s27
      %s44 = sphi 0, %s28
      %s48 = sphi 0, %s48
      %s50 = sphi 0, %s48
      %s51 = sphi 0, %s50
      %s65 = sphi 0, %s51
      %s69 = sphi 0, %s69
      %s71 = sphi 0, %s69
      %s72 = sphi 0, %s71
      %s86 = sphi 0, %s72
      %s90 = sphi 0, %s90
      %s92 = sphi 0, %s90
      %s93 = sphi 0, %s92
      %s107 = sphi 0, %s93
      %s111 = sphi 0, %s111
      %s113 = sphi 0, %s111
      %s114 = sphi 0, %s113
      %s128 = sphi 0, %s114
      %s134 = sphi 0, %s136
      %s137 = sphi 0, %s134
      %s138 = sphi 0, %s137
      %s154 = sphi 0, %s138
    $region4: #{encoder_forward.1} parent=1 // loop_header_branch
      %17 = sbr.rel (%p15) target = $region8
    $region5: #{encoder_forward.1} parent=1 // loop_body
      %s19 = ssub.s32 %s14, 1
      %s20 = ssub.s32 %s14, 2
      %s21 = sadd.s32 %s14, 1
      %s22 = ssub.s32 %s14, %s21
      %p23 = scmp.eq.s32.totalorder %s22, 0
      %s25 = sadd.s32 %s24, 1
      %s26 = scalar_select %p23, %s24, %s25
      %p29 = pneg %p23
      %p30 = scmp.eq.s32.totalorder %s14, 1
      %p31 = por %p29, %p30
      %p32 = scmp.ne.s32.totalorder %s24, %s27
      %p33 = scmp.eq.s32.totalorder %s14, 0
      %p34 = por %p32, %p33
      %p35 = scmp.ne.s32.totalorder %s24, %s27
      %p36 = scmp.eq.s32.totalorder %s19, 1
      %p37 = por %p35, %p36
      %p38 = scmp.ne.s32.totalorder %s27, %s28
      %p39 = scmp.eq.s32.totalorder %s19, 0
      %p40 = por %p38, %p39
      %p41 = scmp.ne.s32.totalorder %s27, %s28
      %p42 = scmp.eq.s32.totalorder %s20, 1
      %p43 = por %p41, %p42
      %p45 = scmp.ne.s32.totalorder %s28, %s44
      %p46 = scmp.eq.s32.totalorder %s20, 0
      %p47 = por %p45, %p46
      %s49 = sadd.s32 %s48, 1
      %p52 = scmp.eq.s32.totalorder %s14, 1
      %p53 = scmp.ne.s32.totalorder %s48, %s50
      %p54 = scmp.eq.s32.totalorder %s14, 0
      %p55 = por %p53, %p54
      %p56 = scmp.ne.s32.totalorder %s48, %s50
      %p57 = scmp.eq.s32.totalorder %s19, 1
      %p58 = por %p56, %p57
      %p59 = scmp.ne.s32.totalorder %s50, %s51
      %p60 = scmp.eq.s32.totalorder %s19, 0
      %p61 = por %p59, %p60
      %p62 = scmp.ne.s32.totalorder %s50, %s51
      %p63 = scmp.eq.s32.totalorder %s20, 1
      %p64 = por %p62, %p63
      %p66 = scmp.ne.s32.totalorder %s51, %s65
      %p67 = scmp.eq.s32.totalorder %s20, 0
      %p68 = por %p66, %p67
      %s70 = sadd.s32 %s69, 1
      %p73 = scmp.eq.s32.totalorder %s14, 1
      %p74 = scmp.ne.s32.totalorder %s69, %s71
      %p75 = scmp.eq.s32.totalorder %s14, 0
      %p76 = por %p74, %p75
      %p77 = scmp.ne.s32.totalorder %s69, %s71
      %p78 = scmp.eq.s32.totalorder %s19, 1
      %p79 = por %p77, %p78
      %p80 = scmp.ne.s32.totalorder %s71, %s72
      %p81 = scmp.eq.s32.totalorder %s19, 0
      %p82 = por %p80, %p81
      %p83 = scmp.ne.s32.totalorder %s71, %s72
      %p84 = scmp.eq.s32.totalorder %s20, 1
      %p85 = por %p83, %p84
      %p87 = scmp.ne.s32.totalorder %s72, %s86
      %p88 = scmp.eq.s32.totalorder %s20, 0
      %p89 = por %p87, %p88
      %s91 = sadd.s32 %s90, 1
      %p94 = scmp.eq.s32.totalorder %s14, 1
      %p95 = scmp.ne.s32.totalorder %s90, %s92
      %p96 = scmp.eq.s32.totalorder %s14, 0
      %p97 = por %p95, %p96
      %p98 = scmp.ne.s32.totalorder %s90, %s92
      %p99 = scmp.eq.s32.totalorder %s19, 1
      %p100 = por %p98, %p99
      %p101 = scmp.ne.s32.totalorder %s92, %s93
      %p102 = scmp.eq.s32.totalorder %s19, 0
      %p103 = por %p101, %p102
      %p104 = scmp.ne.s32.totalorder %s92, %s93
      %p105 = scmp.eq.s32.totalorder %s20, 1
      %p106 = por %p104, %p105
      %p108 = scmp.ne.s32.totalorder %s93, %s107
      %p109 = scmp.eq.s32.totalorder %s20, 0
      %p110 = por %p108, %p109
      %s112 = sadd.s32 %s111, 1
      %p115 = scmp.eq.s32.totalorder %s14, 1
      %p116 = scmp.ne.s32.totalorder %s111, %s113
      %p117 = scmp.eq.s32.totalorder %s14, 0
      %p118 = por %p116, %p117
      %p119 = scmp.ne.s32.totalorder %s111, %s113
      %p120 = scmp.eq.s32.totalorder %s19, 1
      %p121 = por %p119, %p120
      %p122 = scmp.ne.s32.totalorder %s113, %s114
      %p123 = scmp.eq.s32.totalorder %s19, 0
      %p124 = por %p122, %p123
      %p125 = scmp.ne.s32.totalorder %s113, %s114
      %p126 = scmp.eq.s32.totalorder %s20, 1
      %p127 = por %p125, %p126
      %p129 = scmp.ne.s32.totalorder %s114, %s128
      %p130 = scmp.eq.s32.totalorder %s20, 0
      %p131 = por %p129, %p130
      %s132 = ssub.s32 %s14, %s21
      %p133 = scmp.eq.s32.totalorder %s132, 0
      %s135 = sadd.s32 %s134, 1
      %s136 = scalar_select %p133, %s134, %s135
      %p139 = pneg %p133
      %p140 = scmp.eq.s32.totalorder %s14, 1
      %p141 = por %p139, %p140
      %p142 = scmp.ne.s32.totalorder %s134, %s137
      %p143 = scmp.eq.s32.totalorder %s14, 0
      %p144 = por %p142, %p143
      %p145 = scmp.ne.s32.totalorder %s134, %s137
      %p146 = scmp.eq.s32.totalorder %s19, 1
      %p147 = por %p145, %p146
      %p148 = scmp.ne.s32.totalorder %s137, %s138
      %p149 = scmp.eq.s32.totalorder %s19, 0
      %p150 = por %p148, %p149
      %p151 = scmp.ne.s32.totalorder %s137, %s138
      %p152 = scmp.eq.s32.totalorder %s20, 1
      %p153 = por %p151, %p152
      %p155 = scmp.ne.s32.totalorder %s138, %s154
      %p156 = scmp.eq.s32.totalorder %s20, 0
      %p157 = por %p155, %p156
      %p158 = scmp.le.s32.totalorder 1, %s14
      %p159 = scmp.lt.s32.totalorder %s14, 3
      %p160 = pnand %p158, %p159
      %p161 = pneg %p160
      // Predicated region
      $region9: #{encoder_forward.1} parent=5 // pred_check
        _
      $region10: #{encoder_forward.1} parent=5 // pred_check_branch
        %163 = sbr.rel (%p160) target = $region12
      $region11: #{encoder_forward.1} parent=5 // pred_region
        %s164 = ssub.s32 %s14, 1
        // Predicated region
        $region13: #{encoder_forward.1} parent=11 // pred_check
          %p165 = pneg %p61
        $region14: #{encoder_forward.1} parent=11 // pred_check_branch
          %167 = sbr.rel (%p165) target = $region16
        $region15: #{encoder_forward.1} parent=11 // pred_region
          _
        $region16: #{encoder_forward.1} parent=11 // pred_fallthru
          _
        // Predicated region
        $region17: #{encoder_forward.1} parent=11 // pred_check
          %p168 = pneg %p82
        $region18: #{encoder_forward.1} parent=11 // pred_check_branch
          %170 = sbr.rel (%p168) target = $region20
        $region19: #{encoder_forward.1} parent=11 // pred_region
          _
        $region20: #{encoder_forward.1} parent=11 // pred_fallthru
          _
        // Predicated region
        $region21: #{encoder_forward.1} parent=11 // pred_check
          %p171 = pneg %p103
        $region22: #{encoder_forward.1} parent=11 // pred_check_branch
          %173 = sbr.rel (%p171) target = $region24
        $region23: #{encoder_forward.1} parent=11 // pred_region
          _
        $region24: #{encoder_forward.1} parent=11 // pred_fallthru
          _
        // Predicated region
        $region25: #{encoder_forward.1} parent=11 // pred_check
          %p174 = pneg %p124
        $region26: #{encoder_forward.1} parent=11 // pred_check_branch
          %176 = sbr.rel (%p174) target = $region28
        $region27: #{encoder_forward.1} parent=11 // pred_region
          _
        $region28: #{encoder_forward.1} parent=11 // pred_fallthru
          _
      $region12: #{encoder_forward.1} parent=5 // pred_fallthru
        _
      %p177 = scmp.lt.s32.totalorder %s14, 2
      // Predicated region
      $region29: #{encoder_forward.1} parent=5 // pred_check
        %p178 = pneg %p177
      $region30: #{encoder_forward.1} parent=5 // pred_check_branch
        %180 = sbr.rel (%p178) target = $region32
      $region31: #{encoder_forward.1} parent=5 // pred_region
        // Predicated region
        $region33: #{encoder_forward.1} parent=31 // pred_check
          %p181 = pneg %p34
        $region34: #{encoder_forward.1} parent=31 // pred_check_branch
          %183 = sbr.rel (%p181) target = $region36
        $region35: #{encoder_forward.1} parent=31 // pred_region
          %p184 = scmp.lt.s32.totalorder %s14, 1
          %s185 = scalar_select %p184, %s14, 1
          %s186 = smul.addr %s185, 5
          %s187 = smul.addr %s186, 4
          %s188 = scalar_lea.vmem %s0, %s187
        $region36: #{encoder_forward.1} parent=31 // pred_fallthru
          _
      $region32: #{encoder_forward.1} parent=5 // pred_fallthru
        _
      %p189 = scmp.le.s32.totalorder 1, %s14
      %p190 = scmp.lt.s32.totalorder %s14, 3
      %p191 = pnand %p189, %p190
      %p192 = pneg %p191
      // Predicated region
      $region37: #{encoder_forward.1} parent=5 // pred_check
        _
      $region38: #{encoder_forward.1} parent=5 // pred_check_branch
        %194 = sbr.rel (%p191) target = $region40
      $region39: #{encoder_forward.1} parent=5 // pred_region
        %s195 = ssub.s32 %s14, 1
        %p196 = scmp.lt.s32.totalorder %s19, 1
        %s197 = scalar_select %p196, %s19, 1
        %s198 = smul.addr %s197, 5
        %s199 = smul.addr %s198, 4
        %s200 = scalar_lea.vmem %s0, %s199
        %p201 = pneg %p40
        %p202 = pneg %p37
        %p203 = pneg %p61
        %p204 = pneg %p58
        %p205 = pneg %p82
        %p206 = pneg %p79
        %p207 = pneg %p103
        %p208 = pneg %p100
        %p209 = pneg %p124
        %p210 = pneg %p121
        %p211 = pneg %p150
        %p212 = pneg %p147
        %s213 = sand.u32 %s137, 1
        %s214 = scalar_lea.sflag [#allocation4], %s213
        %s215 = sand.u32 %s137, 1
        %s216 = smul.addr %s215, 16
        %s217 = scalar_lea.vmem [#allocation3], %s216
        %p218 = scmp.lt.s32.totalorder %s19, 1
        %s219 = scalar_select %p218, %s19, 1
        %s220 = smul.addr %s219, 5
        %s221 = smul.addr %s220, 4
        %s222 = scalar_lea.vmem %s0, %s221
        %vm224 = vcmask 256000
        %vm225 = vsmask.f32 2304
        %vm226 = vmand %vm224, %vm225
        %v227 = vld [vmem:[#allocation2] sm:$0x7]
        %v228 = vsel %vm226, 0, %v227
        %229 = vst [vmem:[#allocation2] sm:$0x7] %v228
        %v230 = vld [vmem:[#allocation2 + $0x4] sm:$0x7]
        %v231 = vsel %vm226, 0, %v230
        %232 = vst [vmem:[#allocation2 + $0x4] sm:$0x7] %v231
        %v233 = vld [vmem:[#allocation2 + $0x8] sm:$0x7]
        %v234 = vsel %vm226, 0, %v233
        %235 = vst [vmem:[#allocation2 + $0x8] sm:$0x7] %v234
        %v236 = vld [vmem:[#allocation2 + $0xc] sm:$0x7]
        %v237 = vsel %vm226, 0, %v236
        %238 = vst [vmem:[#allocation2 + $0xc] sm:$0x7] %v237
        %v239 = vld [vmem:[#allocation2 + $0x10] sm:$0x7]
        %v240 = vsel %vm226, 0, %v239
        %241 = vst [vmem:[#allocation2 + $0x10] sm:$0x7] %v240
        %v242 = vld [vmem:[%s2] sm:$0x1]
        %v243 = vld [vmem:[%s4] sm:$0x1]
        %v244 = vld [vmem:[%s222] sm:$0x3]
        %v245 = vld [vmem:[%s1] sm:$0xf]
        %v246 = vld [vmem:[%s1 + $0x4] sm:$0xf]
        %v247 = vld [vmem:[%s1 + $0x8] sm:$0xf]
        %v248 = vld [vmem:[%s1 + $0xc] sm:$0xf]
        %v249 = vld [vmem:[%s1 + $0x10] sm:$0xf]
        %v250 = vld [vmem:[%s1 + $0x14] sm:$0xf]
        %v251 = vld [vmem:[%s1 + $0x18] sm:$0xf]
        %v252 = vld [vmem:[%s1 + $0x1c] sm:$0xf]
        %v254 = vperm.slane %v242, 0
        %v264 = vunpack.c.l.b16 %v245
        %v265 = vunpack.c.l.b16 %v246
        %v266 = vunpack.c.l.b16 %v247
        %v267 = vunpack.c.l.b16 %v248
        %v268 = vunpack.c.l.b16 %v249
        %v269 = vunpack.c.l.b16 %v250
        %v270 = vunpack.c.l.b16 %v251
        %v271 = vunpack.c.l.b16 %v252
        %v272 = vpack.c.b16 %v265, %v264
        %v273 = vpack.c.b16 %v267, %v266
        %v274 = vpack.c.b16 %v269, %v268
        %v275 = vpack.c.b16 %v271, %v270
        %vm280 = vcmask 523264
        %v282 = vsel %vm280, %v244, 0
        %284 = vmatpush.bf16.msra.mxu0 0
        %285 = vmatpush.bf16.msra.mxu0 0
        %286 = vmatpush.bf16.msra.mxu0 0
        %287 = vmatpush.bf16.msra.mxu0 0
        %288 = vmatpush.bf16.msra.mxu0 %v275
        %289 = vmatpush.bf16.msra.mxu0 %v274
        %290 = vmatpush.bf16.msra.mxu0 %v273
        %291 = vmatpush.bf16.msra.mxu0 %v272
        %292 = vmatmul.bf16.gmra.mxu0 %v282
        %v293 = vpop.f32.mrf.mxu0
        %v294 = vadd.f32 %v254, %v293
        %v295 = vpop.f32.mrf.mxu0
        %296 = vdwg.mxu0
        %v297 = vmax.f32 %v294, 0.0
        %v298 = vpack.c.bf16 %v297, %v297
        %300 = vrot.lane.b32.xlu0 %v298, 24
        %v301 = vpop.permute.xlu0 %300
        %vm303 = vcmask 255168
        %304 = vst.msk [vmem:[#allocation2] sm:$0x3] %vm303, %v301
        %s305 = scalar_lea.vmem %s222, 4
        %v306 = vld [vmem:[%s305] sm:$0x3]
        %v307 = vld [vmem:[%s1] sm:$0xf]
        %v308 = vld [vmem:[%s1 + $0x4] sm:$0xf]
        %v309 = vld [vmem:[%s1 + $0x8] sm:$0xf]
        %v310 = vld [vmem:[%s1 + $0xc] sm:$0xf]
        %v311 = vld [vmem:[%s1 + $0x10] sm:$0xf]
        %v312 = vld [vmem:[%s1 + $0x14] sm:$0xf]
        %v313 = vld [vmem:[%s1 + $0x18] sm:$0xf]
        %v314 = vld [vmem:[%s1 + $0x1c] sm:$0xf]
        %v323 = vunpack.c.l.b16 %v307
        %v324 = vunpack.c.l.b16 %v308
        %v325 = vunpack.c.l.b16 %v309
        %v326 = vunpack.c.l.b16 %v310
        %v327 = vunpack.c.l.b16 %v311
        %v328 = vunpack.c.l.b16 %v312
        %v329 = vunpack.c.l.b16 %v313
        %v330 = vunpack.c.l.b16 %v314
        %v331 = vpack.c.b16 %v324, %v323
        %v332 = vpack.c.b16 %v326, %v325
        %v333 = vpack.c.b16 %v328, %v327
        %v334 = vpack.c.b16 %v330, %v329
        %v340 = vsel %vm280, %v306, 0
        %342 = vmatpush.bf16.msra.mxu0 0
        %343 = vmatpush.bf16.msra.mxu0 0
        %344 = vmatpush.bf16.msra.mxu0 0
        %345 = vmatpush.bf16.msra.mxu0 0
        %346 = vmatpush.bf16.msra.mxu0 %v334
        %347 = vmatpush.bf16.msra.mxu0 %v333
        %348 = vmatpush.bf16.msra.mxu0 %v332
        %349 = vmatpush.bf16.msra.mxu0 %v331
        %350 = vmatmul.bf16.gmra.mxu0 %v340
        %v351 = vpop.f32.mrf.mxu0
        %v352 = vadd.f32 %v254, %v351
        %v353 = vpop.f32.mrf.mxu0
        %354 = vdwg.mxu0
        %v355 = vmax.f32 %v352, 0.0
        %v356 = vpack.c.bf16 %v355, %v355
        %358 = vrot.lane.b32.xlu0 %v356, 24
        %v359 = vpop.permute.xlu0 %358
        %s361 = scalar_lea.vmem [#allocation2], 4
        %362 = vst.msk [vmem:[%s361] sm:$0x3] %vm303, %v359
        %s363 = scalar_lea.vmem %s222, 8
        %v364 = vld [vmem:[%s363] sm:$0x3]
        %v365 = vld [vmem:[%s1] sm:$0xf]
        %v366 = vld [vmem:[%s1 + $0x4] sm:$0xf]
        %v367 = vld [vmem:[%s1 + $0x8] sm:$0xf]
        %v368 = vld [vmem:[%s1 + $0xc] sm:$0xf]
        %v369 = vld [vmem:[%s1 + $0x10] sm:$0xf]
        %v370 = vld [vmem:[%s1 + $0x14] sm:$0xf]
        %v371 = vld [vmem:[%s1 + $0x18] sm:$0xf]
        %v372 = vld [vmem:[%s1 + $0x1c] sm:$0xf]
        %v381 = vunpack.c.l.b16 %v365
        %v382 = vunpack.c.l.b16 %v366
        %v383 = vunpack.c.l.b16 %v367
        %v384 = vunpack.c.l.b16 %v368
        %v385 = vunpack.c.l.b16 %v369
        %v386 = vunpack.c.l.b16 %v370
        %v387 = vunpack.c.l.b16 %v371
        %v388 = vunpack.c.l.b16 %v372
        %v389 = vpack.c.b16 %v382, %v381
        %v390 = vpack.c.b16 %v384, %v383
        %v391 = vpack.c.b16 %v386, %v385
        %v392 = vpack.c.b16 %v388, %v387
        %v398 = vsel %vm280, %v364, 0
        %400 = vmatpush.bf16.msra.mxu0 0
        %401 = vmatpush.bf16.msra.mxu0 0
        %402 = vmatpush.bf16.msra.mxu0 0
        %403 = vmatpush.bf16.msra.mxu0 0
        %404 = vmatpush.bf16.msra.mxu0 %v392
        %405 = vmatpush.bf16.msra.mxu0 %v391
        %406 = vmatpush.bf16.msra.mxu0 %v390
        %407 = vmatpush.bf16.msra.mxu0 %v389
        %408 = vmatmul.bf16.gmra.mxu0 %v398
        %v409 = vpop.f32.mrf.mxu0
        %v410 = vadd.f32 %v254, %v409
        %v411 = vpop.f32.mrf.mxu0
        %412 = vdwg.mxu0
        %v413 = vmax.f32 %v410, 0.0
        %v414 = vpack.c.bf16 %v413, %v413
        %416 = vrot.lane.b32.xlu0 %v414, 24
        %v417 = vpop.permute.xlu0 %416
        %s419 = scalar_lea.vmem [#allocation2], 8
        %420 = vst.msk [vmem:[%s419] sm:$0x3] %vm303, %v417
        %s421 = scalar_lea.vmem %s222, 12
        %v422 = vld [vmem:[%s421] sm:$0x3]
        %v423 = vld [vmem:[%s1] sm:$0xf]
        %v424 = vld [vmem:[%s1 + $0x4] sm:$0xf]
        %v425 = vld [vmem:[%s1 + $0x8] sm:$0xf]
        %v426 = vld [vmem:[%s1 + $0xc] sm:$0xf]
        %v427 = vld [vmem:[%s1 + $0x10] sm:$0xf]
        %v428 = vld [vmem:[%s1 + $0x14] sm:$0xf]
        %v429 = vld [vmem:[%s1 + $0x18] sm:$0xf]
        %v430 = vld [vmem:[%s1 + $0x1c] sm:$0xf]
        %v439 = vunpack.c.l.b16 %v423
        %v440 = vunpack.c.l.b16 %v424
        %v441 = vunpack.c.l.b16 %v425
        %v442 = vunpack.c.l.b16 %v426
        %v443 = vunpack.c.l.b16 %v427
        %v444 = vunpack.c.l.b16 %v428
        %v445 = vunpack.c.l.b16 %v429
        %v446 = vunpack.c.l.b16 %v430
        %v447 = vpack.c.b16 %v440, %v439
        %v448 = vpack.c.b16 %v442, %v441
        %v449 = vpack.c.b16 %v444, %v443
        %v450 = vpack.c.b16 %v446, %v445
        %v456 = vsel %vm280, %v422, 0
        %458 = vmatpush.bf16.msra.mxu0 0
        %459 = vmatpush.bf16.msra.mxu0 0
        %460 = vmatpush.bf16.msra.mxu0 0
        %461 = vmatpush.bf16.msra.mxu0 0
        %462 = vmatpush.bf16.msra.mxu0 %v450
        %463 = vmatpush.bf16.msra.mxu0 %v449
        %464 = vmatpush.bf16.msra.mxu0 %v448
        %465 = vmatpush.bf16.msra.mxu0 %v447
        %466 = vmatmul.bf16.gmra.mxu0 %v456
        %v467 = vpop.f32.mrf.mxu0
        %v468 = vadd.f32 %v254, %v467
        %v469 = vpop.f32.mrf.mxu0
        %470 = vdwg.mxu0
        %v471 = vmax.f32 %v468, 0.0
        %v472 = vpack.c.bf16 %v471, %v471
        %474 = vrot.lane.b32.xlu0 %v472, 24
        %v475 = vpop.permute.xlu0 %474
        %s477 = scalar_lea.vmem [#allocation2], 12
        %478 = vst.msk [vmem:[%s477] sm:$0x3] %vm303, %v475
        %v479 = vld [vmem:[%s222] sm:$0x3]
        %s480 = scalar_lea.vmem %s1, 128
        %v481 = vld [vmem:[%s480] sm:$0xf]
        %v482 = vld [vmem:[%s480 + $0x4] sm:$0xf]
        %v483 = vld [vmem:[%s480 + $0x8] sm:$0xf]
        %v484 = vld [vmem:[%s480 + $0xc] sm:$0xf]
        %v485 = vld [vmem:[%s480 + $0x10] sm:$0xf]
        %v486 = vld [vmem:[%s480 + $0x14] sm:$0xf]
        %v487 = vld [vmem:[%s480 + $0x18] sm:$0xf]
        %v488 = vld [vmem:[%s480 + $0x1c] sm:$0xf]
        %v489 = vld [vmem:[%s222] sm:$0x7]
        %s490 = scalar_lea.vmem %s1, 160
        %v491 = vld [vmem:[%s490] sm:$0xf]
        %v492 = vld [vmem:[%s490 + $0x4] sm:$0xf]
        %v493 = vld [vmem:[%s490 + $0x8] sm:$0xf]
        %v494 = vld [vmem:[%s490 + $0xc] sm:$0xf]
        %v495 = vld [vmem:[%s490 + $0x10] sm:$0xf]
        %v496 = vld [vmem:[%s490 + $0x14] sm:$0xf]
        %v497 = vld [vmem:[%s490 + $0x18] sm:$0xf]
        %v498 = vld [vmem:[%s490 + $0x1c] sm:$0xf]
        %v500 = vunpack.c.l.b16 %v489
        %v501 = vpack.c.b16 %v500, %v500
        %v503 = vshrl.u32 %v501, 16
        %v505 = vshll.u32 %v501, 16
        %v507 = vrot.slane %v505, 1
        %v508 = vor.u32 %v503, %v507
        %v517 = vunpack.c.l.b16 %v491
        %v518 = vunpack.c.l.b16 %v492
        %v519 = vunpack.c.l.b16 %v493
        %v520 = vunpack.c.l.b16 %v494
        %v521 = vunpack.c.l.b16 %v495
        %v522 = vunpack.c.l.b16 %v496
        %v523 = vunpack.c.l.b16 %v497
        %v524 = vunpack.c.l.b16 %v498
        %v525 = vpack.c.b16 %v518, %v517
        %v526 = vpack.c.b16 %v520, %v519
        %v527 = vpack.c.b16 %v522, %v521
        %v528 = vpack.c.b16 %v524, %v523
        %v534 = vsel %vm280, %v508, 0
        %536 = vmatpush.bf16.msra.mxu0 0
        %537 = vmatpush.bf16.msra.mxu0 0
        %538 = vmatpush.bf16.msra.mxu0 0
        %539 = vmatpush.bf16.msra.mxu0 0
        %540 = vmatpush.bf16.msra.mxu0 %v528
        %541 = vmatpush.bf16.msra.mxu0 %v527
        %542 = vmatpush.bf16.msra.mxu0 %v526
        %543 = vmatpush.bf16.msra.mxu0 %v525
        %544 = vmatmul.bf16.gmra.mxu0 %v534
        %v545 = vpop.f32.mrf.mxu0
        %v546 = vadd.f32 0.0, %v545
        %v547 = vpop.f32.mrf.mxu0
        %548 = vdwg.mxu0
        %v557 = vunpack.c.l.b16 %v481
        %v558 = vunpack.c.l.b16 %v482
        %v559 = vunpack.c.l.b16 %v483
        %v560 = vunpack.c.l.b16 %v484
        %v561 = vunpack.c.l.b16 %v485
        %v562 = vunpack.c.l.b16 %v486
        %v563 = vunpack.c.l.b16 %v487
        %v564 = vunpack.c.l.b16 %v488
        %v565 = vpack.c.b16 %v558, %v557
        %v566 = vpack.c.b16 %v560, %v559
        %v567 = vpack.c.b16 %v562, %v561
        %v568 = vpack.c.b16 %v564, %v563
        %v574 = vsel %vm280, %v479, 0
        %576 = vmatpush.bf16.msra.mxu0 0
        %577 = vmatpush.bf16.msra.mxu0 0
        %578 = vmatpush.bf16.msra.mxu0 0
        %579 = vmatpush.bf16.msra.mxu0 0
        %580 = vmatpush.bf16.msra.mxu0 %v568
        %581 = vmatpush.bf16.msra.mxu0 %v567
        %582 = vmatpush.bf16.msra.mxu0 %v566
        %583 = vmatpush.bf16.msra.mxu0 %v565
        %584 = vmatmul.bf16.gmra.mxu0 %v574
        %v585 = vpop.f32.mrf.mxu0
        %v586 = vadd.f32 %v546, %v585
        %v587 = vpop.f32.mrf.mxu0
        %588 = vdwg.mxu0
        %v589 = vadd.f32 %v586, %v254
        %v590 = vmax.f32 %v589, 0.0
        %v591 = vpack.c.bf16 %v590, %v590
        %v593 = vshrl.u32 %v591, 16
        %v595 = vrot.slane %v593, 7
        %v596 = vshll.u32 %v591, 16
        %v598 = vor.u32 %v595, %v596
        %599 = vrot.lane.b32.xlu0 %v598, 16
        %v600 = vpop.permute.xlu0 %599
        %vm602 = vcmask 190592
        %vm603 = vsmask.f32 2306
        %vm604 = vmand %vm602, %vm603
        %v605 = vld [vmem:[#allocation2] sm:$0x7]
        %v606 = vsel %vm604, %v600, %v605
        %607 = vst [vmem:[#allocation2] sm:$0x7] %v606
        %v608 = vld [vmem:[%s305] sm:$0x3]
        %v609 = vld [vmem:[%s480] sm:$0xf]
        %v610 = vld [vmem:[%s480 + $0x4] sm:$0xf]
        %v611 = vld [vmem:[%s480 + $0x8] sm:$0xf]
        %v612 = vld [vmem:[%s480 + $0xc] sm:$0xf]
        %v613 = vld [vmem:[%s480 + $0x10] sm:$0xf]
        %v614 = vld [vmem:[%s480 + $0x14] sm:$0xf]
        %v615 = vld [vmem:[%s480 + $0x18] sm:$0xf]
        %v616 = vld [vmem:[%s480 + $0x1c] sm:$0xf]
        %v617 = vld [vmem:[%s305] sm:$0x7]
        %v618 = vld [vmem:[%s490] sm:$0xf]
        %v619 = vld [vmem:[%s490 + $0x4] sm:$0xf]
        %v620 = vld [vmem:[%s490 + $0x8] sm:$0xf]
        %v621 = vld [vmem:[%s490 + $0xc] sm:$0xf]
        %v622 = vld [vmem:[%s490 + $0x10] sm:$0xf]
        %v623 = vld [vmem:[%s490 + $0x14] sm:$0xf]
        %v624 = vld [vmem:[%s490 + $0x18] sm:$0xf]
        %v625 = vld [vmem:[%s490 + $0x1c] sm:$0xf]
        %v627 = vunpack.c.l.b16 %v617
        %v628 = vpack.c.b16 %v627, %v627
        %v630 = vshrl.u32 %v628, 16
        %v632 = vshll.u32 %v628, 16
        %v634 = vrot.slane %v632, 1
        %v635 = vor.u32 %v630, %v634
        %v644 = vunpack.c.l.b16 %v618
        %v645 = vunpack.c.l.b16 %v619
        %v646 = vunpack.c.l.b16 %v620
        %v647 = vunpack.c.l.b16 %v621
        %v648 = vunpack.c.l.b16 %v622
        %v649 = vunpack.c.l.b16 %v623
        %v650 = vunpack.c.l.b16 %v624
        %v651 = vunpack.c.l.b16 %v625
        %v652 = vpack.c.b16 %v645, %v644
        %v653 = vpack.c.b16 %v647, %v646
        %v654 = vpack.c.b16 %v649, %v648
        %v655 = vpack.c.b16 %v651, %v650
        %v661 = vsel %vm280, %v635, 0
        %663 = vmatpush.bf16.msra.mxu0 0
        %664 = vmatpush.bf16.msra.mxu0 0
        %665 = vmatpush.bf16.msra.mxu0 0
        %666 = vmatpush.bf16.msra.mxu0 0
        %667 = vmatpush.bf16.msra.mxu0 %v655
        %668 = vmatpush.bf16.msra.mxu0 %v654
        %669 = vmatpush.bf16.msra.mxu0 %v653
        %670 = vmatpush.bf16.msra.mxu0 %v652
        %671 = vmatmul.bf16.gmra.mxu0 %v661
        %v672 = vpop.f32.mrf.mxu0
        %v673 = vadd.f32 0.0, %v672
        %v674 = vpop.f32.mrf.mxu0
        %675 = vdwg.mxu0
        %v684 = vunpack.c.l.b16 %v609
        %v685 = vunpack.c.l.b16 %v610
        %v686 = vunpack.c.l.b16 %v611
        %v687 = vunpack.c.l.b16 %v612
        %v688 = vunpack.c.l.b16 %v613
        %v689 = vunpack.c.l.b16 %v614
        %v690 = vunpack.c.l.b16 %v615
        %v691 = vunpack.c.l.b16 %v616
        %v692 = vpack.c.b16 %v685, %v684
        %v693 = vpack.c.b16 %v687, %v686
        %v694 = vpack.c.b16 %v689, %v688
        %v695 = vpack.c.b16 %v691, %v690
        %v701 = vsel %vm280, %v608, 0
        %703 = vmatpush.bf16.msra.mxu0 0
        %704 = vmatpush.bf16.msra.mxu0 0
        %705 = vmatpush.bf16.msra.mxu0 0
        %706 = vmatpush.bf16.msra.mxu0 0
        %707 = vmatpush.bf16.msra.mxu0 %v695
        %708 = vmatpush.bf16.msra.mxu0 %v694
        %709 = vmatpush.bf16.msra.mxu0 %v693
        %710 = vmatpush.bf16.msra.mxu0 %v692
        %711 = vmatmul.bf16.gmra.mxu0 %v701
        %v712 = vpop.f32.mrf.mxu0
        %v713 = vadd.f32 %v673, %v712
        %v714 = vpop.f32.mrf.mxu0
        %715 = vdwg.mxu0
        %v716 = vadd.f32 %v713, %v254
        %v717 = vmax.f32 %v716, 0.0
        %v718 = vpack.c.bf16 %v717, %v717
        %v720 = vshrl.u32 %v718, 16
        %v722 = vrot.slane %v720, 7
        %v723 = vshll.u32 %v718, 16
        %v725 = vor.u32 %v722, %v723
        %726 = vrot.lane.b32.xlu0 %v725, 16
        %v727 = vpop.permute.xlu0 %726
        %v729 = vld [vmem:[%s361] sm:$0x7]
        %v730 = vsel %vm604, %v727, %v729
        %731 = vst [vmem:[%s361] sm:$0x7] %v730
        %v732 = vld [vmem:[%s363] sm:$0x3]
        %v733 = vld [vmem:[%s480] sm:$0xf]
        %v734 = vld [vmem:[%s480 + $0x4] sm:$0xf]
        %v735 = vld [vmem:[%s480 + $0x8] sm:$0xf]
        %v736 = vld [vmem:[%s480 + $0xc] sm:$0xf]
        %v737 = vld [vmem:[%s480 + $0x10] sm:$0xf]
        %v738 = vld [vmem:[%s480 + $0x14] sm:$0xf]
        %v739 = vld [vmem:[%s480 + $0x18] sm:$0xf]
        %v740 = vld [vmem:[%s480 + $0x1c] sm:$0xf]
        %v741 = vld [vmem:[%s363] sm:$0x7]
        %v742 = vld [vmem:[%s490] sm:$0xf]
        %v743 = vld [vmem:[%s490 + $0x4] sm:$0xf]
        %v744 = vld [vmem:[%s490 + $0x8] sm:$0xf]
        %v745 = vld [vmem:[%s490 + $0xc] sm:$0xf]
        %v746 = vld [vmem:[%s490 + $0x10] sm:$0xf]
        %v747 = vld [vmem:[%s490 + $0x14] sm:$0xf]
        %v748 = vld [vmem:[%s490 + $0x18] sm:$0xf]
        %v749 = vld [vmem:[%s490 + $0x1c] sm:$0xf]
        %v751 = vunpack.c.l.b16 %v741
        %v752 = vpack.c.b16 %v751, %v751
        %v754 = vshrl.u32 %v752, 16
        %v756 = vshll.u32 %v752, 16
        %v758 = vrot.slane %v756, 1
        %v759 = vor.u32 %v754, %v758
        %v768 = vunpack.c.l.b16 %v742
        %v769 = vunpack.c.l.b16 %v743
        %v770 = vunpack.c.l.b16 %v744
        %v771 = vunpack.c.l.b16 %v745
        %v772 = vunpack.c.l.b16 %v746
        %v773 = vunpack.c.l.b16 %v747
        %v774 = vunpack.c.l.b16 %v748
        %v775 = vunpack.c.l.b16 %v749
        %v776 = vpack.c.b16 %v769, %v768
        %v777 = vpack.c.b16 %v771, %v770
        %v778 = vpack.c.b16 %v773, %v772
        %v779 = vpack.c.b16 %v775, %v774
        %v785 = vsel %vm280, %v759, 0
        %787 = vmatpush.bf16.msra.mxu0 0
        %788 = vmatpush.bf16.msra.mxu0 0
        %789 = vmatpush.bf16.msra.mxu0 0
        %790 = vmatpush.bf16.msra.mxu0 0
        %791 = vmatpush.bf16.msra.mxu0 %v779
        %792 = vmatpush.bf16.msra.mxu0 %v778
        %793 = vmatpush.bf16.msra.mxu0 %v777
        %794 = vmatpush.bf16.msra.mxu0 %v776
        %795 = vmatmul.bf16.gmra.mxu0 %v785
        %v796 = vpop.f32.mrf.mxu0
        %v797 = vadd.f32 0.0, %v796
        %v798 = vpop.f32.mrf.mxu0
        %799 = vdwg.mxu0
        %v808 = vunpack.c.l.b16 %v733
        %v809 = vunpack.c.l.b16 %v734
        %v810 = vunpack.c.l.b16 %v735
        %v811 = vunpack.c.l.b16 %v736
        %v812 = vunpack.c.l.b16 %v737
        %v813 = vunpack.c.l.b16 %v738
        %v814 = vunpack.c.l.b16 %v739
        %v815 = vunpack.c.l.b16 %v740
        %v816 = vpack.c.b16 %v809, %v808
        %v817 = vpack.c.b16 %v811, %v810
        %v818 = vpack.c.b16 %v813, %v812
        %v819 = vpack.c.b16 %v815, %v814
        %v825 = vsel %vm280, %v732, 0
        %827 = vmatpush.bf16.msra.mxu0 0
        %828 = vmatpush.bf16.msra.mxu0 0
        %829 = vmatpush.bf16.msra.mxu0 0
        %830 = vmatpush.bf16.msra.mxu0 0
        %831 = vmatpush.bf16.msra.mxu0 %v819
        %832 = vmatpush.bf16.msra.mxu0 %v818
        %833 = vmatpush.bf16.msra.mxu0 %v817
        %834 = vmatpush.bf16.msra.mxu0 %v816
        %835 = vmatmul.bf16.gmra.mxu0 %v825
        %v836 = vpop.f32.mrf.mxu0
        %v837 = vadd.f32 %v797, %v836
        %v838 = vpop.f32.mrf.mxu0
        %839 = vdwg.mxu0
        %v840 = vadd.f32 %v837, %v254
        %v841 = vmax.f32 %v840, 0.0
        %v842 = vpack.c.bf16 %v841, %v841
        %v844 = vshrl.u32 %v842, 16
        %v846 = vrot.slane %v844, 7
        %v847 = vshll.u32 %v842, 16
        %v849 = vor.u32 %v846, %v847
        %850 = vrot.lane.b32.xlu0 %v849, 16
        %v851 = vpop.permute.xlu0 %850
        %v853 = vld [vmem:[%s419] sm:$0x7]
        %v854 = vsel %vm604, %v851, %v853
        %855 = vst [vmem:[%s419] sm:$0x7] %v854
        %v856 = vld [vmem:[%s421] sm:$0x3]
        %v857 = vld [vmem:[%s480] sm:$0xf]
        %v858 = vld [vmem:[%s480 + $0x4] sm:$0xf]
        %v859 = vld [vmem:[%s480 + $0x8] sm:$0xf]
        %v860 = vld [vmem:[%s480 + $0xc] sm:$0xf]
        %v861 = vld [vmem:[%s480 + $0x10] sm:$0xf]
        %v862 = vld [vmem:[%s480 + $0x14] sm:$0xf]
        %v863 = vld [vmem:[%s480 + $0x18] sm:$0xf]
        %v864 = vld [vmem:[%s480 + $0x1c] sm:$0xf]
        %v865 = vld [vmem:[%s421] sm:$0x7]
        %v866 = vld [vmem:[%s490] sm:$0xf]
        %v867 = vld [vmem:[%s490 + $0x4] sm:$0xf]
        %v868 = vld [vmem:[%s490 + $0x8] sm:$0xf]
        %v869 = vld [vmem:[%s490 + $0xc] sm:$0xf]
        %v870 = vld [vmem:[%s490 + $0x10] sm:$0xf]
        %v871 = vld [vmem:[%s490 + $0x14] sm:$0xf]
        %v872 = vld [vmem:[%s490 + $0x18] sm:$0xf]
        %v873 = vld [vmem:[%s490 + $0x1c] sm:$0xf]
        %v875 = vunpack.c.l.b16 %v865
        %v876 = vpack.c.b16 %v875, %v875
        %v878 = vshrl.u32 %v876, 16
        %v880 = vshll.u32 %v876, 16
        %v882 = vrot.slane %v880, 1
        %v883 = vor.u32 %v878, %v882
        %v892 = vunpack.c.l.b16 %v866
        %v893 = vunpack.c.l.b16 %v867
        %v894 = vunpack.c.l.b16 %v868
        %v895 = vunpack.c.l.b16 %v869
        %v896 = vunpack.c.l.b16 %v870
        %v897 = vunpack.c.l.b16 %v871
        %v898 = vunpack.c.l.b16 %v872
        %v899 = vunpack.c.l.b16 %v873
        %v900 = vpack.c.b16 %v893, %v892
        %v901 = vpack.c.b16 %v895, %v894
        %v902 = vpack.c.b16 %v897, %v896
        %v903 = vpack.c.b16 %v899, %v898
        %v909 = vsel %vm280, %v883, 0
        %911 = vmatpush.bf16.msra.mxu0 0
        %912 = vmatpush.bf16.msra.mxu0 0
        %913 = vmatpush.bf16.msra.mxu0 0
        %914 = vmatpush.bf16.msra.mxu0 0
        %915 = vmatpush.bf16.msra.mxu0 %v903
        %916 = vmatpush.bf16.msra.mxu0 %v902
        %917 = vmatpush.bf16.msra.mxu0 %v901
        %918 = vmatpush.bf16.msra.mxu0 %v900
        %919 = vmatmul.bf16.gmra.mxu0 %v909
        %v920 = vpop.f32.mrf.mxu0
        %v921 = vadd.f32 0.0, %v920
        %v922 = vpop.f32.mrf.mxu0
        %923 = vdwg.mxu0
        %v932 = vunpack.c.l.b16 %v857
        %v933 = vunpack.c.l.b16 %v858
        %v934 = vunpack.c.l.b16 %v859
        %v935 = vunpack.c.l.b16 %v860
        %v936 = vunpack.c.l.b16 %v861
        %v937 = vunpack.c.l.b16 %v862
        %v938 = vunpack.c.l.b16 %v863
        %v939 = vunpack.c.l.b16 %v864
        %v940 = vpack.c.b16 %v933, %v932
        %v941 = vpack.c.b16 %v935, %v934
        %v942 = vpack.c.b16 %v937, %v936
        %v943 = vpack.c.b16 %v939, %v938
        %v949 = vsel %vm280, %v856, 0
        %951 = vmatpush.bf16.msra.mxu0 0
        %952 = vmatpush.bf16.msra.mxu0 0
        %953 = vmatpush.bf16.msra.mxu0 0
        %954 = vmatpush.bf16.msra.mxu0 0
        %955 = vmatpush.bf16.msra.mxu0 %v943
        %956 = vmatpush.bf16.msra.mxu0 %v942
        %957 = vmatpush.bf16.msra.mxu0 %v941
        %958 = vmatpush.bf16.msra.mxu0 %v940
        %959 = vmatmul.bf16.gmra.mxu0 %v949
        %v960 = vpop.f32.mrf.mxu0
        %v961 = vadd.f32 %v921, %v960
        %v962 = vpop.f32.mrf.mxu0
        %963 = vdwg.mxu0
        %v964 = vadd.f32 %v961, %v254
        %v965 = vmax.f32 %v964, 0.0
        %v966 = vpack.c.bf16 %v965, %v965
        %v968 = vshrl.u32 %v966, 16
        %v970 = vrot.slane %v968, 7
        %v971 = vshll.u32 %v966, 16
        %v973 = vor.u32 %v970, %v971
        %974 = vrot.lane.b32.xlu0 %v973, 16
        %v975 = vpop.permute.xlu0 %974
        %v977 = vld [vmem:[%s477] sm:$0x7]
        %v978 = vsel %vm604, %v975, %v977
        %979 = vst [vmem:[%s477] sm:$0x7] %v978
        %v980 = vld [vmem:[%s222] sm:$0x3]
        %s981 = scalar_lea.vmem %s1, 256
        %v982 = vld [vmem:[%s981] sm:$0xf]
        %v983 = vld [vmem:[%s981 + $0x4] sm:$0xf]
        %v984 = vld [vmem:[%s981 + $0x8] sm:$0xf]
        %v985 = vld [vmem:[%s981 + $0xc] sm:$0xf]
        %v986 = vld [vmem:[%s981 + $0x10] sm:$0xf]
        %v987 = vld [vmem:[%s981 + $0x14] sm:$0xf]
        %v988 = vld [vmem:[%s981 + $0x18] sm:$0xf]
        %v989 = vld [vmem:[%s981 + $0x1c] sm:$0xf]
        %v990 = vld [vmem:[%s305] sm:$0x3]
        %s991 = scalar_lea.vmem %s1, 320
        %v992 = vld [vmem:[%s991] sm:$0xf]
        %v993 = vld [vmem:[%s991 + $0x4] sm:$0xf]
        %v994 = vld [vmem:[%s991 + $0x8] sm:$0xf]
        %v995 = vld [vmem:[%s991 + $0xc] sm:$0xf]
        %v996 = vld [vmem:[%s991 + $0x10] sm:$0xf]
        %v997 = vld [vmem:[%s991 + $0x14] sm:$0xf]
        %v998 = vld [vmem:[%s991 + $0x18] sm:$0xf]
        %v999 = vld [vmem:[%s991 + $0x1c] sm:$0xf]
        %v1008 = vunpack.c.l.b16 %v992
        %v1009 = vunpack.c.l.b16 %v993
        %v1010 = vunpack.c.l.b16 %v994
        %v1011 = vunpack.c.l.b16 %v995
        %v1012 = vunpack.c.l.b16 %v996
        %v1013 = vunpack.c.l.b16 %v997
        %v1014 = vunpack.c.l.b16 %v998
        %v1015 = vunpack.c.l.b16 %v999
        %v1016 = vpack.c.b16 %v1009, %v1008
        %v1017 = vpack.c.b16 %v1011, %v1010
        %v1018 = vpack.c.b16 %v1013, %v1012
        %v1019 = vpack.c.b16 %v1015, %v1014
        %v1025 = vsel %vm280, %v990, 0
        %1027 = vmatpush.bf16.msra.mxu0 0
        %1028 = vmatpush.bf16.msra.mxu0 0
        %1029 = vmatpush.bf16.msra.mxu0 0
        %1030 = vmatpush.bf16.msra.mxu0 0
        %1031 = vmatpush.bf16.msra.mxu0 %v1019
        %1032 = vmatpush.bf16.msra.mxu0 %v1018
        %1033 = vmatpush.bf16.msra.mxu0 %v1017
        %1034 = vmatpush.bf16.msra.mxu0 %v1016
        %1035 = vmatmul.bf16.gmra.mxu0 %v1025
        %v1036 = vpop.f32.mrf.mxu0
        %v1037 = vadd.f32 0.0, %v1036
        %v1038 = vpop.f32.mrf.mxu0
        %1039 = vdwg.mxu0
        %v1048 = vunpack.c.l.b16 %v982
        %v1049 = vunpack.c.l.b16 %v983
        %v1050 = vunpack.c.l.b16 %v984
        %v1051 = vunpack.c.l.b16 %v985
        %v1052 = vunpack.c.l.b16 %v986
        %v1053 = vunpack.c.l.b16 %v987
        %v1054 = vunpack.c.l.b16 %v988
        %v1055 = vunpack.c.l.b16 %v989
        %v1056 = vpack.c.b16 %v1049, %v1048
        %v1057 = vpack.c.b16 %v1051, %v1050
        %v1058 = vpack.c.b16 %v1053, %v1052
        %v1059 = vpack.c.b16 %v1055, %v1054
        %v1065 = vsel %vm280, %v980, 0
        %1067 = vmatpush.bf16.msra.mxu0 0
        %1068 = vmatpush.bf16.msra.mxu0 0
        %1069 = vmatpush.bf16.msra.mxu0 0
        %1070 = vmatpush.bf16.msra.mxu0 0
        %1071 = vmatpush.bf16.msra.mxu0 %v1059
        %1072 = vmatpush.bf16.msra.mxu0 %v1058
        %1073 = vmatpush.bf16.msra.mxu0 %v1057
        %1074 = vmatpush.bf16.msra.mxu0 %v1056
        %1075 = vmatmul.bf16.gmra.mxu0 %v1065
        %v1076 = vpop.f32.mrf.mxu0
        %v1077 = vadd.f32 %v1037, %v1076
        %v1078 = vpop.f32.mrf.mxu0
        %1079 = vdwg.mxu0
        %v1080 = vadd.f32 %v1077, %v254
        %v1081 = vmax.f32 %v1080, 0.0
        %v1082 = vpack.c.bf16 %v1081, %v1081
        %1084 = vrot.lane.b32.xlu0 %v1082, 8
        %v1085 = vpop.permute.xlu0 %1084
        %vm1087 = vcmask 123968
        %1088 = vst.msk [vmem:[%s361] sm:$0x3] %vm1087, %v1085
        %v1089 = vld [vmem:[%s305] sm:$0x3]
        %v1090 = vld [vmem:[%s981] sm:$0xf]
        %v1091 = vld [vmem:[%s981 + $0x4] sm:$0xf]
        %v1092 = vld [vmem:[%s981 + $0x8] sm:$0xf]
        %v1093 = vld [vmem:[%s981 + $0xc] sm:$0xf]
        %v1094 = vld [vmem:[%s981 + $0x10] sm:$0xf]
        %v1095 = vld [vmem:[%s981 + $0x14] sm:$0xf]
        %v1096 = vld [vmem:[%s981 + $0x18] sm:$0xf]
        %v1097 = vld [vmem:[%s981 + $0x1c] sm:$0xf]
        %v1098 = vld [vmem:[%s363] sm:$0x3]
        %v1099 = vld [vmem:[%s991] sm:$0xf]
        %v1100 = vld [vmem:[%s991 + $0x4] sm:$0xf]
        %v1101 = vld [vmem:[%s991 + $0x8] sm:$0xf]
        %v1102 = vld [vmem:[%s991 + $0xc] sm:$0xf]
        %v1103 = vld [vmem:[%s991 + $0x10] sm:$0xf]
        %v1104 = vld [vmem:[%s991 + $0x14] sm:$0xf]
        %v1105 = vld [vmem:[%s991 + $0x18] sm:$0xf]
        %v1106 = vld [vmem:[%s991 + $0x1c] sm:$0xf]
        %v1115 = vunpack.c.l.b16 %v1099
        %v1116 = vunpack.c.l.b16 %v1100
        %v1117 = vunpack.c.l.b16 %v1101
        %v1118 = vunpack.c.l.b16 %v1102
        %v1119 = vunpack.c.l.b16 %v1103
        %v1120 = vunpack.c.l.b16 %v1104
        %v1121 = vunpack.c.l.b16 %v1105
        %v1122 = vunpack.c.l.b16 %v1106
        %v1123 = vpack.c.b16 %v1116, %v1115
        %v1124 = vpack.c.b16 %v1118, %v1117
        %v1125 = vpack.c.b16 %v1120, %v1119
        %v1126 = vpack.c.b16 %v1122, %v1121
        %v1132 = vsel %vm280, %v1098, 0
        %1134 = vmatpush.bf16.msra.mxu0 0
        %1135 = vmatpush.bf16.msra.mxu0 0
        %1136 = vmatpush.bf16.msra.mxu0 0
        %1137 = vmatpush.bf16.msra.mxu0 0
        %1138 = vmatpush.bf16.msra.mxu0 %v1126
        %1139 = vmatpush.bf16.msra.mxu0 %v1125
        %1140 = vmatpush.bf16.msra.mxu0 %v1124
        %1141 = vmatpush.bf16.msra.mxu0 %v1123
        %1142 = vmatmul.bf16.gmra.mxu0 %v1132
        %v1143 = vpop.f32.mrf.mxu0
        %v1144 = vadd.f32 0.0, %v1143
        %v1145 = vpop.f32.mrf.mxu0
        %1146 = vdwg.mxu0
        %v1155 = vunpack.c.l.b16 %v1090
        %v1156 = vunpack.c.l.b16 %v1091
        %v1157 = vunpack.c.l.b16 %v1092
        %v1158 = vunpack.c.l.b16 %v1093
        %v1159 = vunpack.c.l.b16 %v1094
        %v1160 = vunpack.c.l.b16 %v1095
        %v1161 = vunpack.c.l.b16 %v1096
        %v1162 = vunpack.c.l.b16 %v1097
        %v1163 = vpack.c.b16 %v1156, %v1155
        %v1164 = vpack.c.b16 %v1158, %v1157
        %v1165 = vpack.c.b16 %v1160, %v1159
        %v1166 = vpack.c.b16 %v1162, %v1161
        %v1172 = vsel %vm280, %v1089, 0
        %1174 = vmatpush.bf16.msra.mxu0 0
        %1175 = vmatpush.bf16.msra.mxu0 0
        %1176 = vmatpush.bf16.msra.mxu0 0
        %1177 = vmatpush.bf16.msra.mxu0 0
        %1178 = vmatpush.bf16.msra.mxu0 %v1166
        %1179 = vmatpush.bf16.msra.mxu0 %v1165
        %1180 = vmatpush.bf16.msra.mxu0 %v1164
        %1181 = vmatpush.bf16.msra.mxu0 %v1163
        %1182 = vmatmul.bf16.gmra.mxu0 %v1172
        %v1183 = vpop.f32.mrf.mxu0
        %v1184 = vadd.f32 %v1144, %v1183
        %v1185 = vpop.f32.mrf.mxu0
        %1186 = vdwg.mxu0
        %v1187 = vadd.f32 %v1184, %v254
        %v1188 = vmax.f32 %v1187, 0.0
        %v1189 = vpack.c.bf16 %v1188, %v1188
        %1191 = vrot.lane.b32.xlu0 %v1189, 8
        %v1192 = vpop.permute.xlu0 %1191
        %1194 = vst.msk [vmem:[%s419] sm:$0x3] %vm1087, %v1192
        %v1195 = vld [vmem:[%s363] sm:$0x3]
        %v1196 = vld [vmem:[%s981] sm:$0xf]
        %v1197 = vld [vmem:[%s981 + $0x4] sm:$0xf]
        %v1198 = vld [vmem:[%s981 + $0x8] sm:$0xf]
        %v1199 = vld [vmem:[%s981 + $0xc] sm:$0xf]
        %v1200 = vld [vmem:[%s981 + $0x10] sm:$0xf]
        %v1201 = vld [vmem:[%s981 + $0x14] sm:$0xf]
        %v1202 = vld [vmem:[%s981 + $0x18] sm:$0xf]
        %v1203 = vld [vmem:[%s981 + $0x1c] sm:$0xf]
        %v1204 = vld [vmem:[%s421] sm:$0x3]
        %v1205 = vld [vmem:[%s991] sm:$0xf]
        %v1206 = vld [vmem:[%s991 + $0x4] sm:$0xf]
        %v1207 = vld [vmem:[%s991 + $0x8] sm:$0xf]
        %v1208 = vld [vmem:[%s991 + $0xc] sm:$0xf]
        %v1209 = vld [vmem:[%s991 + $0x10] sm:$0xf]
        %v1210 = vld [vmem:[%s991 + $0x14] sm:$0xf]
        %v1211 = vld [vmem:[%s991 + $0x18] sm:$0xf]
        %v1212 = vld [vmem:[%s991 + $0x1c] sm:$0xf]
        %v1221 = vunpack.c.l.b16 %v1205
        %v1222 = vunpack.c.l.b16 %v1206
        %v1223 = vunpack.c.l.b16 %v1207
        %v1224 = vunpack.c.l.b16 %v1208
        %v1225 = vunpack.c.l.b16 %v1209
        %v1226 = vunpack.c.l.b16 %v1210
        %v1227 = vunpack.c.l.b16 %v1211
        %v1228 = vunpack.c.l.b16 %v1212
        %v1229 = vpack.c.b16 %v1222, %v1221
        %v1230 = vpack.c.b16 %v1224, %v1223
        %v1231 = vpack.c.b16 %v1226, %v1225
        %v1232 = vpack.c.b16 %v1228, %v1227
        %v1238 = vsel %vm280, %v1204, 0
        %1240 = vmatpush.bf16.msra.mxu0 0
        %1241 = vmatpush.bf16.msra.mxu0 0
        %1242 = vmatpush.bf16.msra.mxu0 0
        %1243 = vmatpush.bf16.msra.mxu0 0
        %1244 = vmatpush.bf16.msra.mxu0 %v1232
        %1245 = vmatpush.bf16.msra.mxu0 %v1231
        %1246 = vmatpush.bf16.msra.mxu0 %v1230
        %1247 = vmatpush.bf16.msra.mxu0 %v1229
        %1248 = vmatmul.bf16.gmra.mxu0 %v1238
        %v1249 = vpop.f32.mrf.mxu0
        %v1250 = vadd.f32 0.0, %v1249
        %v1251 = vpop.f32.mrf.mxu0
        %1252 = vdwg.mxu0
        %v1261 = vunpack.c.l.b16 %v1196
        %v1262 = vunpack.c.l.b16 %v1197
        %v1263 = vunpack.c.l.b16 %v1198
        %v1264 = vunpack.c.l.b16 %v1199
        %v1265 = vunpack.c.l.b16 %v1200
        %v1266 = vunpack.c.l.b16 %v1201
        %v1267 = vunpack.c.l.b16 %v1202
        %v1268 = vunpack.c.l.b16 %v1203
        %v1269 = vpack.c.b16 %v1262, %v1261
        %v1270 = vpack.c.b16 %v1264, %v1263
        %v1271 = vpack.c.b16 %v1266, %v1265
        %v1272 = vpack.c.b16 %v1268, %v1267
        %v1278 = vsel %vm280, %v1195, 0
        %1280 = vmatpush.bf16.msra.mxu0 0
        %1281 = vmatpush.bf16.msra.mxu0 0
        %1282 = vmatpush.bf16.msra.mxu0 0
        %1283 = vmatpush.bf16.msra.mxu0 0
        %1284 = vmatpush.bf16.msra.mxu0 %v1272
        %1285 = vmatpush.bf16.msra.mxu0 %v1271
        %1286 = vmatpush.bf16.msra.mxu0 %v1270
        %1287 = vmatpush.bf16.msra.mxu0 %v1269
        %1288 = vmatmul.bf16.gmra.mxu0 %v1278
        %v1289 = vpop.f32.mrf.mxu0
        %v1290 = vadd.f32 %v1250, %v1289
        %v1291 = vpop.f32.mrf.mxu0
        %1292 = vdwg.mxu0
        %v1293 = vadd.f32 %v1290, %v254
        %v1294 = vmax.f32 %v1293, 0.0
        %v1295 = vpack.c.bf16 %v1294, %v1294
        %1297 = vrot.lane.b32.xlu0 %v1295, 8
        %v1298 = vpop.permute.xlu0 %1297
        %1300 = vst.msk [vmem:[%s477] sm:$0x3] %vm1087, %v1298
        %v1301 = vld [vmem:[%s421] sm:$0x3]
        %v1302 = vld [vmem:[%s981] sm:$0xf]
        %v1303 = vld [vmem:[%s981 + $0x4] sm:$0xf]
        %v1304 = vld [vmem:[%s981 + $0x8] sm:$0xf]
        %v1305 = vld [vmem:[%s981 + $0xc] sm:$0xf]
        %v1306 = vld [vmem:[%s981 + $0x10] sm:$0xf]
        %v1307 = vld [vmem:[%s981 + $0x14] sm:$0xf]
        %v1308 = vld [vmem:[%s981 + $0x18] sm:$0xf]
        %v1309 = vld [vmem:[%s981 + $0x1c] sm:$0xf]
        %s1310 = scalar_lea.vmem %s222, 16
        %v1311 = vld [vmem:[%s1310] sm:$0x3]
        %v1312 = vld [vmem:[%s991] sm:$0xf]
        %v1313 = vld [vmem:[%s991 + $0x4] sm:$0xf]
        %v1314 = vld [vmem:[%s991 + $0x8] sm:$0xf]
        %v1315 = vld [vmem:[%s991 + $0xc] sm:$0xf]
        %v1316 = vld [vmem:[%s991 + $0x10] sm:$0xf]
        %v1317 = vld [vmem:[%s991 + $0x14] sm:$0xf]
        %v1318 = vld [vmem:[%s991 + $0x18] sm:$0xf]
        %v1319 = vld [vmem:[%s991 + $0x1c] sm:$0xf]
        %v1328 = vunpack.c.l.b16 %v1312
        %v1329 = vunpack.c.l.b16 %v1313
        %v1330 = vunpack.c.l.b16 %v1314
        %v1331 = vunpack.c.l.b16 %v1315
        %v1332 = vunpack.c.l.b16 %v1316
        %v1333 = vunpack.c.l.b16 %v1317
        %v1334 = vunpack.c.l.b16 %v1318
        %v1335 = vunpack.c.l.b16 %v1319
        %v1336 = vpack.c.b16 %v1329, %v1328
        %v1337 = vpack.c.b16 %v1331, %v1330
        %v1338 = vpack.c.b16 %v1333, %v1332
        %v1339 = vpack.c.b16 %v1335, %v1334
        %v1345 = vsel %vm280, %v1311, 0
        %1347 = vmatpush.bf16.msra.mxu0 0
        %1348 = vmatpush.bf16.msra.mxu0 0
        %1349 = vmatpush.bf16.msra.mxu0 0
        %1350 = vmatpush.bf16.msra.mxu0 0
        %1351 = vmatpush.bf16.msra.mxu0 %v1339
        %1352 = vmatpush.bf16.msra.mxu0 %v1338
        %1353 = vmatpush.bf16.msra.mxu0 %v1337
        %1354 = vmatpush.bf16.msra.mxu0 %v1336
        %1355 = vmatmul.bf16.gmra.mxu0 %v1345
        %v1356 = vpop.f32.mrf.mxu0
        %v1357 = vadd.f32 0.0, %v1356
        %v1358 = vpop.f32.mrf.mxu0
        %1359 = vdwg.mxu0
        %v1368 = vunpack.c.l.b16 %v1302
        %v1369 = vunpack.c.l.b16 %v1303
        %v1370 = vunpack.c.l.b16 %v1304
        %v1371 = vunpack.c.l.b16 %v1305
        %v1372 = vunpack.c.l.b16 %v1306
        %v1373 = vunpack.c.l.b16 %v1307
        %v1374 = vunpack.c.l.b16 %v1308
        %v1375 = vunpack.c.l.b16 %v1309
        %v1376 = vpack.c.b16 %v1369, %v1368
        %v1377 = vpack.c.b16 %v1371, %v1370
        %v1378 = vpack.c.b16 %v1373, %v1372
        %v1379 = vpack.c.b16 %v1375, %v1374
        %v1385 = vsel %vm280, %v1301, 0
        %1387 = vmatpush.bf16.msra.mxu0 0
        %1388 = vmatpush.bf16.msra.mxu0 0
        %1389 = vmatpush.bf16.msra.mxu0 0
        %1390 = vmatpush.bf16.msra.mxu0 0
        %1391 = vmatpush.bf16.msra.mxu0 %v1379
        %1392 = vmatpush.bf16.msra.mxu0 %v1378
        %1393 = vmatpush.bf16.msra.mxu0 %v1377
        %1394 = vmatpush.bf16.msra.mxu0 %v1376
        %1395 = vmatmul.bf16.gmra.mxu0 %v1385
        %v1396 = vpop.f32.mrf.mxu0
        %v1397 = vadd.f32 %v1357, %v1396
        %v1398 = vpop.f32.mrf.mxu0
        %1399 = vdwg.mxu0
        %v1400 = vadd.f32 %v1397, %v254
        %v1401 = vmax.f32 %v1400, 0.0
        %v1402 = vpack.c.bf16 %v1401, %v1401
        %1404 = vrot.lane.b32.xlu0 %v1402, 8
        %v1405 = vpop.permute.xlu0 %1404
        %s1407 = scalar_lea.vmem [#allocation2], 16
        %1408 = vst.msk [vmem:[%s1407] sm:$0x3] %vm1087, %v1405
        %v1409 = vld [vmem:[%s222] sm:$0x3]
        %s1410 = scalar_lea.vmem %s1, 384
        %v1411 = vld [vmem:[%s1410] sm:$0xf]
        %v1412 = vld [vmem:[%s1410 + $0x4] sm:$0xf]
        %v1413 = vld [vmem:[%s1410 + $0x8] sm:$0xf]
        %v1414 = vld [vmem:[%s1410 + $0xc] sm:$0xf]
        %v1415 = vld [vmem:[%s1410 + $0x10] sm:$0xf]
        %v1416 = vld [vmem:[%s1410 + $0x14] sm:$0xf]
        %v1417 = vld [vmem:[%s1410 + $0x18] sm:$0xf]
        %v1418 = vld [vmem:[%s1410 + $0x1c] sm:$0xf]
        %v1419 = vld [vmem:[%s222] sm:$0x7]
        %s1420 = scalar_lea.vmem %s1, 416
        %v1421 = vld [vmem:[%s1420] sm:$0xf]
        %v1422 = vld [vmem:[%s1420 + $0x4] sm:$0xf]
        %v1423 = vld [vmem:[%s1420 + $0x8] sm:$0xf]
        %v1424 = vld [vmem:[%s1420 + $0xc] sm:$0xf]
        %v1425 = vld [vmem:[%s1420 + $0x10] sm:$0xf]
        %v1426 = vld [vmem:[%s1420 + $0x14] sm:$0xf]
        %v1427 = vld [vmem:[%s1420 + $0x18] sm:$0xf]
        %v1428 = vld [vmem:[%s1420 + $0x1c] sm:$0xf]
        %v1430 = vunpack.c.l.b16 %v1419
        %v1431 = vpack.c.b16 %v1430, %v1430
        %v1433 = vshrl.u32 %v1431, 16
        %v1435 = vshll.u32 %v1431, 16
        %v1437 = vrot.slane %v1435, 1
        %v1438 = vor.u32 %v1433, %v1437
        %v1447 = vunpack.c.l.b16 %v1421
        %v1448 = vunpack.c.l.b16 %v1422
        %v1449 = vunpack.c.l.b16 %v1423
        %v1450 = vunpack.c.l.b16 %v1424
        %v1451 = vunpack.c.l.b16 %v1425
        %v1452 = vunpack.c.l.b16 %v1426
        %v1453 = vunpack.c.l.b16 %v1427
        %v1454 = vunpack.c.l.b16 %v1428
        %v1455 = vpack.c.b16 %v1448, %v1447
        %v1456 = vpack.c.b16 %v1450, %v1449
        %v1457 = vpack.c.b16 %v1452, %v1451
        %v1458 = vpack.c.b16 %v1454, %v1453
        %v1464 = vsel %vm280, %v1438, 0
        %1466 = vmatpush.bf16.msra.mxu0 0
        %1467 = vmatpush.bf16.msra.mxu0 0
        %1468 = vmatpush.bf16.msra.mxu0 0
        %1469 = vmatpush.bf16.msra.mxu0 0
        %1470 = vmatpush.bf16.msra.mxu0 %v1458
        %1471 = vmatpush.bf16.msra.mxu0 %v1457
        %1472 = vmatpush.bf16.msra.mxu0 %v1456
        %1473 = vmatpush.bf16.msra.mxu0 %v1455
        %1474 = vmatmul.bf16.gmra.mxu0 %v1464
        %v1475 = vpop.f32.mrf.mxu0
        %v1476 = vadd.f32 0.0, %v1475
        %v1477 = vpop.f32.mrf.mxu0
        %1478 = vdwg.mxu0
        %v1487 = vunpack.c.l.b16 %v1411
        %v1488 = vunpack.c.l.b16 %v1412
        %v1489 = vunpack.c.l.b16 %v1413
        %v1490 = vunpack.c.l.b16 %v1414
        %v1491 = vunpack.c.l.b16 %v1415
        %v1492 = vunpack.c.l.b16 %v1416
        %v1493 = vunpack.c.l.b16 %v1417
        %v1494 = vunpack.c.l.b16 %v1418
        %v1495 = vpack.c.b16 %v1488, %v1487
        %v1496 = vpack.c.b16 %v1490, %v1489
        %v1497 = vpack.c.b16 %v1492, %v1491
        %v1498 = vpack.c.b16 %v1494, %v1493
        %v1504 = vsel %vm280, %v1409, 0
        %1506 = vmatpush.bf16.msra.mxu0 0
        %1507 = vmatpush.bf16.msra.mxu0 0
        %1508 = vmatpush.bf16.msra.mxu0 0
        %1509 = vmatpush.bf16.msra.mxu0 0
        %1510 = vmatpush.bf16.msra.mxu0 %v1498
        %1511 = vmatpush.bf16.msra.mxu0 %v1497
        %1512 = vmatpush.bf16.msra.mxu0 %v1496
        %1513 = vmatpush.bf16.msra.mxu0 %v1495
        %1514 = vmatmul.bf16.gmra.mxu0 %v1504
        %v1515 = vpop.f32.mrf.mxu0
        %v1516 = vadd.f32 %v1476, %v1515
        %v1517 = vpop.f32.mrf.mxu0
        %1518 = vdwg.mxu0
        %v1519 = vld [vmem:[%s305] sm:$0x3]
        %s1520 = scalar_lea.vmem %s1, 448
        %v1521 = vld [vmem:[%s1520] sm:$0xf]
        %v1522 = vld [vmem:[%s1520 + $0x4] sm:$0xf]
        %v1523 = vld [vmem:[%s1520 + $0x8] sm:$0xf]
        %v1524 = vld [vmem:[%s1520 + $0xc] sm:$0xf]
        %v1525 = vld [vmem:[%s1520 + $0x10] sm:$0xf]
        %v1526 = vld [vmem:[%s1520 + $0x14] sm:$0xf]
        %v1527 = vld [vmem:[%s1520 + $0x18] sm:$0xf]
        %v1528 = vld [vmem:[%s1520 + $0x1c] sm:$0xf]
        %v1537 = vunpack.c.l.b16 %v1521
        %v1538 = vunpack.c.l.b16 %v1522
        %v1539 = vunpack.c.l.b16 %v1523
        %v1540 = vunpack.c.l.b16 %v1524
        %v1541 = vunpack.c.l.b16 %v1525
        %v1542 = vunpack.c.l.b16 %v1526
        %v1543 = vunpack.c.l.b16 %v1527
        %v1544 = vunpack.c.l.b16 %v1528
        %v1545 = vpack.c.b16 %v1538, %v1537
        %v1546 = vpack.c.b16 %v1540, %v1539
        %v1547 = vpack.c.b16 %v1542, %v1541
        %v1548 = vpack.c.b16 %v1544, %v1543
        %v1554 = vsel %vm280, %v1519, 0
        %1556 = vmatpush.bf16.msra.mxu0 0
        %1557 = vmatpush.bf16.msra.mxu0 0
        %1558 = vmatpush.bf16.msra.mxu0 0
        %1559 = vmatpush.bf16.msra.mxu0 0
        %1560 = vmatpush.bf16.msra.mxu0 %v1548
        %1561 = vmatpush.bf16.msra.mxu0 %v1547
        %1562 = vmatpush.bf16.msra.mxu0 %v1546
        %1563 = vmatpush.bf16.msra.mxu0 %v1545
        %1564 = vmatmul.bf16.gmra.mxu0 %v1554
        %v1565 = vpop.f32.mrf.mxu0
        %v1566 = vadd.f32 0.0, %v1565
        %v1567 = vpop.f32.mrf.mxu0
        %1568 = vdwg.mxu0
        %v1569 = vadd.f32 %v1516, %v1566
        %v1570 = vld [vmem:[%s305] sm:$0x7]
        %s1571 = scalar_lea.vmem %s1, 480
        %v1572 = vld [vmem:[%s1571] sm:$0xf]
        %v1573 = vld [vmem:[%s1571 + $0x4] sm:$0xf]
        %v1574 = vld [vmem:[%s1571 + $0x8] sm:$0xf]
        %v1575 = vld [vmem:[%s1571 + $0xc] sm:$0xf]
        %v1576 = vld [vmem:[%s1571 + $0x10] sm:$0xf]
        %v1577 = vld [vmem:[%s1571 + $0x14] sm:$0xf]
        %v1578 = vld [vmem:[%s1571 + $0x18] sm:$0xf]
        %v1579 = vld [vmem:[%s1571 + $0x1c] sm:$0xf]
        %v1581 = vunpack.c.l.b16 %v1570
        %v1582 = vpack.c.b16 %v1581, %v1581
        %v1584 = vshrl.u32 %v1582, 16
        %v1586 = vshll.u32 %v1582, 16
        %v1588 = vrot.slane %v1586, 1
        %v1589 = vor.u32 %v1584, %v1588
        %v1598 = vunpack.c.l.b16 %v1572
        %v1599 = vunpack.c.l.b16 %v1573
        %v1600 = vunpack.c.l.b16 %v1574
        %v1601 = vunpack.c.l.b16 %v1575
        %v1602 = vunpack.c.l.b16 %v1576
        %v1603 = vunpack.c.l.b16 %v1577
        %v1604 = vunpack.c.l.b16 %v1578
        %v1605 = vunpack.c.l.b16 %v1579
        %v1606 = vpack.c.b16 %v1599, %v1598
        %v1607 = vpack.c.b16 %v1601, %v1600
        %v1608 = vpack.c.b16 %v1603, %v1602
        %v1609 = vpack.c.b16 %v1605, %v1604
        %v1615 = vsel %vm280, %v1589, 0
        %1617 = vmatpush.bf16.msra.mxu0 0
        %1618 = vmatpush.bf16.msra.mxu0 0
        %1619 = vmatpush.bf16.msra.mxu0 0
        %1620 = vmatpush.bf16.msra.mxu0 0
        %1621 = vmatpush.bf16.msra.mxu0 %v1609
        %1622 = vmatpush.bf16.msra.mxu0 %v1608
        %1623 = vmatpush.bf16.msra.mxu0 %v1607
        %1624 = vmatpush.bf16.msra.mxu0 %v1606
        %1625 = vmatmul.bf16.gmra.mxu0 %v1615
        %v1626 = vpop.f32.mrf.mxu0
        %v1627 = vadd.f32 0.0, %v1626
        %v1628 = vpop.f32.mrf.mxu0
        %1629 = vdwg.mxu0
        %v1630 = vadd.f32 %v1569, %v1627
        %v1631 = vadd.f32 %v1630, %v254
        %v1632 = vmax.f32 %v1631, 0.0
        %v1633 = vpack.c.bf16 %v1632, %v1632
        %v1635 = vshrl.u32 %v1633, 16
        %v1637 = vrot.slane %v1635, 7
        %v1638 = vshll.u32 %v1633, 16
        %v1640 = vor.u32 %v1637, %v1638
        %vm1642 = vcmask 59392
        %vm1643 = vmand %vm1642, %vm603
        %v1644 = vld [vmem:[%s361] sm:$0x7]
        %v1645 = vsel %vm1643, %v1640, %v1644
        %1646 = vst [vmem:[%s361] sm:$0x7] %v1645
        %v1647 = vld [vmem:[%s305] sm:$0x3]
        %v1648 = vld [vmem:[%s1410] sm:$0xf]
        %v1649 = vld [vmem:[%s1410 + $0x4] sm:$0xf]
        %v1650 = vld [vmem:[%s1410 + $0x8] sm:$0xf]
        %v1651 = vld [vmem:[%s1410 + $0xc] sm:$0xf]
        %v1652 = vld [vmem:[%s1410 + $0x10] sm:$0xf]
        %v1653 = vld [vmem:[%s1410 + $0x14] sm:$0xf]
        %v1654 = vld [vmem:[%s1410 + $0x18] sm:$0xf]
        %v1655 = vld [vmem:[%s1410 + $0x1c] sm:$0xf]
        %v1656 = vld [vmem:[%s305] sm:$0x7]
        %v1657 = vld [vmem:[%s1420] sm:$0xf]
        %v1658 = vld [vmem:[%s1420 + $0x4] sm:$0xf]
        %v1659 = vld [vmem:[%s1420 + $0x8] sm:$0xf]
        %v1660 = vld [vmem:[%s1420 + $0xc] sm:$0xf]
        %v1661 = vld [vmem:[%s1420 + $0x10] sm:$0xf]
        %v1662 = vld [vmem:[%s1420 + $0x14] sm:$0xf]
        %v1663 = vld [vmem:[%s1420 + $0x18] sm:$0xf]
        %v1664 = vld [vmem:[%s1420 + $0x1c] sm:$0xf]
        %v1666 = vunpack.c.l.b16 %v1656
        %v1667 = vpack.c.b16 %v1666, %v1666
        %v1669 = vshrl.u32 %v1667, 16
        %v1671 = vshll.u32 %v1667, 16
        %v1673 = vrot.slane %v1671, 1
        %v1674 = vor.u32 %v1669, %v1673
        %v1683 = vunpack.c.l.b16 %v1657
        %v1684 = vunpack.c.l.b16 %v1658
        %v1685 = vunpack.c.l.b16 %v1659
        %v1686 = vunpack.c.l.b16 %v1660
        %v1687 = vunpack.c.l.b16 %v1661
        %v1688 = vunpack.c.l.b16 %v1662
        %v1689 = vunpack.c.l.b16 %v1663
        %v1690 = vunpack.c.l.b16 %v1664
        %v1691 = vpack.c.b16 %v1684, %v1683
        %v1692 = vpack.c.b16 %v1686, %v1685
        %v1693 = vpack.c.b16 %v1688, %v1687
        %v1694 = vpack.c.b16 %v1690, %v1689
        %v1700 = vsel %vm280, %v1674, 0
        %1702 = vmatpush.bf16.msra.mxu0 0
        %1703 = vmatpush.bf16.msra.mxu0 0
        %1704 = vmatpush.bf16.msra.mxu0 0
        %1705 = vmatpush.bf16.msra.mxu0 0
        %1706 = vmatpush.bf16.msra.mxu0 %v1694
        %1707 = vmatpush.bf16.msra.mxu0 %v1693
        %1708 = vmatpush.bf16.msra.mxu0 %v1692
        %1709 = vmatpush.bf16.msra.mxu0 %v1691
        %1710 = vmatmul.bf16.gmra.mxu0 %v1700
        %v1711 = vpop.f32.mrf.mxu0
        %v1712 = vadd.f32 0.0, %v1711
        %v1713 = vpop.f32.mrf.mxu0
        %1714 = vdwg.mxu0
        %v1723 = vunpack.c.l.b16 %v1648
        %v1724 = vunpack.c.l.b16 %v1649
        %v1725 = vunpack.c.l.b16 %v1650
        %v1726 = vunpack.c.l.b16 %v1651
        %v1727 = vunpack.c.l.b16 %v1652
        %v1728 = vunpack.c.l.b16 %v1653
        %v1729 = vunpack.c.l.b16 %v1654
        %v1730 = vunpack.c.l.b16 %v1655
        %v1731 = vpack.c.b16 %v1724, %v1723
        %v1732 = vpack.c.b16 %v1726, %v1725
        %v1733 = vpack.c.b16 %v1728, %v1727
        %v1734 = vpack.c.b16 %v1730, %v1729
        %v1740 = vsel %vm280, %v1647, 0
        %1742 = vmatpush.bf16.msra.mxu0 0
        %1743 = vmatpush.bf16.msra.mxu0 0
        %1744 = vmatpush.bf16.msra.mxu0 0
        %1745 = vmatpush.bf16.msra.mxu0 0
        %1746 = vmatpush.bf16.msra.mxu0 %v1734
        %1747 = vmatpush.bf16.msra.mxu0 %v1733
        %1748 = vmatpush.bf16.msra.mxu0 %v1732
        %1749 = vmatpush.bf16.msra.mxu0 %v1731
        %1750 = vmatmul.bf16.gmra.mxu0 %v1740
        %v1751 = vpop.f32.mrf.mxu0
        %v1752 = vadd.f32 %v1712, %v1751
        %v1753 = vpop.f32.mrf.mxu0
        %1754 = vdwg.mxu0
        %v1755 = vld [vmem:[%s363] sm:$0x3]
        %v1756 = vld [vmem:[%s1520] sm:$0xf]
        %v1757 = vld [vmem:[%s1520 + $0x4] sm:$0xf]
        %v1758 = vld [vmem:[%s1520 + $0x8] sm:$0xf]
        %v1759 = vld [vmem:[%s1520 + $0xc] sm:$0xf]
        %v1760 = vld [vmem:[%s1520 + $0x10] sm:$0xf]
        %v1761 = vld [vmem:[%s1520 + $0x14] sm:$0xf]
        %v1762 = vld [vmem:[%s1520 + $0x18] sm:$0xf]
        %v1763 = vld [vmem:[%s1520 + $0x1c] sm:$0xf]
        %v1772 = vunpack.c.l.b16 %v1756
        %v1773 = vunpack.c.l.b16 %v1757
        %v1774 = vunpack.c.l.b16 %v1758
        %v1775 = vunpack.c.l.b16 %v1759
        %v1776 = vunpack.c.l.b16 %v1760
        %v1777 = vunpack.c.l.b16 %v1761
        %v1778 = vunpack.c.l.b16 %v1762
        %v1779 = vunpack.c.l.b16 %v1763
        %v1780 = vpack.c.b16 %v1773, %v1772
        %v1781 = vpack.c.b16 %v1775, %v1774
        %v1782 = vpack.c.b16 %v1777, %v1776
        %v1783 = vpack.c.b16 %v1779, %v1778
        %v1789 = vsel %vm280, %v1755, 0
        %1791 = vmatpush.bf16.msra.mxu0 0
        %1792 = vmatpush.bf16.msra.mxu0 0
        %1793 = vmatpush.bf16.msra.mxu0 0
        %1794 = vmatpush.bf16.msra.mxu0 0
        %1795 = vmatpush.bf16.msra.mxu0 %v1783
        %1796 = vmatpush.bf16.msra.mxu0 %v1782
        %1797 = vmatpush.bf16.msra.mxu0 %v1781
        %1798 = vmatpush.bf16.msra.mxu0 %v1780
        %1799 = vmatmul.bf16.gmra.mxu0 %v1789
        %v1800 = vpop.f32.mrf.mxu0
        %v1801 = vadd.f32 0.0, %v1800
        %v1802 = vpop.f32.mrf.mxu0
        %1803 = vdwg.mxu0
        %v1804 = vadd.f32 %v1752, %v1801
        %v1805 = vld [vmem:[%s363] sm:$0x7]
        %v1806 = vld [vmem:[%s1571] sm:$0xf]
        %v1807 = vld [vmem:[%s1571 + $0x4] sm:$0xf]
        %v1808 = vld [vmem:[%s1571 + $0x8] sm:$0xf]
        %v1809 = vld [vmem:[%s1571 + $0xc] sm:$0xf]
        %v1810 = vld [vmem:[%s1571 + $0x10] sm:$0xf]
        %v1811 = vld [vmem:[%s1571 + $0x14] sm:$0xf]
        %v1812 = vld [vmem:[%s1571 + $0x18] sm:$0xf]
        %v1813 = vld [vmem:[%s1571 + $0x1c] sm:$0xf]
        %v1815 = vunpack.c.l.b16 %v1805
        %v1816 = vpack.c.b16 %v1815, %v1815
        %v1818 = vshrl.u32 %v1816, 16
        %v1820 = vshll.u32 %v1816, 16
        %v1822 = vrot.slane %v1820, 1
        %v1823 = vor.u32 %v1818, %v1822
        %v1832 = vunpack.c.l.b16 %v1806
        %v1833 = vunpack.c.l.b16 %v1807
        %v1834 = vunpack.c.l.b16 %v1808
        %v1835 = vunpack.c.l.b16 %v1809
        %v1836 = vunpack.c.l.b16 %v1810
        %v1837 = vunpack.c.l.b16 %v1811
        %v1838 = vunpack.c.l.b16 %v1812
        %v1839 = vunpack.c.l.b16 %v1813
        %v1840 = vpack.c.b16 %v1833, %v1832
        %v1841 = vpack.c.b16 %v1835, %v1834
        %v1842 = vpack.c.b16 %v1837, %v1836
        %v1843 = vpack.c.b16 %v1839, %v1838
        %v1849 = vsel %vm280, %v1823, 0
        %1851 = vmatpush.bf16.msra.mxu0 0
        %1852 = vmatpush.bf16.msra.mxu0 0
        %1853 = vmatpush.bf16.msra.mxu0 0
        %1854 = vmatpush.bf16.msra.mxu0 0
        %1855 = vmatpush.bf16.msra.mxu0 %v1843
        %1856 = vmatpush.bf16.msra.mxu0 %v1842
        %1857 = vmatpush.bf16.msra.mxu0 %v1841
        %1858 = vmatpush.bf16.msra.mxu0 %v1840
        %1859 = vmatmul.bf16.gmra.mxu0 %v1849
        %v1860 = vpop.f32.mrf.mxu0
        %v1861 = vadd.f32 0.0, %v1860
        %v1862 = vpop.f32.mrf.mxu0
        %1863 = vdwg.mxu0
        %v1864 = vadd.f32 %v1804, %v1861
        %v1865 = vadd.f32 %v1864, %v254
        %v1866 = vmax.f32 %v1865, 0.0
        %v1867 = vpack.c.bf16 %v1866, %v1866
        %v1869 = vshrl.u32 %v1867, 16
        %v1871 = vrot.slane %v1869, 7
        %v1872 = vshll.u32 %v1867, 16
        %v1874 = vor.u32 %v1871, %v1872
        %v1876 = vld [vmem:[%s419] sm:$0x7]
        %v1877 = vsel %vm1643, %v1874, %v1876
        %1878 = vst [vmem:[%s419] sm:$0x7] %v1877
        %v1879 = vld [vmem:[%s363] sm:$0x3]
        %v1880 = vld [vmem:[%s1410] sm:$0xf]
        %v1881 = vld [vmem:[%s1410 + $0x4] sm:$0xf]
        %v1882 = vld [vmem:[%s1410 + $0x8] sm:$0xf]
        %v1883 = vld [vmem:[%s1410 + $0xc] sm:$0xf]
        %v1884 = vld [vmem:[%s1410 + $0x10] sm:$0xf]
        %v1885 = vld [vmem:[%s1410 + $0x14] sm:$0xf]
        %v1886 = vld [vmem:[%s1410 + $0x18] sm:$0xf]
        %v1887 = vld [vmem:[%s1410 + $0x1c] sm:$0xf]
        %v1888 = vld [vmem:[%s363] sm:$0x7]
        %v1889 = vld [vmem:[%s1420] sm:$0xf]
        %v1890 = vld [vmem:[%s1420 + $0x4] sm:$0xf]
        %v1891 = vld [vmem:[%s1420 + $0x8] sm:$0xf]
        %v1892 = vld [vmem:[%s1420 + $0xc] sm:$0xf]
        %v1893 = vld [vmem:[%s1420 + $0x10] sm:$0xf]
        %v1894 = vld [vmem:[%s1420 + $0x14] sm:$0xf]
        %v1895 = vld [vmem:[%s1420 + $0x18] sm:$0xf]
        %v1896 = vld [vmem:[%s1420 + $0x1c] sm:$0xf]
        %v1898 = vunpack.c.l.b16 %v1888
        %v1899 = vpack.c.b16 %v1898, %v1898
        %v1901 = vshrl.u32 %v1899, 16
        %v1903 = vshll.u32 %v1899, 16
        %v1905 = vrot.slane %v1903, 1
        %v1906 = vor.u32 %v1901, %v1905
        %v1915 = vunpack.c.l.b16 %v1889
        %v1916 = vunpack.c.l.b16 %v1890
        %v1917 = vunpack.c.l.b16 %v1891
        %v1918 = vunpack.c.l.b16 %v1892
        %v1919 = vunpack.c.l.b16 %v1893
        %v1920 = vunpack.c.l.b16 %v1894
        %v1921 = vunpack.c.l.b16 %v1895
        %v1922 = vunpack.c.l.b16 %v1896
        %v1923 = vpack.c.b16 %v1916, %v1915
        %v1924 = vpack.c.b16 %v1918, %v1917
        %v1925 = vpack.c.b16 %v1920, %v1919
        %v1926 = vpack.c.b16 %v1922, %v1921
        %v1932 = vsel %vm280, %v1906, 0
        %1934 = vmatpush.bf16.msra.mxu0 0
        %1935 = vmatpush.bf16.msra.mxu0 0
        %1936 = vmatpush.bf16.msra.mxu0 0
        %1937 = vmatpush.bf16.msra.mxu0 0
        %1938 = vmatpush.bf16.msra.mxu0 %v1926
        %1939 = vmatpush.bf16.msra.mxu0 %v1925
        %1940 = vmatpush.bf16.msra.mxu0 %v1924
        %1941 = vmatpush.bf16.msra.mxu0 %v1923
        %1942 = vmatmul.bf16.gmra.mxu0 %v1932
        %v1943 = vpop.f32.mrf.mxu0
        %v1944 = vadd.f32 0.0, %v1943
        %v1945 = vpop.f32.mrf.mxu0
        %1946 = vdwg.mxu0
        %v1955 = vunpack.c.l.b16 %v1880
        %v1956 = vunpack.c.l.b16 %v1881
        %v1957 = vunpack.c.l.b16 %v1882
        %v1958 = vunpack.c.l.b16 %v1883
        %v1959 = vunpack.c.l.b16 %v1884
        %v1960 = vunpack.c.l.b16 %v1885
        %v1961 = vunpack.c.l.b16 %v1886
        %v1962 = vunpack.c.l.b16 %v1887
        %v1963 = vpack.c.b16 %v1956, %v1955
        %v1964 = vpack.c.b16 %v1958, %v1957
        %v1965 = vpack.c.b16 %v1960, %v1959
        %v1966 = vpack.c.b16 %v1962, %v1961
        %v1972 = vsel %vm280, %v1879, 0
        %1974 = vmatpush.bf16.msra.mxu0 0
        %1975 = vmatpush.bf16.msra.mxu0 0
        %1976 = vmatpush.bf16.msra.mxu0 0
        %1977 = vmatpush.bf16.msra.mxu0 0
        %1978 = vmatpush.bf16.msra.mxu0 %v1966
        %1979 = vmatpush.bf16.msra.mxu0 %v1965
        %1980 = vmatpush.bf16.msra.mxu0 %v1964
        %1981 = vmatpush.bf16.msra.mxu0 %v1963
        %1982 = vmatmul.bf16.gmra.mxu0 %v1972
        %v1983 = vpop.f32.mrf.mxu0
        %v1984 = vadd.f32 %v1944, %v1983
        %v1985 = vpop.f32.mrf.mxu0
        %1986 = vdwg.mxu0
        %v1987 = vld [vmem:[%s421] sm:$0x3]
        %v1988 = vld [vmem:[%s1520] sm:$0xf]
        %v1989 = vld [vmem:[%s1520 + $0x4] sm:$0xf]
        %v1990 = vld [vmem:[%s1520 + $0x8] sm:$0xf]
        %v1991 = vld [vmem:[%s1520 + $0xc] sm:$0xf]
        %v1992 = vld [vmem:[%s1520 + $0x10] sm:$0xf]
        %v1993 = vld [vmem:[%s1520 + $0x14] sm:$0xf]
        %v1994 = vld [vmem:[%s1520 + $0x18] sm:$0xf]
        %v1995 = vld [vmem:[%s1520 + $0x1c] sm:$0xf]
        %v2004 = vunpack.c.l.b16 %v1988
        %v2005 = vunpack.c.l.b16 %v1989
        %v2006 = vunpack.c.l.b16 %v1990
        %v2007 = vunpack.c.l.b16 %v1991
        %v2008 = vunpack.c.l.b16 %v1992
        %v2009 = vunpack.c.l.b16 %v1993
        %v2010 = vunpack.c.l.b16 %v1994
        %v2011 = vunpack.c.l.b16 %v1995
        %v2012 = vpack.c.b16 %v2005, %v2004
        %v2013 = vpack.c.b16 %v2007, %v2006
        %v2014 = vpack.c.b16 %v2009, %v2008
        %v2015 = vpack.c.b16 %v2011, %v2010
        %v2021 = vsel %vm280, %v1987, 0
        %2023 = vmatpush.bf16.msra.mxu0 0
        %2024 = vmatpush.bf16.msra.mxu0 0
        %2025 = vmatpush.bf16.msra.mxu0 0
        %2026 = vmatpush.bf16.msra.mxu0 0
        %2027 = vmatpush.bf16.msra.mxu0 %v2015
        %2028 = vmatpush.bf16.msra.mxu0 %v2014
        %2029 = vmatpush.bf16.msra.mxu0 %v2013
        %2030 = vmatpush.bf16.msra.mxu0 %v2012
        %2031 = vmatmul.bf16.gmra.mxu0 %v2021
        %v2032 = vpop.f32.mrf.mxu0
        %v2033 = vadd.f32 0.0, %v2032
        %v2034 = vpop.f32.mrf.mxu0
        %2035 = vdwg.mxu0
        %v2036 = vadd.f32 %v1984, %v2033
        %v2037 = vld [vmem:[%s421] sm:$0x7]
        %v2038 = vld [vmem:[%s1571] sm:$0xf]
        %v2039 = vld [vmem:[%s1571 + $0x4] sm:$0xf]
        %v2040 = vld [vmem:[%s1571 + $0x8] sm:$0xf]
        %v2041 = vld [vmem:[%s1571 + $0xc] sm:$0xf]
        %v2042 = vld [vmem:[%s1571 + $0x10] sm:$0xf]
        %v2043 = vld [vmem:[%s1571 + $0x14] sm:$0xf]
        %v2044 = vld [vmem:[%s1571 + $0x18] sm:$0xf]
        %v2045 = vld [vmem:[%s1571 + $0x1c] sm:$0xf]
        %v2047 = vunpack.c.l.b16 %v2037
        %v2048 = vpack.c.b16 %v2047, %v2047
        %v2050 = vshrl.u32 %v2048, 16
        %v2052 = vshll.u32 %v2048, 16
        %v2054 = vrot.slane %v2052, 1
        %v2055 = vor.u32 %v2050, %v2054
        %v2064 = vunpack.c.l.b16 %v2038
        %v2065 = vunpack.c.l.b16 %v2039
        %v2066 = vunpack.c.l.b16 %v2040
        %v2067 = vunpack.c.l.b16 %v2041
        %v2068 = vunpack.c.l.b16 %v2042
        %v2069 = vunpack.c.l.b16 %v2043
        %v2070 = vunpack.c.l.b16 %v2044
        %v2071 = vunpack.c.l.b16 %v2045
        %v2072 = vpack.c.b16 %v2065, %v2064
        %v2073 = vpack.c.b16 %v2067, %v2066
        %v2074 = vpack.c.b16 %v2069, %v2068
        %v2075 = vpack.c.b16 %v2071, %v2070
        %v2081 = vsel %vm280, %v2055, 0
        %2083 = vmatpush.bf16.msra.mxu0 0
        %2084 = vmatpush.bf16.msra.mxu0 0
        %2085 = vmatpush.bf16.msra.mxu0 0
        %2086 = vmatpush.bf16.msra.mxu0 0
        %2087 = vmatpush.bf16.msra.mxu0 %v2075
        %2088 = vmatpush.bf16.msra.mxu0 %v2074
        %2089 = vmatpush.bf16.msra.mxu0 %v2073
        %2090 = vmatpush.bf16.msra.mxu0 %v2072
        %2091 = vmatmul.bf16.gmra.mxu0 %v2081
        %v2092 = vpop.f32.mrf.mxu0
        %v2093 = vadd.f32 0.0, %v2092
        %v2094 = vpop.f32.mrf.mxu0
        %2095 = vdwg.mxu0
        %v2096 = vadd.f32 %v2036, %v2093
        %v2097 = vadd.f32 %v2096, %v254
        %v2098 = vmax.f32 %v2097, 0.0
        %v2099 = vpack.c.bf16 %v2098, %v2098
        %v2101 = vshrl.u32 %v2099, 16
        %v2103 = vrot.slane %v2101, 7
        %v2104 = vshll.u32 %v2099, 16
        %v2106 = vor.u32 %v2103, %v2104
        %v2108 = vld [vmem:[%s477] sm:$0x7]
        %v2109 = vsel %vm1643, %v2106, %v2108
        %2110 = vst [vmem:[%s477] sm:$0x7] %v2109
        %v2111 = vld [vmem:[%s421] sm:$0x3]
        %v2112 = vld [vmem:[%s1410] sm:$0xf]
        %v2113 = vld [vmem:[%s1410 + $0x4] sm:$0xf]
        %v2114 = vld [vmem:[%s1410 + $0x8] sm:$0xf]
        %v2115 = vld [vmem:[%s1410 + $0xc] sm:$0xf]
        %v2116 = vld [vmem:[%s1410 + $0x10] sm:$0xf]
        %v2117 = vld [vmem:[%s1410 + $0x14] sm:$0xf]
        %v2118 = vld [vmem:[%s1410 + $0x18] sm:$0xf]
        %v2119 = vld [vmem:[%s1410 + $0x1c] sm:$0xf]
        %v2120 = vld [vmem:[%s421] sm:$0x7]
        %v2121 = vld [vmem:[%s1420] sm:$0xf]
        %v2122 = vld [vmem:[%s1420 + $0x4] sm:$0xf]
        %v2123 = vld [vmem:[%s1420 + $0x8] sm:$0xf]
        %v2124 = vld [vmem:[%s1420 + $0xc] sm:$0xf]
        %v2125 = vld [vmem:[%s1420 + $0x10] sm:$0xf]
        %v2126 = vld [vmem:[%s1420 + $0x14] sm:$0xf]
        %v2127 = vld [vmem:[%s1420 + $0x18] sm:$0xf]
        %v2128 = vld [vmem:[%s1420 + $0x1c] sm:$0xf]
        %v2130 = vunpack.c.l.b16 %v2120
        %v2131 = vpack.c.b16 %v2130, %v2130
        %v2133 = vshrl.u32 %v2131, 16
        %v2135 = vshll.u32 %v2131, 16
        %v2137 = vrot.slane %v2135, 1
        %v2138 = vor.u32 %v2133, %v2137
        %v2147 = vunpack.c.l.b16 %v2121
        %v2148 = vunpack.c.l.b16 %v2122
        %v2149 = vunpack.c.l.b16 %v2123
        %v2150 = vunpack.c.l.b16 %v2124
        %v2151 = vunpack.c.l.b16 %v2125
        %v2152 = vunpack.c.l.b16 %v2126
        %v2153 = vunpack.c.l.b16 %v2127
        %v2154 = vunpack.c.l.b16 %v2128
        %v2155 = vpack.c.b16 %v2148, %v2147
        %v2156 = vpack.c.b16 %v2150, %v2149
        %v2157 = vpack.c.b16 %v2152, %v2151
        %v2158 = vpack.c.b16 %v2154, %v2153
        %v2164 = vsel %vm280, %v2138, 0
        %2166 = vmatpush.bf16.msra.mxu0 0
        %2167 = vmatpush.bf16.msra.mxu0 0
        %2168 = vmatpush.bf16.msra.mxu0 0
        %2169 = vmatpush.bf16.msra.mxu0 0
        %2170 = vmatpush.bf16.msra.mxu0 %v2158
        %2171 = vmatpush.bf16.msra.mxu0 %v2157
        %2172 = vmatpush.bf16.msra.mxu0 %v2156
        %2173 = vmatpush.bf16.msra.mxu0 %v2155
        %2174 = vmatmul.bf16.gmra.mxu0 %v2164
        %v2175 = vpop.f32.mrf.mxu0
        %v2176 = vadd.f32 0.0, %v2175
        %v2177 = vpop.f32.mrf.mxu0
        %2178 = vdwg.mxu0
        %v2187 = vunpack.c.l.b16 %v2112
        %v2188 = vunpack.c.l.b16 %v2113
        %v2189 = vunpack.c.l.b16 %v2114
        %v2190 = vunpack.c.l.b16 %v2115
        %v2191 = vunpack.c.l.b16 %v2116
        %v2192 = vunpack.c.l.b16 %v2117
        %v2193 = vunpack.c.l.b16 %v2118
        %v2194 = vunpack.c.l.b16 %v2119
        %v2195 = vpack.c.b16 %v2188, %v2187
        %v2196 = vpack.c.b16 %v2190, %v2189
        %v2197 = vpack.c.b16 %v2192, %v2191
        %v2198 = vpack.c.b16 %v2194, %v2193
        %v2204 = vsel %vm280, %v2111, 0
        %2206 = vmatpush.bf16.msra.mxu0 0
        %2207 = vmatpush.bf16.msra.mxu0 0
        %2208 = vmatpush.bf16.msra.mxu0 0
        %2209 = vmatpush.bf16.msra.mxu0 0
        %2210 = vmatpush.bf16.msra.mxu0 %v2198
        %2211 = vmatpush.bf16.msra.mxu0 %v2197
        %2212 = vmatpush.bf16.msra.mxu0 %v2196
        %2213 = vmatpush.bf16.msra.mxu0 %v2195
        %2214 = vmatmul.bf16.gmra.mxu0 %v2204
        %v2215 = vpop.f32.mrf.mxu0
        %v2216 = vadd.f32 %v2176, %v2215
        %v2217 = vpop.f32.mrf.mxu0
        %2218 = vdwg.mxu0
        %v2219 = vld [vmem:[%s1310] sm:$0x3]
        %v2220 = vld [vmem:[%s1520] sm:$0xf]
        %v2221 = vld [vmem:[%s1520 + $0x4] sm:$0xf]
        %v2222 = vld [vmem:[%s1520 + $0x8] sm:$0xf]
        %v2223 = vld [vmem:[%s1520 + $0xc] sm:$0xf]
        %v2224 = vld [vmem:[%s1520 + $0x10] sm:$0xf]
        %v2225 = vld [vmem:[%s1520 + $0x14] sm:$0xf]
        %v2226 = vld [vmem:[%s1520 + $0x18] sm:$0xf]
        %v2227 = vld [vmem:[%s1520 + $0x1c] sm:$0xf]
        %v2236 = vunpack.c.l.b16 %v2220
        %v2237 = vunpack.c.l.b16 %v2221
        %v2238 = vunpack.c.l.b16 %v2222
        %v2239 = vunpack.c.l.b16 %v2223
        %v2240 = vunpack.c.l.b16 %v2224
        %v2241 = vunpack.c.l.b16 %v2225
        %v2242 = vunpack.c.l.b16 %v2226
        %v2243 = vunpack.c.l.b16 %v2227
        %v2244 = vpack.c.b16 %v2237, %v2236
        %v2245 = vpack.c.b16 %v2239, %v2238
        %v2246 = vpack.c.b16 %v2241, %v2240
        %v2247 = vpack.c.b16 %v2243, %v2242
        %v2253 = vsel %vm280, %v2219, 0
        %2255 = vmatpush.bf16.msra.mxu0 0
        %2256 = vmatpush.bf16.msra.mxu0 0
        %2257 = vmatpush.bf16.msra.mxu0 0
        %2258 = vmatpush.bf16.msra.mxu0 0
        %2259 = vmatpush.bf16.msra.mxu0 %v2247
        %2260 = vmatpush.bf16.msra.mxu0 %v2246
        %2261 = vmatpush.bf16.msra.mxu0 %v2245
        %2262 = vmatpush.bf16.msra.mxu0 %v2244
        %2263 = vmatmul.bf16.gmra.mxu0 %v2253
        %v2264 = vpop.f32.mrf.mxu0
        %v2265 = vadd.f32 0.0, %v2264
        %v2266 = vpop.f32.mrf.mxu0
        %2267 = vdwg.mxu0
        %v2268 = vadd.f32 %v2216, %v2265
        %v2269 = vld [vmem:[%s1310] sm:$0x7]
        %v2270 = vld [vmem:[%s1571] sm:$0xf]
        %v2271 = vld [vmem:[%s1571 + $0x4] sm:$0xf]
        %v2272 = vld [vmem:[%s1571 + $0x8] sm:$0xf]
        %v2273 = vld [vmem:[%s1571 + $0xc] sm:$0xf]
        %v2274 = vld [vmem:[%s1571 + $0x10] sm:$0xf]
        %v2275 = vld [vmem:[%s1571 + $0x14] sm:$0xf]
        %v2276 = vld [vmem:[%s1571 + $0x18] sm:$0xf]
        %v2277 = vld [vmem:[%s1571 + $0x1c] sm:$0xf]
        %v2279 = vunpack.c.l.b16 %v2269
        %v2280 = vpack.c.b16 %v2279, %v2279
        %v2282 = vshrl.u32 %v2280, 16
        %v2284 = vshll.u32 %v2280, 16
        %v2286 = vrot.slane %v2284, 1
        %v2287 = vor.u32 %v2282, %v2286
        %v2296 = vunpack.c.l.b16 %v2270
        %v2297 = vunpack.c.l.b16 %v2271
        %v2298 = vunpack.c.l.b16 %v2272
        %v2299 = vunpack.c.l.b16 %v2273
        %v2300 = vunpack.c.l.b16 %v2274
        %v2301 = vunpack.c.l.b16 %v2275
        %v2302 = vunpack.c.l.b16 %v2276
        %v2303 = vunpack.c.l.b16 %v2277
        %v2304 = vpack.c.b16 %v2297, %v2296
        %v2305 = vpack.c.b16 %v2299, %v2298
        %v2306 = vpack.c.b16 %v2301, %v2300
        %v2307 = vpack.c.b16 %v2303, %v2302
        %v2313 = vsel %vm280, %v2287, 0
        %2315 = vmatpush.bf16.msra.mxu0 0
        %2316 = vmatpush.bf16.msra.mxu0 0
        %2317 = vmatpush.bf16.msra.mxu0 0
        %2318 = vmatpush.bf16.msra.mxu0 0
        %2319 = vmatpush.bf16.msra.mxu0 %v2307
        %2320 = vmatpush.bf16.msra.mxu0 %v2306
        %2321 = vmatpush.bf16.msra.mxu0 %v2305
        %2322 = vmatpush.bf16.msra.mxu0 %v2304
        %2323 = vmatmul.bf16.gmra.mxu0 %v2313
        %v2324 = vpop.f32.mrf.mxu0
        %v2325 = vadd.f32 0.0, %v2324
        %v2326 = vpop.f32.mrf.mxu0
        %2327 = vdwg.mxu0
        %v2328 = vadd.f32 %v2268, %v2325
        %v2329 = vadd.f32 %v2328, %v254
        %v2330 = vmax.f32 %v2329, 0.0
        %v2331 = vpack.c.bf16 %v2330, %v2330
        %v2333 = vshrl.u32 %v2331, 16
        %v2335 = vrot.slane %v2333, 7
        %v2336 = vshll.u32 %v2331, 16
        %v2338 = vor.u32 %v2335, %v2336
        %v2340 = vld [vmem:[%s1407] sm:$0x7]
        %v2341 = vsel %vm1643, %v2338, %v2340
        %2342 = vst [vmem:[%s1407] sm:$0x7] %v2341
        %v2343 = vld [vmem:[#allocation2] sm:$0x3]
        %v2344 = vld [vmem:[%s3] sm:$0xf]
        %v2345 = vld [vmem:[%s3 + $0x4] sm:$0xf]
        %v2346 = vld [vmem:[%s3 + $0x8] sm:$0xf]
        %v2347 = vld [vmem:[%s3 + $0xc] sm:$0xf]
        %v2348 = vld [vmem:[#allocation2] sm:$0x7]
        %s2349 = scalar_lea.vmem %s3, 16
        %v2350 = vld [vmem:[%s2349] sm:$0xf]
        %v2351 = vld [vmem:[%s2349 + $0x4] sm:$0xf]
        %v2352 = vld [vmem:[%s2349 + $0x8] sm:$0xf]
        %v2353 = vld [vmem:[%s2349 + $0xc] sm:$0xf]
        %v2355 = vunpack.c.l.b16 %v2348
        %v2356 = vpack.c.b16 %v2355, %v2355
        %v2358 = vshrl.u32 %v2356, 16
        %v2360 = vshll.u32 %v2356, 16
        %v2362 = vrot.slane %v2360, 1
        %v2363 = vor.u32 %v2358, %v2362
        %v2368 = vunpack.c.l.b16 %v2350
        %v2369 = vunpack.c.l.b16 %v2351
        %v2370 = vunpack.c.l.b16 %v2352
        %v2371 = vunpack.c.l.b16 %v2353
        %v2372 = vpack.c.b16 %v2369, %v2368
        %v2373 = vpack.c.b16 %v2371, %v2370
        %vm2376 = vcmask 261120
        %v2378 = vsel %vm2376, %v2363, 0
        %2380 = vmatpush.bf16.msra.mxu0 0
        %2381 = vmatpush.bf16.msra.mxu0 0
        %2382 = vmatpush.bf16.msra.mxu0 0
        %2383 = vmatpush.bf16.msra.mxu0 0
        %2384 = vmatpush.bf16.msra.mxu0 0
        %2385 = vmatpush.bf16.msra.mxu0 0
        %2386 = vmatpush.bf16.msra.mxu0 %v2373
        %2387 = vmatpush.bf16.msra.mxu0 %v2372
        %2388 = vmatmul.bf16.gmra.mxu0 %v2378
        %v2389 = vpop.f32.mrf.mxu0
        %v2390 = vadd.f32 0.0, %v2389
        %v2391 = vpop.f32.mrf.mxu0
        %2392 = vdwg.mxu0
        %v2397 = vunpack.c.l.b16 %v2344
        %v2398 = vunpack.c.l.b16 %v2345
        %v2399 = vunpack.c.l.b16 %v2346
        %v2400 = vunpack.c.l.b16 %v2347
        %v2401 = vpack.c.b16 %v2398, %v2397
        %v2402 = vpack.c.b16 %v2400, %v2399
        %v2406 = vsel %vm2376, %v2343, 0
        %2408 = vmatpush.bf16.msra.mxu0 0
        %2409 = vmatpush.bf16.msra.mxu0 0
        %2410 = vmatpush.bf16.msra.mxu0 0
        %2411 = vmatpush.bf16.msra.mxu0 0
        %2412 = vmatpush.bf16.msra.mxu0 0
        %2413 = vmatpush.bf16.msra.mxu0 0
        %2414 = vmatpush.bf16.msra.mxu0 %v2402
        %2415 = vmatpush.bf16.msra.mxu0 %v2401
        %2416 = vmatmul.bf16.gmra.mxu0 %v2406
        %v2417 = vpop.f32.mrf.mxu0
        %v2418 = vadd.f32 %v2390, %v2417
        %v2419 = vpop.f32.mrf.mxu0
        %2420 = vdwg.mxu0
        %v2421 = vld [vmem:[%s361] sm:$0x3]
        %s2422 = scalar_lea.vmem %s3, 32
        %v2423 = vld [vmem:[%s2422] sm:$0xf]
        %v2424 = vld [vmem:[%s2422 + $0x4] sm:$0xf]
        %v2425 = vld [vmem:[%s2422 + $0x8] sm:$0xf]
        %v2426 = vld [vmem:[%s2422 + $0xc] sm:$0xf]
        %v2431 = vunpack.c.l.b16 %v2423
        %v2432 = vunpack.c.l.b16 %v2424
        %v2433 = vunpack.c.l.b16 %v2425
        %v2434 = vunpack.c.l.b16 %v2426
        %v2435 = vpack.c.b16 %v2432, %v2431
        %v2436 = vpack.c.b16 %v2434, %v2433
        %v2440 = vsel %vm2376, %v2421, 0
        %2442 = vmatpush.bf16.msra.mxu0 0
        %2443 = vmatpush.bf16.msra.mxu0 0
        %2444 = vmatpush.bf16.msra.mxu0 0
        %2445 = vmatpush.bf16.msra.mxu0 0
        %2446 = vmatpush.bf16.msra.mxu0 0
        %2447 = vmatpush.bf16.msra.mxu0 0
        %2448 = vmatpush.bf16.msra.mxu0 %v2436
        %2449 = vmatpush.bf16.msra.mxu0 %v2435
        %2450 = vmatmul.bf16.gmra.mxu0 %v2440
        %v2451 = vpop.f32.mrf.mxu0
        %v2452 = vadd.f32 0.0, %v2451
        %v2453 = vpop.f32.mrf.mxu0
        %2454 = vdwg.mxu0
        %v2455 = vadd.f32 %v2418, %v2452
        %v2456 = vld [vmem:[%s361] sm:$0x7]
        %s2457 = scalar_lea.vmem %s3, 48
        %v2458 = vld [vmem:[%s2457] sm:$0xf]
        %v2459 = vld [vmem:[%s2457 + $0x4] sm:$0xf]
        %v2460 = vld [vmem:[%s2457 + $0x8] sm:$0xf]
        %v2461 = vld [vmem:[%s2457 + $0xc] sm:$0xf]
        %v2463 = vunpack.c.l.b16 %v2456
        %v2464 = vpack.c.b16 %v2463, %v2463
        %v2466 = vshrl.u32 %v2464, 16
        %v2468 = vshll.u32 %v2464, 16
        %v2470 = vrot.slane %v2468, 1
        %v2471 = vor.u32 %v2466, %v2470
        %v2476 = vunpack.c.l.b16 %v2458
        %v2477 = vunpack.c.l.b16 %v2459
        %v2478 = vunpack.c.l.b16 %v2460
        %v2479 = vunpack.c.l.b16 %v2461
        %v2480 = vpack.c.b16 %v2477, %v2476
        %v2481 = vpack.c.b16 %v2479, %v2478
        %v2485 = vsel %vm2376, %v2471, 0
        %2487 = vmatpush.bf16.msra.mxu0 0
        %2488 = vmatpush.bf16.msra.mxu0 0
        %2489 = vmatpush.bf16.msra.mxu0 0
        %2490 = vmatpush.bf16.msra.mxu0 0
        %2491 = vmatpush.bf16.msra.mxu0 0
        %2492 = vmatpush.bf16.msra.mxu0 0
        %2493 = vmatpush.bf16.msra.mxu0 %v2481
        %2494 = vmatpush.bf16.msra.mxu0 %v2480
        %2495 = vmatmul.bf16.gmra.mxu0 %v2485
        %v2496 = vpop.f32.mrf.mxu0
        %v2497 = vadd.f32 0.0, %v2496
        %v2498 = vpop.f32.mrf.mxu0
        %2499 = vdwg.mxu0
        %v2500 = vadd.f32 %v2455, %v2497
        %v2502 = vperm.slane %v243, 0
        %v2504 = vadd.f32 %v2500, %v2502
        %v2505 = vmax.f32 %v2504, 0.0
        %vm2506 = vcmask 125952
        %2507 = vst.msk [vmem:[%s217] sm:$0xf] %vm2506, %v2505
        %v2508 = vld [vmem:[%s361] sm:$0x3]
        %v2509 = vld [vmem:[%s3] sm:$0xf]
        %v2510 = vld [vmem:[%s3 + $0x4] sm:$0xf]
        %v2511 = vld [vmem:[%s3 + $0x8] sm:$0xf]
        %v2512 = vld [vmem:[%s3 + $0xc] sm:$0xf]
        %v2513 = vld [vmem:[%s361] sm:$0x7]
        %v2514 = vld [vmem:[%s2349] sm:$0xf]
        %v2515 = vld [vmem:[%s2349 + $0x4] sm:$0xf]
        %v2516 = vld [vmem:[%s2349 + $0x8] sm:$0xf]
        %v2517 = vld [vmem:[%s2349 + $0xc] sm:$0xf]
        %v2519 = vunpack.c.l.b16 %v2513
        %v2520 = vpack.c.b16 %v2519, %v2519
        %v2522 = vshrl.u32 %v2520, 16
        %v2524 = vshll.u32 %v2520, 16
        %v2526 = vrot.slane %v2524, 1
        %v2527 = vor.u32 %v2522, %v2526
        %v2532 = vunpack.c.l.b16 %v2514
        %v2533 = vunpack.c.l.b16 %v2515
        %v2534 = vunpack.c.l.b16 %v2516
        %v2535 = vunpack.c.l.b16 %v2517
        %v2536 = vpack.c.b16 %v2533, %v2532
        %v2537 = vpack.c.b16 %v2535, %v2534
        %v2541 = vsel %vm2376, %v2527, 0
        %2543 = vmatpush.bf16.msra.mxu0 0
        %2544 = vmatpush.bf16.msra.mxu0 0
        %2545 = vmatpush.bf16.msra.mxu0 0
        %2546 = vmatpush.bf16.msra.mxu0 0
        %2547 = vmatpush.bf16.msra.mxu0 0
        %2548 = vmatpush.bf16.msra.mxu0 0
        %2549 = vmatpush.bf16.msra.mxu0 %v2537
        %2550 = vmatpush.bf16.msra.mxu0 %v2536
        %2551 = vmatmul.bf16.gmra.mxu0 %v2541
        %v2552 = vpop.f32.mrf.mxu0
        %v2553 = vadd.f32 0.0, %v2552
        %v2554 = vpop.f32.mrf.mxu0
        %2555 = vdwg.mxu0
        %v2560 = vunpack.c.l.b16 %v2509
        %v2561 = vunpack.c.l.b16 %v2510
        %v2562 = vunpack.c.l.b16 %v2511
        %v2563 = vunpack.c.l.b16 %v2512
        %v2564 = vpack.c.b16 %v2561, %v2560
        %v2565 = vpack.c.b16 %v2563, %v2562
        %v2569 = vsel %vm2376, %v2508, 0
        %2571 = vmatpush.bf16.msra.mxu0 0
        %2572 = vmatpush.bf16.msra.mxu0 0
        %2573 = vmatpush.bf16.msra.mxu0 0
        %2574 = vmatpush.bf16.msra.mxu0 0
        %2575 = vmatpush.bf16.msra.mxu0 0
        %2576 = vmatpush.bf16.msra.mxu0 0
        %2577 = vmatpush.bf16.msra.mxu0 %v2565
        %2578 = vmatpush.bf16.msra.mxu0 %v2564
        %2579 = vmatmul.bf16.gmra.mxu0 %v2569
        %v2580 = vpop.f32.mrf.mxu0
        %v2581 = vadd.f32 %v2553, %v2580
        %v2582 = vpop.f32.mrf.mxu0
        %2583 = vdwg.mxu0
        %v2584 = vld [vmem:[%s419] sm:$0x3]
        %v2585 = vld [vmem:[%s2422] sm:$0xf]
        %v2586 = vld [vmem:[%s2422 + $0x4] sm:$0xf]
        %v2587 = vld [vmem:[%s2422 + $0x8] sm:$0xf]
        %v2588 = vld [vmem:[%s2422 + $0xc] sm:$0xf]
        %v2593 = vunpack.c.l.b16 %v2585
        %v2594 = vunpack.c.l.b16 %v2586
        %v2595 = vunpack.c.l.b16 %v2587
        %v2596 = vunpack.c.l.b16 %v2588
        %v2597 = vpack.c.b16 %v2594, %v2593
        %v2598 = vpack.c.b16 %v2596, %v2595
        %v2602 = vsel %vm2376, %v2584, 0
        %2604 = vmatpush.bf16.msra.mxu0 0
        %2605 = vmatpush.bf16.msra.mxu0 0
        %2606 = vmatpush.bf16.msra.mxu0 0
        %2607 = vmatpush.bf16.msra.mxu0 0
        %2608 = vmatpush.bf16.msra.mxu0 0
        %2609 = vmatpush.bf16.msra.mxu0 0
        %2610 = vmatpush.bf16.msra.mxu0 %v2598
        %2611 = vmatpush.bf16.msra.mxu0 %v2597
        %2612 = vmatmul.bf16.gmra.mxu0 %v2602
        %v2613 = vpop.f32.mrf.mxu0
        %v2614 = vadd.f32 0.0, %v2613
        %v2615 = vpop.f32.mrf.mxu0
        %2616 = vdwg.mxu0
        %v2617 = vadd.f32 %v2581, %v2614
        %v2618 = vld [vmem:[%s419] sm:$0x7]
        %v2619 = vld [vmem:[%s2457] sm:$0xf]
        %v2620 = vld [vmem:[%s2457 + $0x4] sm:$0xf]
        %v2621 = vld [vmem:[%s2457 + $0x8] sm:$0xf]
        %v2622 = vld [vmem:[%s2457 + $0xc] sm:$0xf]
        %v2624 = vunpack.c.l.b16 %v2618
        %v2625 = vpack.c.b16 %v2624, %v2624
        %v2627 = vshrl.u32 %v2625, 16
        %v2629 = vshll.u32 %v2625, 16
        %v2631 = vrot.slane %v2629, 1
        %v2632 = vor.u32 %v2627, %v2631
        %v2637 = vunpack.c.l.b16 %v2619
        %v2638 = vunpack.c.l.b16 %v2620
        %v2639 = vunpack.c.l.b16 %v2621
        %v2640 = vunpack.c.l.b16 %v2622
        %v2641 = vpack.c.b16 %v2638, %v2637
        %v2642 = vpack.c.b16 %v2640, %v2639
        %v2646 = vsel %vm2376, %v2632, 0
        %2648 = vmatpush.bf16.msra.mxu0 0
        %2649 = vmatpush.bf16.msra.mxu0 0
        %2650 = vmatpush.bf16.msra.mxu0 0
        %2651 = vmatpush.bf16.msra.mxu0 0
        %2652 = vmatpush.bf16.msra.mxu0 0
        %2653 = vmatpush.bf16.msra.mxu0 0
        %2654 = vmatpush.bf16.msra.mxu0 %v2642
        %2655 = vmatpush.bf16.msra.mxu0 %v2641
        %2656 = vmatmul.bf16.gmra.mxu0 %v2646
        %v2657 = vpop.f32.mrf.mxu0
        %v2658 = vadd.f32 0.0, %v2657
        %v2659 = vpop.f32.mrf.mxu0
        %2660 = vdwg.mxu0
        %v2661 = vadd.f32 %v2617, %v2658
        %v2662 = vadd.f32 %v2661, %v2502
        %v2663 = vmax.f32 %v2662, 0.0
        %s2664 = scalar_lea.vmem %s217, 4 [#allocation3]
        %2665 = vst.msk [vmem:[%s2664] sm:$0xf] %vm2506, %v2663
        %v2666 = vld [vmem:[%s419] sm:$0x3]
        %v2667 = vld [vmem:[%s3] sm:$0xf]
        %v2668 = vld [vmem:[%s3 + $0x4] sm:$0xf]
        %v2669 = vld [vmem:[%s3 + $0x8] sm:$0xf]
        %v2670 = vld [vmem:[%s3 + $0xc] sm:$0xf]
        %v2671 = vld [vmem:[%s419] sm:$0x7]
        %v2672 = vld [vmem:[%s2349] sm:$0xf]
        %v2673 = vld [vmem:[%s2349 + $0x4] sm:$0xf]
        %v2674 = vld [vmem:[%s2349 + $0x8] sm:$0xf]
        %v2675 = vld [vmem:[%s2349 + $0xc] sm:$0xf]
        %v2677 = vunpack.c.l.b16 %v2671
        %v2678 = vpack.c.b16 %v2677, %v2677
        %v2680 = vshrl.u32 %v2678, 16
        %v2682 = vshll.u32 %v2678, 16
        %v2684 = vrot.slane %v2682, 1
        %v2685 = vor.u32 %v2680, %v2684
        %v2690 = vunpack.c.l.b16 %v2672
        %v2691 = vunpack.c.l.b16 %v2673
        %v2692 = vunpack.c.l.b16 %v2674
        %v2693 = vunpack.c.l.b16 %v2675
        %v2694 = vpack.c.b16 %v2691, %v2690
        %v2695 = vpack.c.b16 %v2693, %v2692
        %v2699 = vsel %vm2376, %v2685, 0
        %2701 = vmatpush.bf16.msra.mxu0 0
        %2702 = vmatpush.bf16.msra.mxu0 0
        %2703 = vmatpush.bf16.msra.mxu0 0
        %2704 = vmatpush.bf16.msra.mxu0 0
        %2705 = vmatpush.bf16.msra.mxu0 0
        %2706 = vmatpush.bf16.msra.mxu0 0
        %2707 = vmatpush.bf16.msra.mxu0 %v2695
        %2708 = vmatpush.bf16.msra.mxu0 %v2694
        %2709 = vmatmul.bf16.gmra.mxu0 %v2699
        %v2710 = vpop.f32.mrf.mxu0
        %v2711 = vadd.f32 0.0, %v2710
        %v2712 = vpop.f32.mrf.mxu0
        %2713 = vdwg.mxu0
        %v2718 = vunpack.c.l.b16 %v2667
        %v2719 = vunpack.c.l.b16 %v2668
        %v2720 = vunpack.c.l.b16 %v2669
        %v2721 = vunpack.c.l.b16 %v2670
        %v2722 = vpack.c.b16 %v2719, %v2718
        %v2723 = vpack.c.b16 %v2721, %v2720
        %v2727 = vsel %vm2376, %v2666, 0
        %2729 = vmatpush.bf16.msra.mxu0 0
        %2730 = vmatpush.bf16.msra.mxu0 0
        %2731 = vmatpush.bf16.msra.mxu0 0
        %2732 = vmatpush.bf16.msra.mxu0 0
        %2733 = vmatpush.bf16.msra.mxu0 0
        %2734 = vmatpush.bf16.msra.mxu0 0
        %2735 = vmatpush.bf16.msra.mxu0 %v2723
        %2736 = vmatpush.bf16.msra.mxu0 %v2722
        %2737 = vmatmul.bf16.gmra.mxu0 %v2727
        %v2738 = vpop.f32.mrf.mxu0
        %v2739 = vadd.f32 %v2711, %v2738
        %v2740 = vpop.f32.mrf.mxu0
        %2741 = vdwg.mxu0
        %v2742 = vld [vmem:[%s477] sm:$0x3]
        %v2743 = vld [vmem:[%s2422] sm:$0xf]
        %v2744 = vld [vmem:[%s2422 + $0x4] sm:$0xf]
        %v2745 = vld [vmem:[%s2422 + $0x8] sm:$0xf]
        %v2746 = vld [vmem:[%s2422 + $0xc] sm:$0xf]
        %v2751 = vunpack.c.l.b16 %v2743
        %v2752 = vunpack.c.l.b16 %v2744
        %v2753 = vunpack.c.l.b16 %v2745
        %v2754 = vunpack.c.l.b16 %v2746
        %v2755 = vpack.c.b16 %v2752, %v2751
        %v2756 = vpack.c.b16 %v2754, %v2753
        %v2760 = vsel %vm2376, %v2742, 0
        %2762 = vmatpush.bf16.msra.mxu0 0
        %2763 = vmatpush.bf16.msra.mxu0 0
        %2764 = vmatpush.bf16.msra.mxu0 0
        %2765 = vmatpush.bf16.msra.mxu0 0
        %2766 = vmatpush.bf16.msra.mxu0 0
        %2767 = vmatpush.bf16.msra.mxu0 0
        %2768 = vmatpush.bf16.msra.mxu0 %v2756
        %2769 = vmatpush.bf16.msra.mxu0 %v2755
        %2770 = vmatmul.bf16.gmra.mxu0 %v2760
        %v2771 = vpop.f32.mrf.mxu0
        %v2772 = vadd.f32 0.0, %v2771
        %v2773 = vpop.f32.mrf.mxu0
        %2774 = vdwg.mxu0
        %v2775 = vadd.f32 %v2739, %v2772
        %v2776 = vld [vmem:[%s477] sm:$0x7]
        %v2777 = vld [vmem:[%s2457] sm:$0xf]
        %v2778 = vld [vmem:[%s2457 + $0x4] sm:$0xf]
        %v2779 = vld [vmem:[%s2457 + $0x8] sm:$0xf]
        %v2780 = vld [vmem:[%s2457 + $0xc] sm:$0xf]
        %v2782 = vunpack.c.l.b16 %v2776
        %v2783 = vpack.c.b16 %v2782, %v2782
        %v2785 = vshrl.u32 %v2783, 16
        %v2787 = vshll.u32 %v2783, 16
        %v2789 = vrot.slane %v2787, 1
        %v2790 = vor.u32 %v2785, %v2789
        %v2795 = vunpack.c.l.b16 %v2777
        %v2796 = vunpack.c.l.b16 %v2778
        %v2797 = vunpack.c.l.b16 %v2779
        %v2798 = vunpack.c.l.b16 %v2780
        %v2799 = vpack.c.b16 %v2796, %v2795
        %v2800 = vpack.c.b16 %v2798, %v2797
        %v2804 = vsel %vm2376, %v2790, 0
        %2806 = vmatpush.bf16.msra.mxu0 0
        %2807 = vmatpush.bf16.msra.mxu0 0
        %2808 = vmatpush.bf16.msra.mxu0 0
        %2809 = vmatpush.bf16.msra.mxu0 0
        %2810 = vmatpush.bf16.msra.mxu0 0
        %2811 = vmatpush.bf16.msra.mxu0 0
        %2812 = vmatpush.bf16.msra.mxu0 %v2800
        %2813 = vmatpush.bf16.msra.mxu0 %v2799
        %2814 = vmatmul.bf16.gmra.mxu0 %v2804
        %v2815 = vpop.f32.mrf.mxu0
        %v2816 = vadd.f32 0.0, %v2815
        %v2817 = vpop.f32.mrf.mxu0
        %2818 = vdwg.mxu0
        %v2819 = vadd.f32 %v2775, %v2816
        %v2820 = vadd.f32 %v2819, %v2502
        %v2821 = vmax.f32 %v2820, 0.0
        %s2822 = scalar_lea.vmem %s217, 8 [#allocation3]
        %2823 = vst.msk [vmem:[%s2822] sm:$0xf] %vm2506, %v2821
        %v2824 = vld [vmem:[%s477] sm:$0x3]
        %v2825 = vld [vmem:[%s3] sm:$0xf]
        %v2826 = vld [vmem:[%s3 + $0x4] sm:$0xf]
        %v2827 = vld [vmem:[%s3 + $0x8] sm:$0xf]
        %v2828 = vld [vmem:[%s3 + $0xc] sm:$0xf]
        %v2829 = vld [vmem:[%s477] sm:$0x7]
        %v2830 = vld [vmem:[%s2349] sm:$0xf]
        %v2831 = vld [vmem:[%s2349 + $0x4] sm:$0xf]
        %v2832 = vld [vmem:[%s2349 + $0x8] sm:$0xf]
        %v2833 = vld [vmem:[%s2349 + $0xc] sm:$0xf]
        %v2835 = vunpack.c.l.b16 %v2829
        %v2836 = vpack.c.b16 %v2835, %v2835
        %v2838 = vshrl.u32 %v2836, 16
        %v2840 = vshll.u32 %v2836, 16
        %v2842 = vrot.slane %v2840, 1
        %v2843 = vor.u32 %v2838, %v2842
        %v2848 = vunpack.c.l.b16 %v2830
        %v2849 = vunpack.c.l.b16 %v2831
        %v2850 = vunpack.c.l.b16 %v2832
        %v2851 = vunpack.c.l.b16 %v2833
        %v2852 = vpack.c.b16 %v2849, %v2848
        %v2853 = vpack.c.b16 %v2851, %v2850
        %v2857 = vsel %vm2376, %v2843, 0
        %2859 = vmatpush.bf16.msra.mxu0 0
        %2860 = vmatpush.bf16.msra.mxu0 0
        %2861 = vmatpush.bf16.msra.mxu0 0
        %2862 = vmatpush.bf16.msra.mxu0 0
        %2863 = vmatpush.bf16.msra.mxu0 0
        %2864 = vmatpush.bf16.msra.mxu0 0
        %2865 = vmatpush.bf16.msra.mxu0 %v2853
        %2866 = vmatpush.bf16.msra.mxu0 %v2852
        %2867 = vmatmul.bf16.gmra.mxu0 %v2857
        %v2868 = vpop.f32.mrf.mxu0
        %v2869 = vadd.f32 0.0, %v2868
        %v2870 = vpop.f32.mrf.mxu0
        %2871 = vdwg.mxu0
        %v2876 = vunpack.c.l.b16 %v2825
        %v2877 = vunpack.c.l.b16 %v2826
        %v2878 = vunpack.c.l.b16 %v2827
        %v2879 = vunpack.c.l.b16 %v2828
        %v2880 = vpack.c.b16 %v2877, %v2876
        %v2881 = vpack.c.b16 %v2879, %v2878
        %v2885 = vsel %vm2376, %v2824, 0
        %2887 = vmatpush.bf16.msra.mxu0 0
        %2888 = vmatpush.bf16.msra.mxu0 0
        %2889 = vmatpush.bf16.msra.mxu0 0
        %2890 = vmatpush.bf16.msra.mxu0 0
        %2891 = vmatpush.bf16.msra.mxu0 0
        %2892 = vmatpush.bf16.msra.mxu0 0
        %2893 = vmatpush.bf16.msra.mxu0 %v2881
        %2894 = vmatpush.bf16.msra.mxu0 %v2880
        %2895 = vmatmul.bf16.gmra.mxu0 %v2885
        %v2896 = vpop.f32.mrf.mxu0
        %v2897 = vadd.f32 %v2869, %v2896
        %v2898 = vpop.f32.mrf.mxu0
        %2899 = vdwg.mxu0
        %v2900 = vld [vmem:[%s1407] sm:$0x3]
        %v2901 = vld [vmem:[%s2422] sm:$0xf]
        %v2902 = vld [vmem:[%s2422 + $0x4] sm:$0xf]
        %v2903 = vld [vmem:[%s2422 + $0x8] sm:$0xf]
        %v2904 = vld [vmem:[%s2422 + $0xc] sm:$0xf]
        %v2909 = vunpack.c.l.b16 %v2901
        %v2910 = vunpack.c.l.b16 %v2902
        %v2911 = vunpack.c.l.b16 %v2903
        %v2912 = vunpack.c.l.b16 %v2904
        %v2913 = vpack.c.b16 %v2910, %v2909
        %v2914 = vpack.c.b16 %v2912, %v2911
        %v2918 = vsel %vm2376, %v2900, 0
        %2920 = vmatpush.bf16.msra.mxu0 0
        %2921 = vmatpush.bf16.msra.mxu0 0
        %2922 = vmatpush.bf16.msra.mxu0 0
        %2923 = vmatpush.bf16.msra.mxu0 0
        %2924 = vmatpush.bf16.msra.mxu0 0
        %2925 = vmatpush.bf16.msra.mxu0 0
        %2926 = vmatpush.bf16.msra.mxu0 %v2914
        %2927 = vmatpush.bf16.msra.mxu0 %v2913
        %2928 = vmatmul.bf16.gmra.mxu0 %v2918
        %v2929 = vpop.f32.mrf.mxu0
        %v2930 = vadd.f32 0.0, %v2929
        %v2931 = vpop.f32.mrf.mxu0
        %2932 = vdwg.mxu0
        %v2933 = vadd.f32 %v2897, %v2930
        %v2934 = vld [vmem:[%s1407] sm:$0x7]
        %v2935 = vld [vmem:[%s2457] sm:$0xf]
        %v2936 = vld [vmem:[%s2457 + $0x4] sm:$0xf]
        %v2937 = vld [vmem:[%s2457 + $0x8] sm:$0xf]
        %v2938 = vld [vmem:[%s2457 + $0xc] sm:$0xf]
        %v2940 = vunpack.c.l.b16 %v2934
        %v2941 = vpack.c.b16 %v2940, %v2940
        %v2943 = vshrl.u32 %v2941, 16
        %v2945 = vshll.u32 %v2941, 16
        %v2947 = vrot.slane %v2945, 1
        %v2948 = vor.u32 %v2943, %v2947
        %v2953 = vunpack.c.l.b16 %v2935
        %v2954 = vunpack.c.l.b16 %v2936
        %v2955 = vunpack.c.l.b16 %v2937
        %v2956 = vunpack.c.l.b16 %v2938
        %v2957 = vpack.c.b16 %v2954, %v2953
        %v2958 = vpack.c.b16 %v2956, %v2955
        %v2962 = vsel %vm2376, %v2948, 0
        %2964 = vmatpush.bf16.msra.mxu0 0
        %2965 = vmatpush.bf16.msra.mxu0 0
        %2966 = vmatpush.bf16.msra.mxu0 0
        %2967 = vmatpush.bf16.msra.mxu0 0
        %2968 = vmatpush.bf16.msra.mxu0 0
        %2969 = vmatpush.bf16.msra.mxu0 0
        %2970 = vmatpush.bf16.msra.mxu0 %v2958
        %2971 = vmatpush.bf16.msra.mxu0 %v2957
        %2972 = vmatmul.bf16.gmra.mxu0 %v2962
        %v2973 = vpop.f32.mrf.mxu0
        %v2974 = vadd.f32 0.0, %v2973
        %v2975 = vpop.f32.mrf.mxu0
        %2976 = vdwg.mxu0
        %v2977 = vadd.f32 %v2933, %v2974
        %v2978 = vadd.f32 %v2977, %v2502
        %v2979 = vmax.f32 %v2978, 0.0
        %s2980 = scalar_lea.vmem %s217, 12 [#allocation3]
        %2981 = vst.msk [vmem:[%s2980] sm:$0xf] %vm2506, %v2979
        %s2982 = sand.u32 %s137, 1
        %s2983 = scalar_lea.sflag [#allocation4], %s2982
        %s2984 = sand.u32 %s137, 1
        %s2985 = smul.addr %s2984, 16
        %s2986 = scalar_lea.vmem [#allocation3], %s2985
        // Predicated region
        $region41: #{encoder_forward.1} parent=39 // pred_check
          %p2987 = pneg %p147
        $region42: #{encoder_forward.1} parent=39 // pred_check_branch
          %2989 = sbr.rel (%p2987) target = $region44
        $region43: #{encoder_forward.1} parent=39 // pred_region
          %2991 = vsyncadd %s2983, 0
          %s2992 = smul.addr %s19, 4
          %s2993 = smul.addr %s2992, 4
          %s2994 = scalar_lea.hbm %s5, %s2993
          %s2995 = sshll.u32 %s2986, 4
          %s2996 = int_to_ptr.vmem [resolvable:$true] %s2995
          %s2997 = sshll.u32 %s2994, 4
          %s2998 = int_to_ptr.hbm [resolvable:$true] %s2997
          %3003 = dma.vmem_to_hbm [thread:$0]  %s2996, 256, %s2998, %s2983, 64, 64, 4
        $region44: #{encoder_forward.1} parent=39 // pred_fallthru
          _
      $region40: #{encoder_forward.1} parent=5 // pred_fallthru
        _
      %p3004 = scmp.le.s32.totalorder 2, %s14
      // Predicated region
      $region45: #{encoder_forward.1} parent=5 // pred_check
        %p3005 = pneg %p3004
      $region46: #{encoder_forward.1} parent=5 // pred_check_branch
        %3007 = sbr.rel (%p3005) target = $region48
      $region47: #{encoder_forward.1} parent=5 // pred_region
        %s3008 = ssub.s32 %s14, 2
        // Predicated region
        $region49: #{encoder_forward.1} parent=47 // pred_check
          %p3009 = pneg %p153
        $region50: #{encoder_forward.1} parent=47 // pred_check_branch
          %3011 = sbr.rel (%p3009) target = $region52
        $region51: #{encoder_forward.1} parent=47 // pred_region
          %s3012 = sand.u32 %s138, 1
          %s3013 = scalar_lea.sflag [#allocation4], %s3012
          %s3014 = sand.u32 %s138, 1
          %s3015 = smul.addr %s3014, 16
          %s3016 = scalar_lea.vmem [#allocation3], %s3015
          %3018 = dma.done %s3013, 256
        $region52: #{encoder_forward.1} parent=47 // pred_fallthru
          _
      $region48: #{encoder_forward.1} parent=5 // pred_fallthru
        _
    $region6: #{encoder_forward.1} parent=1 // loop_footer
      %s18 = sadd.s32 1, %s14
    $region7: #{encoder_forward.1} parent=1 // loop_footer_branch
      %13 = sbr.rel target = $region3
    $region8: #{encoder_forward.1} parent=1 // loop_exit
      _
    %3019 = vsyncpa [#allocation4], 1
    %s3020 = scalar_lea.sflag [#allocation4], 1
    %3021 = vsyncpa %s3020, 1

</llo_original>
